<compile_context>
chip_gen: v7x
topology: tpu7x:2x2x1
jax: 0.10.0
libtpu: 0.0.40
codegen_flags: <defaults>
</compile_context>

<pallas_src>
import jax
import jax.numpy as jnp
from jax.experimental import pallas as pl
from jax.experimental.pallas import tpu as pltpu

NEG_SLOPE = 0.01   # ns in the module
EPS = 1e-5         # InstanceNorm1d default eps

_LAYERS = ("conv1", "conv2", "conv3", "conv4", "conv5",
           "conv6", "conv7", "conv8", "conv9")


# ---------------------------------------------------------------------------
# Fused Pallas kernel (whole forward for one batch element)
# ---------------------------------------------------------------------------

def _fused_forward_kernel(x_ref, z_ref, lv_ref, *rest):
    # inputs: x, z, log_var (1, C_in, L); then w1,b1,...,w9,b9 with
    # w: (Cout, K*Cin) (k-major) and b: (Cout, 1); then out ref + 2 VMEM scratch.
    *wb, o_ref, hp_ref, im_ref = rest
    w_refs = wb[0::2]
    b_refs = wb[1::2]

    def conv(h, w_ref, b_ref, *, pad, act):
        # h: (Cin, L) value; returns (Cout, L_out) value.
        cin, l_in = h.shape
        kc = w_ref.shape[1]
        k_taps = kc // cin
        if pad:                           # reflect 'same' padding in VMEM scratch
            p = k_taps // 2
            l_out = l_in
            hp_ref[pl.ds(0, cin), pl.ds(p, l_in)] = h
            for i in range(p):            # left:  hp[:, i] = h[:, p - i]
                hp_ref[pl.ds(0, cin), pl.ds(i, 1)] = h[:, p - i:p - i + 1]
                # right: hp[:, p + L + i] = h[:, L - 2 - i]
                hp_ref[pl.ds(0, cin), pl.ds(p + l_in + i, 1)] = (
                    h[:, l_in - 2 - i:l_in - 1 - i])

            def tap(k):
                return hp_ref[pl.ds(0, cin), pl.ds(k, l_out)]
        else:                             # valid conv (conv9)
            l_out = l_in - k_taps + 1

            def tap(k):
                return h[:, k:k + l_out]

        # im2col: rows [k*Cin, (k+1)*Cin) hold tap k  -> one deep MXU matmul.
        for k in range(k_taps):
            im_ref[pl.ds(k * cin, cin), pl.ds(0, l_out)] = tap(k)
        cols = im_ref[pl.ds(0, kc), pl.ds(0, l_out)]          # (K*Cin, L_out)
        out = jnp.dot(w_ref[...], cols,
                      preferred_element_type=jnp.float32) + b_ref[...]
        if act:
            out = jnp.where(out >= 0.0, out, NEG_SLOPE * out)  # leaky_relu
        return out

    def inst_norm(h, res=None):
        # InstanceNorm1d (no affine): per-channel over L (lane axis), biased var.
        mean = jnp.mean(h, axis=1, keepdims=True)
        var = jnp.mean(h * h, axis=1, keepdims=True) - mean * mean
        y = (h - mean) * jax.lax.rsqrt(var + EPS)
        return y + res if res is not None else y

    # reparameterization: x * exp(0.5 * log_var) + z     (elementwise, (C, L))
    h = x_ref[0] * jnp.exp(0.5 * lv_ref[0]) + z_ref[0]

    # block 1 (no residual)
    h = conv(h, w_refs[0], b_refs[0], pad=True, act=True)
    h = conv(h, w_refs[1], b_refs[1], pad=True, act=True)
    h = inst_norm(h)                       # drop1 = identity (eval)
    # block 2 (residual)
    r = h
    h = conv(h, w_refs[2], b_refs[2], pad=True, act=True)
    h = conv(h, w_refs[3], b_refs[3], pad=True, act=True)
    h = inst_norm(h, r)
    # block 3 (residual)
    r = h
    h = conv(h, w_refs[4], b_refs[4], pad=True, act=True)
    h = conv(h, w_refs[5], b_refs[5], pad=True, act=True)
    h = inst_norm(h, r)
    # block 4 (no residual)
    h = conv(h, w_refs[6], b_refs[6], pad=True, act=True)
    h = conv(h, w_refs[7], b_refs[7], pad=True, act=True)
    h = inst_norm(h)
    # conv9: valid conv, no activation. Output (n_class, L9) == flatten order.
    h = conv(h, w_refs[8], b_refs[8], pad=False, act=False)
    o_ref[0] = h.astype(o_ref.dtype)


# ---------------------------------------------------------------------------
# Wrapper
# ---------------------------------------------------------------------------

def _flatten_params(params):
    """(K, Cin, Cout)/(Cout,) -> weight (Cout, K*Cin) (k-major) + bias (Cout, 1)."""
    flat = []
    for name in _LAYERS:
        w, b = params[name]
        k, cin, cout = w.shape
        flat.append(jnp.transpose(w, (2, 0, 1)).reshape(cout, k * cin))
        flat.append(b.reshape(cout, 1))
    return flat


@jax.jit
def forward(params, x_ncl, z_ncl, lv_ncl):
    """Inputs in PyTorch NCL layout (B, C, L). Returns (B, n_class * L_out)."""
    B, c_in, L = x_ncl.shape
    wb = _flatten_params(params)

    k9, _, n_class = params["conv9"][0].shape
    L9 = L - k9 + 1

    # scratch sizing (static, derived from the layer shapes)
    c_max = max(params[n][0].shape[1] for n in _LAYERS)                   # max Cin
    kc_max = max(params[n][0].shape[0] * params[n][0].shape[1] for n in _LAYERS)
    p_max = max(params[n][0].shape[0] // 2 for n in _LAYERS if n != "conv9")
    l_pad = L + 2 * p_max

    data_spec = pl.BlockSpec((1, c_in, L), lambda i: (i, 0, 0))
    in_specs = [data_spec, data_spec, data_spec]
    for arr in wb:                                   # weights/biases: full arrays
        in_specs.append(pl.BlockSpec(arr.shape, lambda i: (0, 0)))

    out = pl.pallas_call(
        _fused_forward_kernel,
        out_shape=jax.ShapeDtypeStruct((B, n_class, L9), jnp.float32),
        grid=(B,),
        in_specs=in_specs,
        out_specs=pl.BlockSpec((1, n_class, L9), lambda i: (i, 0, 0)),
        scratch_shapes=[
            pltpu.VMEM((c_max, l_pad), jnp.float32),   # reflect-padded activation
            pltpu.VMEM((kc_max, L), jnp.float32),      # im2col columns
        ],
        compiler_params=pltpu.CompilerParams(
            dimension_semantics=("parallel",)),
    )(x_ncl, z_ncl, lv_ncl, *wb)

    # (B, n_class, L9) row-major == torch out.view(B, -1) order -> free reshape.
    return out.reshape(B, -1)


# ---------------------------------------------------------------------------
# Parameter init (PyTorch Conv1d default init, stored as (K, Cin, Cout))
# ---------------------------------------------------------------------------

def init_params(key, c_in, c_h, n_class, seg_len):
    if seg_len == 128:
        k9 = 16
    elif seg_len == 64:
        k9 = 8
    else:
        raise NotImplementedError(f"Segment length {seg_len} not supported")
    specs = {
        "conv1": (c_in, c_h, 5), "conv2": (c_h, c_h, 5),
        "conv3": (c_h, c_h, 5), "conv4": (c_h, c_h, 5),
        "conv5": (c_h, c_h, 5), "conv6": (c_h, c_h, 5),
        "conv7": (c_h, c_h // 2, 3), "conv8": (c_h // 2, c_h // 4, 3),
        "conv9": (c_h // 4, n_class, k9),
    }
    params = {}
    for name, (cin, cout, k) in specs.items():
        key, kw, kb = jax.random.split(key, 3)
        bound = 1.0 / (cin * k) ** 0.5
        w = jax.random.uniform(kw, (k, cin, cout), jnp.float32, -bound, bound)
        b = jax.random.uniform(kb, (cout,), jnp.float32, -bound, bound)
        params[name] = (w, b)
    return params


# ---------------------------------------------------------------------------
# Pure-JAX reference (mirrors PyTorch semantics) for a correctness check
# ---------------------------------------------------------------------------

def _ref_conv(x_blc, w, b, *, pad, act):
    k = w.shape[0]
    if pad:
        p = k // 2
        x_blc = jnp.pad(x_blc, ((0, 0), (p, p), (0, 0)), mode="reflect")
    L_out = x_blc.shape[1] - k + 1
    out = b[None, None, :]
    for t in range(k):
        out = out + jnp.einsum("bli,io->blo", x_blc[:, t:t + L_out, :], w[t],
                               preferred_element_type=jnp.float32)
    if act:
        out = jnp.where(out >= 0.0, out, NEG_SLOPE * out)
    return out


def _ref_instnorm(x_blc):
    mean = jnp.mean(x_blc, axis=1, keepdims=True)
    var = jnp.mean((x_blc - mean) ** 2, axis=1, keepdims=True)
    return (x_blc - mean) * jax.lax.rsqrt(var + EPS)


def ref_forward(params, x_ncl, z_ncl, lv_ncl):
    x = jnp.transpose(x_ncl, (0, 2, 1))
    z = jnp.transpose(z_ncl, (0, 2, 1))
    lv = jnp.transpose(lv_ncl, (0, 2, 1))
    h = x * jnp.exp(0.5 * lv) + z

    def block(h, names, res):
        out = h
        for n in names:
            w, b = params[n]
            out = _ref_conv(out, w, b, pad=True, act=True)
        out = _ref_instnorm(out)
        return out + h if res else out

    h = block(h, ["conv1", "conv2"], False)
    h = block(h, ["conv3", "conv4"], True)
    h = block(h, ["conv5", "conv6"], True)
    h = block(h, ["conv7", "conv8"], False)
    w9, b9 = params["conv9"]
    h = _ref_conv(h, w9, b9, pad=False, act=False)
    h = jnp.transpose(h, (0, 2, 1))
    return h.reshape(h.shape[0], -1)


# ---------------------------------------------------------------------------

if __name__ == "__main__":
    # Small shapes consistent with the module (seg_len=64 branch).
    B, C_IN, C_H, N_CLASS, SEG_LEN = 2, 32, 32, 8, 64

    key = jax.random.PRNGKey(0)
    kp, kx, kz, kl = jax.random.split(key, 4)
    params = init_params(kp, C_IN, C_H, N_CLASS, SEG_LEN)

    # PyTorch layout NCL: (batch, channels, length)
    x = jax.random.normal(kx, (B, C_IN, SEG_LEN), jnp.float32)
    z = jax.random.normal(kz, (B, C_IN, SEG_LEN), jnp.float32)
    log_var = 0.1 * jax.random.normal(kl, (B, C_IN, SEG_LEN), jnp.float32)

    out = jax.block_until_ready(forward(params, x, z, log_var))

    expected_len = SEG_LEN - (16 if SEG_LEN == 128 else 8) + 1  # 57
    assert out.shape == (B, N_CLASS * expected_len), out.shape

    ref = jax.block_until_ready(ref_forward(params, x, z, log_var))
    max_err = float(jnp.max(jnp.abs(out - ref)))
    assert max_err < 2e-2, f"mismatch vs reference: max abs err {max_err}"

    print("KERNEL_OK")
</pallas_src>

<mosaic_0001>
module attributes {stable_mosaic.version = 11 : i64} {
  func.func @_fused_forward_kernel(%arg0: i32, %arg1: memref<1x32x64xf32, #tpu.memory_space<vmem>>, %arg2: memref<1x32x64xf32, #tpu.memory_space<vmem>>, %arg3: memref<1x32x64xf32, #tpu.memory_space<vmem>>, %arg4: memref<32x160xf32, #tpu.memory_space<vmem>>, %arg5: memref<32x1xf32, #tpu.memory_space<vmem>>, %arg6: memref<32x160xf32, #tpu.memory_space<vmem>>, %arg7: memref<32x1xf32, #tpu.memory_space<vmem>>, %arg8: memref<32x160xf32, #tpu.memory_space<vmem>>, %arg9: memref<32x1xf32, #tpu.memory_space<vmem>>, %arg10: memref<32x160xf32, #tpu.memory_space<vmem>>, %arg11: memref<32x1xf32, #tpu.memory_space<vmem>>, %arg12: memref<32x160xf32, #tpu.memory_space<vmem>>, %arg13: memref<32x1xf32, #tpu.memory_space<vmem>>, %arg14: memref<32x160xf32, #tpu.memory_space<vmem>>, %arg15: memref<32x1xf32, #tpu.memory_space<vmem>>, %arg16: memref<16x96xf32, #tpu.memory_space<vmem>>, %arg17: memref<16x1xf32, #tpu.memory_space<vmem>>, %arg18: memref<8x48xf32, #tpu.memory_space<vmem>>, %arg19: memref<8x1xf32, #tpu.memory_space<vmem>>, %arg20: memref<8x64xf32, #tpu.memory_space<vmem>>, %arg21: memref<8x1xf32, #tpu.memory_space<vmem>>, %arg22: memref<1x8x57xf32, #tpu.memory_space<vmem>>, %arg23: memref<32x68xf32, #tpu.memory_space<vmem>>, %arg24: memref<160x64xf32, #tpu.memory_space<vmem>>) attributes {dimension_semantics = [#tpu.dimension_semantics<parallel>], iteration_bounds = array<i64: 2>, scalar_prefetch = 0 : i64, scratch_operands = 2 : i64, tpu.core_type = #tpu.core_type<tc>, window_params = [{transform_indices = @transform_0, window_bounds = array<i64: 1, 32, 64>}, {transform_indices = @transform_1, window_bounds = array<i64: 1, 32, 64>}, {transform_indices = @transform_2, window_bounds = array<i64: 1, 32, 64>}, {pipeline_mode = #tpu.pipeline_mode<synchronous>, transform_indices = @transform_3, window_bounds = array<i64: 32, 160>}, {pipeline_mode = #tpu.pipeline_mode<synchronous>, transform_indices = @transform_4, window_bounds = array<i64: 32, 1>}, {pipeline_mode = #tpu.pipeline_mode<synchronous>, transform_indices = @transform_5, window_bounds = array<i64: 32, 160>}, {pipeline_mode = #tpu.pipeline_mode<synchronous>, transform_indices = @transform_6, window_bounds = array<i64: 32, 1>}, {pipeline_mode = #tpu.pipeline_mode<synchronous>, transform_indices = @transform_7, window_bounds = array<i64: 32, 160>}, {pipeline_mode = #tpu.pipeline_mode<synchronous>, transform_indices = @transform_8, window_bounds = array<i64: 32, 1>}, {pipeline_mode = #tpu.pipeline_mode<synchronous>, transform_indices = @transform_9, window_bounds = array<i64: 32, 160>}, {pipeline_mode = #tpu.pipeline_mode<synchronous>, transform_indices = @transform_10, window_bounds = array<i64: 32, 1>}, {pipeline_mode = #tpu.pipeline_mode<synchronous>, transform_indices = @transform_11, window_bounds = array<i64: 32, 160>}, {pipeline_mode = #tpu.pipeline_mode<synchronous>, transform_indices = @transform_12, window_bounds = array<i64: 32, 1>}, {pipeline_mode = #tpu.pipeline_mode<synchronous>, transform_indices = @transform_13, window_bounds = array<i64: 32, 160>}, {pipeline_mode = #tpu.pipeline_mode<synchronous>, transform_indices = @transform_14, window_bounds = array<i64: 32, 1>}, {pipeline_mode = #tpu.pipeline_mode<synchronous>, transform_indices = @transform_15, window_bounds = array<i64: 16, 96>}, {pipeline_mode = #tpu.pipeline_mode<synchronous>, transform_indices = @transform_16, window_bounds = array<i64: 16, 1>}, {pipeline_mode = #tpu.pipeline_mode<synchronous>, transform_indices = @transform_17, window_bounds = array<i64: 8, 48>}, {pipeline_mode = #tpu.pipeline_mode<synchronous>, transform_indices = @transform_18, window_bounds = array<i64: 8, 1>}, {pipeline_mode = #tpu.pipeline_mode<synchronous>, transform_indices = @transform_19, window_bounds = array<i64: 8, 64>}, {pipeline_mode = #tpu.pipeline_mode<synchronous>, transform_indices = @transform_20, window_bounds = array<i64: 8, 1>}, {transform_indices = @transform_21, window_bounds = array<i64: 1, 8, 57>}]} {
    %c0 = arith.constant 0 : index
    %c0_0 = arith.constant 0 : index
    %c0_1 = arith.constant 0 : index
    %0 = vector.load %arg1[%c0, %c0_0, %c0_1] : memref<1x32x64xf32, #tpu.memory_space<vmem>>, vector<1x32x64xf32>
    %1 = vector.shape_cast %0 : vector<1x32x64xf32> to vector<32x64xf32>
    %c0_2 = arith.constant 0 : index
    %c0_3 = arith.constant 0 : index
    %c0_4 = arith.constant 0 : index
    %2 = vector.load %arg3[%c0_2, %c0_3, %c0_4] : memref<1x32x64xf32, #tpu.memory_space<vmem>>, vector<1x32x64xf32>
    %3 = vector.shape_cast %2 : vector<1x32x64xf32> to vector<32x64xf32>
    %cst = arith.constant 5.000000e-01 : f32
    %4 = vector.broadcast %cst : f32 to vector<32x64xf32>
    %5 = arith.mulf %4, %3 : vector<32x64xf32>
    %6 = math.exp %5 : vector<32x64xf32>
    %7 = arith.mulf %1, %6 : vector<32x64xf32>
    %c0_5 = arith.constant 0 : index
    %c0_6 = arith.constant 0 : index
    %c0_7 = arith.constant 0 : index
    %8 = vector.load %arg2[%c0_5, %c0_6, %c0_7] : memref<1x32x64xf32, #tpu.memory_space<vmem>>, vector<1x32x64xf32>
    %9 = vector.shape_cast %8 : vector<1x32x64xf32> to vector<32x64xf32>
    %10 = arith.addf %7, %9 : vector<32x64xf32>
    %c0_8 = arith.constant 0 : index
    %c2 = arith.constant 2 : index
    %11 = vector.load %arg23[%c0_8, %c2] : memref<32x68xf32, #tpu.memory_space<vmem>>, vector<32x64xf32>
    tpu.vector_store %arg23[%c0_8, %c2], %10 {strides = array<i32>} : memref<32x68xf32, #tpu.memory_space<vmem>>, vector<32x64xf32>,
    %12 = vector.extract_strided_slice %10 {offsets = [0, 2], sizes = [32, 1], strides = [1, 1]} : vector<32x64xf32> to vector<32x1xf32>
    %c0_9 = arith.constant 0 : index
    %c0_10 = arith.constant 0 : index
    %13 = vector.load %arg23[%c0_9, %c0_10] : memref<32x68xf32, #tpu.memory_space<vmem>>, vector<32x1xf32>
    tpu.vector_store %arg23[%c0_9, %c0_10], %12 {strides = array<i32>} : memref<32x68xf32, #tpu.memory_space<vmem>>, vector<32x1xf32>,
    %14 = vector.extract_strided_slice %10 {offsets = [0, 62], sizes = [32, 1], strides = [1, 1]} : vector<32x64xf32> to vector<32x1xf32>
    %c0_11 = arith.constant 0 : index
    %c66 = arith.constant 66 : index
    %15 = vector.load %arg23[%c0_11, %c66] : memref<32x68xf32, #tpu.memory_space<vmem>>, vector<32x1xf32>
    tpu.vector_store %arg23[%c0_11, %c66], %14 {strides = array<i32>} : memref<32x68xf32, #tpu.memory_space<vmem>>, vector<32x1xf32>,
    %16 = vector.extract_strided_slice %10 {offsets = [0, 1], sizes = [32, 1], strides = [1, 1]} : vector<32x64xf32> to vector<32x1xf32>
    %c0_12 = arith.constant 0 : index
    %c1 = arith.constant 1 : index
    %17 = vector.load %arg23[%c0_12, %c1] : memref<32x68xf32, #tpu.memory_space<vmem>>, vector<32x1xf32>
    tpu.vector_store %arg23[%c0_12, %c1], %16 {strides = array<i32>} : memref<32x68xf32, #tpu.memory_space<vmem>>, vector<32x1xf32>,
    %18 = vector.extract_strided_slice %10 {offsets = [0, 61], sizes = [32, 1], strides = [1, 1]} : vector<32x64xf32> to vector<32x1xf32>
    %c0_13 = arith.constant 0 : index
    %c67 = arith.constant 67 : index
    %19 = vector.load %arg23[%c0_13, %c67] : memref<32x68xf32, #tpu.memory_space<vmem>>, vector<32x1xf32>
    tpu.vector_store %arg23[%c0_13, %c67], %18 {strides = array<i32>} : memref<32x68xf32, #tpu.memory_space<vmem>>, vector<32x1xf32>,
    %c0_14 = arith.constant 0 : index
    %c0_15 = arith.constant 0 : index
    %20 = vector.load %arg23[%c0_14, %c0_15] : memref<32x68xf32, #tpu.memory_space<vmem>>, vector<32x64xf32>
    %c0_16 = arith.constant 0 : index
    %c0_17 = arith.constant 0 : index
    %21 = vector.load %arg24[%c0_16, %c0_17] : memref<160x64xf32, #tpu.memory_space<vmem>>, vector<32x64xf32>
    tpu.vector_store %arg24[%c0_16, %c0_17], %20 {strides = array<i32>} : memref<160x64xf32, #tpu.memory_space<vmem>>, vector<32x64xf32>,
    %c0_18 = arith.constant 0 : index
    %c1_19 = arith.constant 1 : index
    %22 = vector.load %arg23[%c0_18, %c1_19] : memref<32x68xf32, #tpu.memory_space<vmem>>, vector<32x64xf32>
    %c32 = arith.constant 32 : index
    %c0_20 = arith.constant 0 : index
    %23 = vector.load %arg24[%c32, %c0_20] : memref<160x64xf32, #tpu.memory_space<vmem>>, vector<32x64xf32>
    tpu.vector_store %arg24[%c32, %c0_20], %22 {strides = array<i32>} : memref<160x64xf32, #tpu.memory_space<vmem>>, vector<32x64xf32>,
    %c0_21 = arith.constant 0 : index
    %c2_22 = arith.constant 2 : index
    %24 = vector.load %arg23[%c0_21, %c2_22] : memref<32x68xf32, #tpu.memory_space<vmem>>, vector<32x64xf32>
    %c64 = arith.constant 64 : index
    %c0_23 = arith.constant 0 : index
    %25 = vector.load %arg24[%c64, %c0_23] : memref<160x64xf32, #tpu.memory_space<vmem>>, vector<32x64xf32>
    tpu.vector_store %arg24[%c64, %c0_23], %24 {strides = array<i32>} : memref<160x64xf32, #tpu.memory_space<vmem>>, vector<32x64xf32>,
    %c0_24 = arith.constant 0 : index
    %c3 = arith.constant 3 : index
    %26 = vector.load %arg23[%c0_24, %c3] : memref<32x68xf32, #tpu.memory_space<vmem>>, vector<32x64xf32>
    %c96 = arith.constant 96 : index
    %c0_25 = arith.constant 0 : index
    %27 = vector.load %arg24[%c96, %c0_25] : memref<160x64xf32, #tpu.memory_space<vmem>>, vector<32x64xf32>
    tpu.vector_store %arg24[%c96, %c0_25], %26 {strides = array<i32>} : memref<160x64xf32, #tpu.memory_space<vmem>>, vector<32x64xf32>,
    %c0_26 = arith.constant 0 : index
    %c4 = arith.constant 4 : index
    %28 = vector.load %arg23[%c0_26, %c4] : memref<32x68xf32, #tpu.memory_space<vmem>>, vector<32x64xf32>
    %c128 = arith.constant 128 : index
    %c0_27 = arith.constant 0 : index
    %29 = vector.load %arg24[%c128, %c0_27] : memref<160x64xf32, #tpu.memory_space<vmem>>, vector<32x64xf32>
    tpu.vector_store %arg24[%c128, %c0_27], %28 {strides = array<i32>} : memref<160x64xf32, #tpu.memory_space<vmem>>, vector<32x64xf32>,
    %c0_28 = arith.constant 0 : index
    %c0_29 = arith.constant 0 : index
    %30 = vector.load %arg24[%c0_28, %c0_29] : memref<160x64xf32, #tpu.memory_space<vmem>>, vector<160x64xf32>
    %c0_30 = arith.constant 0 : index
    %c0_31 = arith.constant 0 : index
    %31 = vector.load %arg4[%c0_30, %c0_31] : memref<32x160xf32, #tpu.memory_space<vmem>>, vector<32x160xf32>
    %cst_32 = arith.constant dense<0.000000e+00> : vector<32x64xf32>
    %32 = tpu.matmul %31, %30, %cst_32 {dimension_numbers = #tpu.dot_dimension_numbers<[1], [0], [0], [1], [0, 0, 1, 1], [], []>} : vector<32x160xf32>, vector<160x64xf32>, vector<32x64xf32> -> vector<32x64xf32>
    %c0_33 = arith.constant 0 : index
    %c0_34 = arith.constant 0 : index
    %33 = vector.load %arg5[%c0_33, %c0_34] : memref<32x1xf32, #tpu.memory_space<vmem>>, vector<32x1xf32>
    %34 = vector.broadcast %33 : vector<32x1xf32> to vector<32x64xf32>
    %35 = arith.addf %32, %34 : vector<32x64xf32>
    %cst_35 = arith.constant 0.000000e+00 : f32
    %36 = vector.broadcast %cst_35 : f32 to vector<32x64xf32>
    %37 = arith.cmpf oge, %35, %36 : vector<32x64xf32>
    %cst_36 = arith.constant 0.00999999977 : f32
    %38 = vector.broadcast %cst_36 : f32 to vector<32x64xf32>
    %39 = arith.mulf %38, %35 : vector<32x64xf32>
    %40 = arith.select %37, %35, %39 : vector<32x64xi1>, vector<32x64xf32>
    %c0_37 = arith.constant 0 : index
    %c2_38 = arith.constant 2 : index
    %41 = vector.load %arg23[%c0_37, %c2_38] : memref<32x68xf32, #tpu.memory_space<vmem>>, vector<32x64xf32>
    tpu.vector_store %arg23[%c0_37, %c2_38], %40 {strides = array<i32>} : memref<32x68xf32, #tpu.memory_space<vmem>>, vector<32x64xf32>,
    %42 = vector.extract_strided_slice %40 {offsets = [0, 2], sizes = [32, 1], strides = [1, 1]} : vector<32x64xf32> to vector<32x1xf32>
    %c0_39 = arith.constant 0 : index
    %c0_40 = arith.constant 0 : index
    %43 = vector.load %arg23[%c0_39, %c0_40] : memref<32x68xf32, #tpu.memory_space<vmem>>, vector<32x1xf32>
    tpu.vector_store %arg23[%c0_39, %c0_40], %42 {strides = array<i32>} : memref<32x68xf32, #tpu.memory_space<vmem>>, vector<32x1xf32>,
    %44 = vector.extract_strided_slice %40 {offsets = [0, 62], sizes = [32, 1], strides = [1, 1]} : vector<32x64xf32> to vector<32x1xf32>
    %c0_41 = arith.constant 0 : index
    %c66_42 = arith.constant 66 : index
    %45 = vector.load %arg23[%c0_41, %c66_42] : memref<32x68xf32, #tpu.memory_space<vmem>>, vector<32x1xf32>
    tpu.vector_store %arg23[%c0_41, %c66_42], %44 {strides = array<i32>} : memref<32x68xf32, #tpu.memory_space<vmem>>, vector<32x1xf32>,
    %46 = vector.extract_strided_slice %40 {offsets = [0, 1], sizes = [32, 1], strides = [1, 1]} : vector<32x64xf32> to vector<32x1xf32>
    %c0_43 = arith.constant 0 : index
    %c1_44 = arith.constant 1 : index
    %47 = vector.load %arg23[%c0_43, %c1_44] : memref<32x68xf32, #tpu.memory_space<vmem>>, vector<32x1xf32>
    tpu.vector_store %arg23[%c0_43, %c1_44], %46 {strides = array<i32>} : memref<32x68xf32, #tpu.memory_space<vmem>>, vector<32x1xf32>,
    %48 = vector.extract_strided_slice %40 {offsets = [0, 61], sizes = [32, 1], strides = [1, 1]} : vector<32x64xf32> to vector<32x1xf32>
    %c0_45 = arith.constant 0 : index
    %c67_46 = arith.constant 67 : index
    %49 = vector.load %arg23[%c0_45, %c67_46] : memref<32x68xf32, #tpu.memory_space<vmem>>, vector<32x1xf32>
    tpu.vector_store %arg23[%c0_45, %c67_46], %48 {strides = array<i32>} : memref<32x68xf32, #tpu.memory_space<vmem>>, vector<32x1xf32>,
    %c0_47 = arith.constant 0 : index
    %c0_48 = arith.constant 0 : index
    %50 = vector.load %arg23[%c0_47, %c0_48] : memref<32x68xf32, #tpu.memory_space<vmem>>, vector<32x64xf32>
    %c0_49 = arith.constant 0 : index
    %c0_50 = arith.constant 0 : index
    %51 = vector.load %arg24[%c0_49, %c0_50] : memref<160x64xf32, #tpu.memory_space<vmem>>, vector<32x64xf32>
    tpu.vector_store %arg24[%c0_49, %c0_50], %50 {strides = array<i32>} : memref<160x64xf32, #tpu.memory_space<vmem>>, vector<32x64xf32>,
    %c0_51 = arith.constant 0 : index
    %c1_52 = arith.constant 1 : index
    %52 = vector.load %arg23[%c0_51, %c1_52] : memref<32x68xf32, #tpu.memory_space<vmem>>, vector<32x64xf32>
    %c32_53 = arith.constant 32 : index
    %c0_54 = arith.constant 0 : index
    %53 = vector.load %arg24[%c32_53, %c0_54] : memref<160x64xf32, #tpu.memory_space<vmem>>, vector<32x64xf32>
    tpu.vector_store %arg24[%c32_53, %c0_54], %52 {strides = array<i32>} : memref<160x64xf32, #tpu.memory_space<vmem>>, vector<32x64xf32>,
    %c0_55 = arith.constant 0 : index
    %c2_56 = arith.constant 2 : index
    %54 = vector.load %arg23[%c0_55, %c2_56] : memref<32x68xf32, #tpu.memory_space<vmem>>, vector<32x64xf32>
    %c64_57 = arith.constant 64 : index
    %c0_58 = arith.constant 0 : index
    %55 = vector.load %arg24[%c64_57, %c0_58] : memref<160x64xf32, #tpu.memory_space<vmem>>, vector<32x64xf32>
    tpu.vector_store %arg24[%c64_57, %c0_58], %54 {strides = array<i32>} : memref<160x64xf32, #tpu.memory_space<vmem>>, vector<32x64xf32>,
    %c0_59 = arith.constant 0 : index
    %c3_60 = arith.constant 3 : index
    %56 = vector.load %arg23[%c0_59, %c3_60] : memref<32x68xf32, #tpu.memory_space<vmem>>, vector<32x64xf32>
    %c96_61 = arith.constant 96 : index
    %c0_62 = arith.constant 0 : index
    %57 = vector.load %arg24[%c96_61, %c0_62] : memref<160x64xf32, #tpu.memory_space<vmem>>, vector<32x64xf32>
    tpu.vector_store %arg24[%c96_61, %c0_62], %56 {strides = array<i32>} : memref<160x64xf32, #tpu.memory_space<vmem>>, vector<32x64xf32>,
    %c0_63 = arith.constant 0 : index
    %c4_64 = arith.constant 4 : index
    %58 = vector.load %arg23[%c0_63, %c4_64] : memref<32x68xf32, #tpu.memory_space<vmem>>, vector<32x64xf32>
    %c128_65 = arith.constant 128 : index
    %c0_66 = arith.constant 0 : index
    %59 = vector.load %arg24[%c128_65, %c0_66] : memref<160x64xf32, #tpu.memory_space<vmem>>, vector<32x64xf32>
    tpu.vector_store %arg24[%c128_65, %c0_66], %58 {strides = array<i32>} : memref<160x64xf32, #tpu.memory_space<vmem>>, vector<32x64xf32>,
    %c0_67 = arith.constant 0 : index
    %c0_68 = arith.constant 0 : index
    %60 = vector.load %arg24[%c0_67, %c0_68] : memref<160x64xf32, #tpu.memory_space<vmem>>, vector<160x64xf32>
    %c0_69 = arith.constant 0 : index
    %c0_70 = arith.constant 0 : index
    %61 = vector.load %arg6[%c0_69, %c0_70] : memref<32x160xf32, #tpu.memory_space<vmem>>, vector<32x160xf32>
    %cst_71 = arith.constant dense<0.000000e+00> : vector<32x64xf32>
    %62 = tpu.matmul %61, %60, %cst_71 {dimension_numbers = #tpu.dot_dimension_numbers<[1], [0], [0], [1], [0, 0, 1, 1], [], []>} : vector<32x160xf32>, vector<160x64xf32>, vector<32x64xf32> -> vector<32x64xf32>
    %c0_72 = arith.constant 0 : index
    %c0_73 = arith.constant 0 : index
    %63 = vector.load %arg7[%c0_72, %c0_73] : memref<32x1xf32, #tpu.memory_space<vmem>>, vector<32x1xf32>
    %64 = vector.broadcast %63 : vector<32x1xf32> to vector<32x64xf32>
    %65 = arith.addf %62, %64 : vector<32x64xf32>
    %cst_74 = arith.constant 0.000000e+00 : f32
    %66 = vector.broadcast %cst_74 : f32 to vector<32x64xf32>
    %67 = arith.cmpf oge, %65, %66 : vector<32x64xf32>
    %cst_75 = arith.constant 0.00999999977 : f32
    %68 = vector.broadcast %cst_75 : f32 to vector<32x64xf32>
    %69 = arith.mulf %68, %65 : vector<32x64xf32>
    %70 = arith.select %67, %65, %69 : vector<32x64xi1>, vector<32x64xf32>
    %cst_76 = arith.constant dense<0.000000e+00> : vector<32xf32>
    %71 = vector.multi_reduction <add>, %70, %cst_76 [1] : vector<32x64xf32> to vector<32xf32>
    %72 = vector.shape_cast %71 : vector<32xf32> to vector<32x1xf32>
    %cst_77 = arith.constant 6.400000e+01 : f32
    %73 = vector.broadcast %cst_77 : f32 to vector<32x1xf32>
    %74 = arith.divf %72, %73 : vector<32x1xf32>
    %75 = arith.mulf %70, %70 : vector<32x64xf32>
    %cst_78 = arith.constant dense<0.000000e+00> : vector<32xf32>
    %76 = vector.multi_reduction <add>, %75, %cst_78 [1] : vector<32x64xf32> to vector<32xf32>
    %77 = vector.shape_cast %76 : vector<32xf32> to vector<32x1xf32>
    %cst_79 = arith.constant 6.400000e+01 : f32
    %78 = vector.broadcast %cst_79 : f32 to vector<32x1xf32>
    %79 = arith.divf %77, %78 : vector<32x1xf32>
    %80 = arith.mulf %74, %74 : vector<32x1xf32>
    %81 = arith.subf %79, %80 : vector<32x1xf32>
    %82 = vector.broadcast %74 : vector<32x1xf32> to vector<32x64xf32>
    %83 = arith.subf %70, %82 : vector<32x64xf32>
    %cst_80 = arith.constant 9.99999974E-6 : f32
    %84 = vector.broadcast %cst_80 : f32 to vector<32x1xf32>
    %85 = arith.addf %81, %84 : vector<32x1xf32>
    %86 = math.rsqrt %85 : vector<32x1xf32>
    %87 = vector.broadcast %86 : vector<32x1xf32> to vector<32x64xf32>
    %88 = arith.mulf %83, %87 : vector<32x64xf32>
    %c0_81 = arith.constant 0 : index
    %c2_82 = arith.constant 2 : index
    %89 = vector.load %arg23[%c0_81, %c2_82] : memref<32x68xf32, #tpu.memory_space<vmem>>, vector<32x64xf32>
    tpu.vector_store %arg23[%c0_81, %c2_82], %88 {strides = array<i32>} : memref<32x68xf32, #tpu.memory_space<vmem>>, vector<32x64xf32>,
    %90 = vector.extract_strided_slice %88 {offsets = [0, 2], sizes = [32, 1], strides = [1, 1]} : vector<32x64xf32> to vector<32x1xf32>
    %c0_83 = arith.constant 0 : index
    %c0_84 = arith.constant 0 : index
    %91 = vector.load %arg23[%c0_83, %c0_84] : memref<32x68xf32, #tpu.memory_space<vmem>>, vector<32x1xf32>
    tpu.vector_store %arg23[%c0_83, %c0_84], %90 {strides = array<i32>} : memref<32x68xf32, #tpu.memory_space<vmem>>, vector<32x1xf32>,
    %92 = vector.extract_strided_slice %88 {offsets = [0, 62], sizes = [32, 1], strides = [1, 1]} : vector<32x64xf32> to vector<32x1xf32>
    %c0_85 = arith.constant 0 : index
    %c66_86 = arith.constant 66 : index
    %93 = vector.load %arg23[%c0_85, %c66_86] : memref<32x68xf32, #tpu.memory_space<vmem>>, vector<32x1xf32>
    tpu.vector_store %arg23[%c0_85, %c66_86], %92 {strides = array<i32>} : memref<32x68xf32, #tpu.memory_space<vmem>>, vector<32x1xf32>,
    %94 = vector.extract_strided_slice %88 {offsets = [0, 1], sizes = [32, 1], strides = [1, 1]} : vector<32x64xf32> to vector<32x1xf32>
    %c0_87 = arith.constant 0 : index
    %c1_88 = arith.constant 1 : index
    %95 = vector.load %arg23[%c0_87, %c1_88] : memref<32x68xf32, #tpu.memory_space<vmem>>, vector<32x1xf32>
    tpu.vector_store %arg23[%c0_87, %c1_88], %94 {strides = array<i32>} : memref<32x68xf32, #tpu.memory_space<vmem>>, vector<32x1xf32>,
    %96 = vector.extract_strided_slice %88 {offsets = [0, 61], sizes = [32, 1], strides = [1, 1]} : vector<32x64xf32> to vector<32x1xf32>
    %c0_89 = arith.constant 0 : index
    %c67_90 = arith.constant 67 : index
    %97 = vector.load %arg23[%c0_89, %c67_90] : memref<32x68xf32, #tpu.memory_space<vmem>>, vector<32x1xf32>
    tpu.vector_store %arg23[%c0_89, %c67_90], %96 {strides = array<i32>} : memref<32x68xf32, #tpu.memory_space<vmem>>, vector<32x1xf32>,
    %c0_91 = arith.constant 0 : index
    %c0_92 = arith.constant 0 : index
    %98 = vector.load %arg23[%c0_91, %c0_92] : memref<32x68xf32, #tpu.memory_space<vmem>>, vector<32x64xf32>
    %c0_93 = arith.constant 0 : index
    %c0_94 = arith.constant 0 : index
    %99 = vector.load %arg24[%c0_93, %c0_94] : memref<160x64xf32, #tpu.memory_space<vmem>>, vector<32x64xf32>
    tpu.vector_store %arg24[%c0_93, %c0_94], %98 {strides = array<i32>} : memref<160x64xf32, #tpu.memory_space<vmem>>, vector<32x64xf32>,
    %c0_95 = arith.constant 0 : index
    %c1_96 = arith.constant 1 : index
    %100 = vector.load %arg23[%c0_95, %c1_96] : memref<32x68xf32, #tpu.memory_space<vmem>>, vector<32x64xf32>
    %c32_97 = arith.constant 32 : index
    %c0_98 = arith.constant 0 : index
    %101 = vector.load %arg24[%c32_97, %c0_98] : memref<160x64xf32, #tpu.memory_space<vmem>>, vector<32x64xf32>
    tpu.vector_store %arg24[%c32_97, %c0_98], %100 {strides = array<i32>} : memref<160x64xf32, #tpu.memory_space<vmem>>, vector<32x64xf32>,
    %c0_99 = arith.constant 0 : index
    %c2_100 = arith.constant 2 : index
    %102 = vector.load %arg23[%c0_99, %c2_100] : memref<32x68xf32, #tpu.memory_space<vmem>>, vector<32x64xf32>
    %c64_101 = arith.constant 64 : index
    %c0_102 = arith.constant 0 : index
    %103 = vector.load %arg24[%c64_101, %c0_102] : memref<160x64xf32, #tpu.memory_space<vmem>>, vector<32x64xf32>
    tpu.vector_store %arg24[%c64_101, %c0_102], %102 {strides = array<i32>} : memref<160x64xf32, #tpu.memory_space<vmem>>, vector<32x64xf32>,
    %c0_103 = arith.constant 0 : index
    %c3_104 = arith.constant 3 : index
    %104 = vector.load %arg23[%c0_103, %c3_104] : memref<32x68xf32, #tpu.memory_space<vmem>>, vector<32x64xf32>
    %c96_105 = arith.constant 96 : index
    %c0_106 = arith.constant 0 : index
    %105 = vector.load %arg24[%c96_105, %c0_106] : memref<160x64xf32, #tpu.memory_space<vmem>>, vector<32x64xf32>
    tpu.vector_store %arg24[%c96_105, %c0_106], %104 {strides = array<i32>} : memref<160x64xf32, #tpu.memory_space<vmem>>, vector<32x64xf32>,
    %c0_107 = arith.constant 0 : index
    %c4_108 = arith.constant 4 : index
    %106 = vector.load %arg23[%c0_107, %c4_108] : memref<32x68xf32, #tpu.memory_space<vmem>>, vector<32x64xf32>
    %c128_109 = arith.constant 128 : index
    %c0_110 = arith.constant 0 : index
    %107 = vector.load %arg24[%c128_109, %c0_110] : memref<160x64xf32, #tpu.memory_space<vmem>>, vector<32x64xf32>
    tpu.vector_store %arg24[%c128_109, %c0_110], %106 {strides = array<i32>} : memref<160x64xf32, #tpu.memory_space<vmem>>, vector<32x64xf32>,
    %c0_111 = arith.constant 0 : index
    %c0_112 = arith.constant 0 : index
    %108 = vector.load %arg24[%c0_111, %c0_112] : memref<160x64xf32, #tpu.memory_space<vmem>>, vector<160x64xf32>
    %c0_113 = arith.constant 0 : index
    %c0_114 = arith.constant 0 : index
    %109 = vector.load %arg8[%c0_113, %c0_114] : memref<32x160xf32, #tpu.memory_space<vmem>>, vector<32x160xf32>
    %cst_115 = arith.constant dense<0.000000e+00> : vector<32x64xf32>
    %110 = tpu.matmul %109, %108, %cst_115 {dimension_numbers = #tpu.dot_dimension_numbers<[1], [0], [0], [1], [0, 0, 1, 1], [], []>} : vector<32x160xf32>, vector<160x64xf32>, vector<32x64xf32> -> vector<32x64xf32>
    %c0_116 = arith.constant 0 : index
    %c0_117 = arith.constant 0 : index
    %111 = vector.load %arg9[%c0_116, %c0_117] : memref<32x1xf32, #tpu.memory_space<vmem>>, vector<32x1xf32>
    %112 = vector.broadcast %111 : vector<32x1xf32> to vector<32x64xf32>
    %113 = arith.addf %110, %112 : vector<32x64xf32>
    %cst_118 = arith.constant 0.000000e+00 : f32
    %114 = vector.broadcast %cst_118 : f32 to vector<32x64xf32>
    %115 = arith.cmpf oge, %113, %114 : vector<32x64xf32>
    %cst_119 = arith.constant 0.00999999977 : f32
    %116 = vector.broadcast %cst_119 : f32 to vector<32x64xf32>
    %117 = arith.mulf %116, %113 : vector<32x64xf32>
    %118 = arith.select %115, %113, %117 : vector<32x64xi1>, vector<32x64xf32>
    %c0_120 = arith.constant 0 : index
    %c2_121 = arith.constant 2 : index
    %119 = vector.load %arg23[%c0_120, %c2_121] : memref<32x68xf32, #tpu.memory_space<vmem>>, vector<32x64xf32>
    tpu.vector_store %arg23[%c0_120, %c2_121], %118 {strides = array<i32>} : memref<32x68xf32, #tpu.memory_space<vmem>>, vector<32x64xf32>,
    %120 = vector.extract_strided_slice %118 {offsets = [0, 2], sizes = [32, 1], strides = [1, 1]} : vector<32x64xf32> to vector<32x1xf32>
    %c0_122 = arith.constant 0 : index
    %c0_123 = arith.constant 0 : index
    %121 = vector.load %arg23[%c0_122, %c0_123] : memref<32x68xf32, #tpu.memory_space<vmem>>, vector<32x1xf32>
    tpu.vector_store %arg23[%c0_122, %c0_123], %120 {strides = array<i32>} : memref<32x68xf32, #tpu.memory_space<vmem>>, vector<32x1xf32>,
    %122 = vector.extract_strided_slice %118 {offsets = [0, 62], sizes = [32, 1], strides = [1, 1]} : vector<32x64xf32> to vector<32x1xf32>
    %c0_124 = arith.constant 0 : index
    %c66_125 = arith.constant 66 : index
    %123 = vector.load %arg23[%c0_124, %c66_125] : memref<32x68xf32, #tpu.memory_space<vmem>>, vector<32x1xf32>
    tpu.vector_store %arg23[%c0_124, %c66_125], %122 {strides = array<i32>} : memref<32x68xf32, #tpu.memory_space<vmem>>, vector<32x1xf32>,
    %124 = vector.extract_strided_slice %118 {offsets = [0, 1], sizes = [32, 1], strides = [1, 1]} : vector<32x64xf32> to vector<32x1xf32>
    %c0_126 = arith.constant 0 : index
    %c1_127 = arith.constant 1 : index
    %125 = vector.load %arg23[%c0_126, %c1_127] : memref<32x68xf32, #tpu.memory_space<vmem>>, vector<32x1xf32>
    tpu.vector_store %arg23[%c0_126, %c1_127], %124 {strides = array<i32>} : memref<32x68xf32, #tpu.memory_space<vmem>>, vector<32x1xf32>,
    %126 = vector.extract_strided_slice %118 {offsets = [0, 61], sizes = [32, 1], strides = [1, 1]} : vector<32x64xf32> to vector<32x1xf32>
    %c0_128 = arith.constant 0 : index
    %c67_129 = arith.constant 67 : index
    %127 = vector.load %arg23[%c0_128, %c67_129] : memref<32x68xf32, #tpu.memory_space<vmem>>, vector<32x1xf32>
    tpu.vector_store %arg23[%c0_128, %c67_129], %126 {strides = array<i32>} : memref<32x68xf32, #tpu.memory_space<vmem>>, vector<32x1xf32>,
    %c0_130 = arith.constant 0 : index
    %c0_131 = arith.constant 0 : index
    %128 = vector.load %arg23[%c0_130, %c0_131] : memref<32x68xf32, #tpu.memory_space<vmem>>, vector<32x64xf32>
    %c0_132 = arith.constant 0 : index
    %c0_133 = arith.constant 0 : index
    %129 = vector.load %arg24[%c0_132, %c0_133] : memref<160x64xf32, #tpu.memory_space<vmem>>, vector<32x64xf32>
    tpu.vector_store %arg24[%c0_132, %c0_133], %128 {strides = array<i32>} : memref<160x64xf32, #tpu.memory_space<vmem>>, vector<32x64xf32>,
    %c0_134 = arith.constant 0 : index
    %c1_135 = arith.constant 1 : index
    %130 = vector.load %arg23[%c0_134, %c1_135] : memref<32x68xf32, #tpu.memory_space<vmem>>, vector<32x64xf32>
    %c32_136 = arith.constant 32 : index
    %c0_137 = arith.constant 0 : index
    %131 = vector.load %arg24[%c32_136, %c0_137] : memref<160x64xf32, #tpu.memory_space<vmem>>, vector<32x64xf32>
    tpu.vector_store %arg24[%c32_136, %c0_137], %130 {strides = array<i32>} : memref<160x64xf32, #tpu.memory_space<vmem>>, vector<32x64xf32>,
    %c0_138 = arith.constant 0 : index
    %c2_139 = arith.constant 2 : index
    %132 = vector.load %arg23[%c0_138, %c2_139] : memref<32x68xf32, #tpu.memory_space<vmem>>, vector<32x64xf32>
    %c64_140 = arith.constant 64 : index
    %c0_141 = arith.constant 0 : index
    %133 = vector.load %arg24[%c64_140, %c0_141] : memref<160x64xf32, #tpu.memory_space<vmem>>, vector<32x64xf32>
    tpu.vector_store %arg24[%c64_140, %c0_141], %132 {strides = array<i32>} : memref<160x64xf32, #tpu.memory_space<vmem>>, vector<32x64xf32>,
    %c0_142 = arith.constant 0 : index
    %c3_143 = arith.constant 3 : index
    %134 = vector.load %arg23[%c0_142, %c3_143] : memref<32x68xf32, #tpu.memory_space<vmem>>, vector<32x64xf32>
    %c96_144 = arith.constant 96 : index
    %c0_145 = arith.constant 0 : index
    %135 = vector.load %arg24[%c96_144, %c0_145] : memref<160x64xf32, #tpu.memory_space<vmem>>, vector<32x64xf32>
    tpu.vector_store %arg24[%c96_144, %c0_145], %134 {strides = array<i32>} : memref<160x64xf32, #tpu.memory_space<vmem>>, vector<32x64xf32>,
    %c0_146 = arith.constant 0 : index
    %c4_147 = arith.constant 4 : index
    %136 = vector.load %arg23[%c0_146, %c4_147] : memref<32x68xf32, #tpu.memory_space<vmem>>, vector<32x64xf32>
    %c128_148 = arith.constant 128 : index
    %c0_149 = arith.constant 0 : index
    %137 = vector.load %arg24[%c128_148, %c0_149] : memref<160x64xf32, #tpu.memory_space<vmem>>, vector<32x64xf32>
    tpu.vector_store %arg24[%c128_148, %c0_149], %136 {strides = array<i32>} : memref<160x64xf32, #tpu.memory_space<vmem>>, vector<32x64xf32>,
    %c0_150 = arith.constant 0 : index
    %c0_151 = arith.constant 0 : index
    %138 = vector.load %arg24[%c0_150, %c0_151] : memref<160x64xf32, #tpu.memory_space<vmem>>, vector<160x64xf32>
    %c0_152 = arith.constant 0 : index
    %c0_153 = arith.constant 0 : index
    %139 = vector.load %arg10[%c0_152, %c0_153] : memref<32x160xf32, #tpu.memory_space<vmem>>, vector<32x160xf32>
    %cst_154 = arith.constant dense<0.000000e+00> : vector<32x64xf32>
    %140 = tpu.matmul %139, %138, %cst_154 {dimension_numbers = #tpu.dot_dimension_numbers<[1], [0], [0], [1], [0, 0, 1, 1], [], []>} : vector<32x160xf32>, vector<160x64xf32>, vector<32x64xf32> -> vector<32x64xf32>
    %c0_155 = arith.constant 0 : index
    %c0_156 = arith.constant 0 : index
    %141 = vector.load %arg11[%c0_155, %c0_156] : memref<32x1xf32, #tpu.memory_space<vmem>>, vector<32x1xf32>
    %142 = vector.broadcast %141 : vector<32x1xf32> to vector<32x64xf32>
    %143 = arith.addf %140, %142 : vector<32x64xf32>
    %cst_157 = arith.constant 0.000000e+00 : f32
    %144 = vector.broadcast %cst_157 : f32 to vector<32x64xf32>
    %145 = arith.cmpf oge, %143, %144 : vector<32x64xf32>
    %cst_158 = arith.constant 0.00999999977 : f32
    %146 = vector.broadcast %cst_158 : f32 to vector<32x64xf32>
    %147 = arith.mulf %146, %143 : vector<32x64xf32>
    %148 = arith.select %145, %143, %147 : vector<32x64xi1>, vector<32x64xf32>
    %cst_159 = arith.constant dense<0.000000e+00> : vector<32xf32>
    %149 = vector.multi_reduction <add>, %148, %cst_159 [1] : vector<32x64xf32> to vector<32xf32>
    %150 = vector.shape_cast %149 : vector<32xf32> to vector<32x1xf32>
    %cst_160 = arith.constant 6.400000e+01 : f32
    %151 = vector.broadcast %cst_160 : f32 to vector<32x1xf32>
    %152 = arith.divf %150, %151 : vector<32x1xf32>
    %153 = arith.mulf %148, %148 : vector<32x64xf32>
    %cst_161 = arith.constant dense<0.000000e+00> : vector<32xf32>
    %154 = vector.multi_reduction <add>, %153, %cst_161 [1] : vector<32x64xf32> to vector<32xf32>
    %155 = vector.shape_cast %154 : vector<32xf32> to vector<32x1xf32>
    %cst_162 = arith.constant 6.400000e+01 : f32
    %156 = vector.broadcast %cst_162 : f32 to vector<32x1xf32>
    %157 = arith.divf %155, %156 : vector<32x1xf32>
    %158 = arith.mulf %152, %152 : vector<32x1xf32>
    %159 = arith.subf %157, %158 : vector<32x1xf32>
    %160 = vector.broadcast %152 : vector<32x1xf32> to vector<32x64xf32>
    %161 = arith.subf %148, %160 : vector<32x64xf32>
    %cst_163 = arith.constant 9.99999974E-6 : f32
    %162 = vector.broadcast %cst_163 : f32 to vector<32x1xf32>
    %163 = arith.addf %159, %162 : vector<32x1xf32>
    %164 = math.rsqrt %163 : vector<32x1xf32>
    %165 = vector.broadcast %164 : vector<32x1xf32> to vector<32x64xf32>
    %166 = arith.mulf %161, %165 : vector<32x64xf32>
    %167 = arith.addf %166, %88 : vector<32x64xf32>
    %c0_164 = arith.constant 0 : index
    %c2_165 = arith.constant 2 : index
    %168 = vector.load %arg23[%c0_164, %c2_165] : memref<32x68xf32, #tpu.memory_space<vmem>>, vector<32x64xf32>
    tpu.vector_store %arg23[%c0_164, %c2_165], %167 {strides = array<i32>} : memref<32x68xf32, #tpu.memory_space<vmem>>, vector<32x64xf32>,
    %169 = vector.extract_strided_slice %167 {offsets = [0, 2], sizes = [32, 1], strides = [1, 1]} : vector<32x64xf32> to vector<32x1xf32>
    %c0_166 = arith.constant 0 : index
    %c0_167 = arith.constant 0 : index
    %170 = vector.load %arg23[%c0_166, %c0_167] : memref<32x68xf32, #tpu.memory_space<vmem>>, vector<32x1xf32>
    tpu.vector_store %arg23[%c0_166, %c0_167], %169 {strides = array<i32>} : memref<32x68xf32, #tpu.memory_space<vmem>>, vector<32x1xf32>,
    %171 = vector.extract_strided_slice %167 {offsets = [0, 62], sizes = [32, 1], strides = [1, 1]} : vector<32x64xf32> to vector<32x1xf32>
    %c0_168 = arith.constant 0 : index
    %c66_169 = arith.constant 66 : index
    %172 = vector.load %arg23[%c0_168, %c66_169] : memref<32x68xf32, #tpu.memory_space<vmem>>, vector<32x1xf32>
    tpu.vector_store %arg23[%c0_168, %c66_169], %171 {strides = array<i32>} : memref<32x68xf32, #tpu.memory_space<vmem>>, vector<32x1xf32>,
    %173 = vector.extract_strided_slice %167 {offsets = [0, 1], sizes = [32, 1], strides = [1, 1]} : vector<32x64xf32> to vector<32x1xf32>
    %c0_170 = arith.constant 0 : index
    %c1_171 = arith.constant 1 : index
    %174 = vector.load %arg23[%c0_170, %c1_171] : memref<32x68xf32, #tpu.memory_space<vmem>>, vector<32x1xf32>
    tpu.vector_store %arg23[%c0_170, %c1_171], %173 {strides = array<i32>} : memref<32x68xf32, #tpu.memory_space<vmem>>, vector<32x1xf32>,
    %175 = vector.extract_strided_slice %167 {offsets = [0, 61], sizes = [32, 1], strides = [1, 1]} : vector<32x64xf32> to vector<32x1xf32>
    %c0_172 = arith.constant 0 : index
    %c67_173 = arith.constant 67 : index
    %176 = vector.load %arg23[%c0_172, %c67_173] : memref<32x68xf32, #tpu.memory_space<vmem>>, vector<32x1xf32>
    tpu.vector_store %arg23[%c0_172, %c67_173], %175 {strides = array<i32>} : memref<32x68xf32, #tpu.memory_space<vmem>>, vector<32x1xf32>,
    %c0_174 = arith.constant 0 : index
    %c0_175 = arith.constant 0 : index
    %177 = vector.load %arg23[%c0_174, %c0_175] : memref<32x68xf32, #tpu.memory_space<vmem>>, vector<32x64xf32>
    %c0_176 = arith.constant 0 : index
    %c0_177 = arith.constant 0 : index
    %178 = vector.load %arg24[%c0_176, %c0_177] : memref<160x64xf32, #tpu.memory_space<vmem>>, vector<32x64xf32>
    tpu.vector_store %arg24[%c0_176, %c0_177], %177 {strides = array<i32>} : memref<160x64xf32, #tpu.memory_space<vmem>>, vector<32x64xf32>,
    %c0_178 = arith.constant 0 : index
    %c1_179 = arith.constant 1 : index
    %179 = vector.load %arg23[%c0_178, %c1_179] : memref<32x68xf32, #tpu.memory_space<vmem>>, vector<32x64xf32>
    %c32_180 = arith.constant 32 : index
    %c0_181 = arith.constant 0 : index
    %180 = vector.load %arg24[%c32_180, %c0_181] : memref<160x64xf32, #tpu.memory_space<vmem>>, vector<32x64xf32>
    tpu.vector_store %arg24[%c32_180, %c0_181], %179 {strides = array<i32>} : memref<160x64xf32, #tpu.memory_space<vmem>>, vector<32x64xf32>,
    %c0_182 = arith.constant 0 : index
    %c2_183 = arith.constant 2 : index
    %181 = vector.load %arg23[%c0_182, %c2_183] : memref<32x68xf32, #tpu.memory_space<vmem>>, vector<32x64xf32>
    %c64_184 = arith.constant 64 : index
    %c0_185 = arith.constant 0 : index
    %182 = vector.load %arg24[%c64_184, %c0_185] : memref<160x64xf32, #tpu.memory_space<vmem>>, vector<32x64xf32>
    tpu.vector_store %arg24[%c64_184, %c0_185], %181 {strides = array<i32>} : memref<160x64xf32, #tpu.memory_space<vmem>>, vector<32x64xf32>,
    %c0_186 = arith.constant 0 : index
    %c3_187 = arith.constant 3 : index
    %183 = vector.load %arg23[%c0_186, %c3_187] : memref<32x68xf32, #tpu.memory_space<vmem>>, vector<32x64xf32>
    %c96_188 = arith.constant 96 : index
    %c0_189 = arith.constant 0 : index
    %184 = vector.load %arg24[%c96_188, %c0_189] : memref<160x64xf32, #tpu.memory_space<vmem>>, vector<32x64xf32>
    tpu.vector_store %arg24[%c96_188, %c0_189], %183 {strides = array<i32>} : memref<160x64xf32, #tpu.memory_space<vmem>>, vector<32x64xf32>,
    %c0_190 = arith.constant 0 : index
    %c4_191 = arith.constant 4 : index
    %185 = vector.load %arg23[%c0_190, %c4_191] : memref<32x68xf32, #tpu.memory_space<vmem>>, vector<32x64xf32>
    %c128_192 = arith.constant 128 : index
    %c0_193 = arith.constant 0 : index
    %186 = vector.load %arg24[%c128_192, %c0_193] : memref<160x64xf32, #tpu.memory_space<vmem>>, vector<32x64xf32>
    tpu.vector_store %arg24[%c128_192, %c0_193], %185 {strides = array<i32>} : memref<160x64xf32, #tpu.memory_space<vmem>>, vector<32x64xf32>,
    %c0_194 = arith.constant 0 : index
    %c0_195 = arith.constant 0 : index
    %187 = vector.load %arg24[%c0_194, %c0_195] : memref<160x64xf32, #tpu.memory_space<vmem>>, vector<160x64xf32>
    %c0_196 = arith.constant 0 : index
    %c0_197 = arith.constant 0 : index
    %188 = vector.load %arg12[%c0_196, %c0_197] : memref<32x160xf32, #tpu.memory_space<vmem>>, vector<32x160xf32>
    %cst_198 = arith.constant dense<0.000000e+00> : vector<32x64xf32>
    %189 = tpu.matmul %188, %187, %cst_198 {dimension_numbers = #tpu.dot_dimension_numbers<[1], [0], [0], [1], [0, 0, 1, 1], [], []>} : vector<32x160xf32>, vector<160x64xf32>, vector<32x64xf32> -> vector<32x64xf32>
    %c0_199 = arith.constant 0 : index
    %c0_200 = arith.constant 0 : index
    %190 = vector.load %arg13[%c0_199, %c0_200] : memref<32x1xf32, #tpu.memory_space<vmem>>, vector<32x1xf32>
    %191 = vector.broadcast %190 : vector<32x1xf32> to vector<32x64xf32>
    %192 = arith.addf %189, %191 : vector<32x64xf32>
    %cst_201 = arith.constant 0.000000e+00 : f32
    %193 = vector.broadcast %cst_201 : f32 to vector<32x64xf32>
    %194 = arith.cmpf oge, %192, %193 : vector<32x64xf32>
    %cst_202 = arith.constant 0.00999999977 : f32
    %195 = vector.broadcast %cst_202 : f32 to vector<32x64xf32>
    %196 = arith.mulf %195, %192 : vector<32x64xf32>
    %197 = arith.select %194, %192, %196 : vector<32x64xi1>, vector<32x64xf32>
    %c0_203 = arith.constant 0 : index
    %c2_204 = arith.constant 2 : index
    %198 = vector.load %arg23[%c0_203, %c2_204] : memref<32x68xf32, #tpu.memory_space<vmem>>, vector<32x64xf32>
    tpu.vector_store %arg23[%c0_203, %c2_204], %197 {strides = array<i32>} : memref<32x68xf32, #tpu.memory_space<vmem>>, vector<32x64xf32>,
    %199 = vector.extract_strided_slice %197 {offsets = [0, 2], sizes = [32, 1], strides = [1, 1]} : vector<32x64xf32> to vector<32x1xf32>
    %c0_205 = arith.constant 0 : index
    %c0_206 = arith.constant 0 : index
    %200 = vector.load %arg23[%c0_205, %c0_206] : memref<32x68xf32, #tpu.memory_space<vmem>>, vector<32x1xf32>
    tpu.vector_store %arg23[%c0_205, %c0_206], %199 {strides = array<i32>} : memref<32x68xf32, #tpu.memory_space<vmem>>, vector<32x1xf32>,
    %201 = vector.extract_strided_slice %197 {offsets = [0, 62], sizes = [32, 1], strides = [1, 1]} : vector<32x64xf32> to vector<32x1xf32>
    %c0_207 = arith.constant 0 : index
    %c66_208 = arith.constant 66 : index
    %202 = vector.load %arg23[%c0_207, %c66_208] : memref<32x68xf32, #tpu.memory_space<vmem>>, vector<32x1xf32>
    tpu.vector_store %arg23[%c0_207, %c66_208], %201 {strides = array<i32>} : memref<32x68xf32, #tpu.memory_space<vmem>>, vector<32x1xf32>,
    %203 = vector.extract_strided_slice %197 {offsets = [0, 1], sizes = [32, 1], strides = [1, 1]} : vector<32x64xf32> to vector<32x1xf32>
    %c0_209 = arith.constant 0 : index
    %c1_210 = arith.constant 1 : index
    %204 = vector.load %arg23[%c0_209, %c1_210] : memref<32x68xf32, #tpu.memory_space<vmem>>, vector<32x1xf32>
    tpu.vector_store %arg23[%c0_209, %c1_210], %203 {strides = array<i32>} : memref<32x68xf32, #tpu.memory_space<vmem>>, vector<32x1xf32>,
    %205 = vector.extract_strided_slice %197 {offsets = [0, 61], sizes = [32, 1], strides = [1, 1]} : vector<32x64xf32> to vector<32x1xf32>
    %c0_211 = arith.constant 0 : index
    %c67_212 = arith.constant 67 : index
    %206 = vector.load %arg23[%c0_211, %c67_212] : memref<32x68xf32, #tpu.memory_space<vmem>>, vector<32x1xf32>
    tpu.vector_store %arg23[%c0_211, %c67_212], %205 {strides = array<i32>} : memref<32x68xf32, #tpu.memory_space<vmem>>, vector<32x1xf32>,
    %c0_213 = arith.constant 0 : index
    %c0_214 = arith.constant 0 : index
    %207 = vector.load %arg23[%c0_213, %c0_214] : memref<32x68xf32, #tpu.memory_space<vmem>>, vector<32x64xf32>
    %c0_215 = arith.constant 0 : index
    %c0_216 = arith.constant 0 : index
    %208 = vector.load %arg24[%c0_215, %c0_216] : memref<160x64xf32, #tpu.memory_space<vmem>>, vector<32x64xf32>
    tpu.vector_store %arg24[%c0_215, %c0_216], %207 {strides = array<i32>} : memref<160x64xf32, #tpu.memory_space<vmem>>, vector<32x64xf32>,
    %c0_217 = arith.constant 0 : index
    %c1_218 = arith.constant 1 : index
    %209 = vector.load %arg23[%c0_217, %c1_218] : memref<32x68xf32, #tpu.memory_space<vmem>>, vector<32x64xf32>
    %c32_219 = arith.constant 32 : index
    %c0_220 = arith.constant 0 : index
    %210 = vector.load %arg24[%c32_219, %c0_220] : memref<160x64xf32, #tpu.memory_space<vmem>>, vector<32x64xf32>
    tpu.vector_store %arg24[%c32_219, %c0_220], %209 {strides = array<i32>} : memref<160x64xf32, #tpu.memory_space<vmem>>, vector<32x64xf32>,
    %c0_221 = arith.constant 0 : index
    %c2_222 = arith.constant 2 : index
    %211 = vector.load %arg23[%c0_221, %c2_222] : memref<32x68xf32, #tpu.memory_space<vmem>>, vector<32x64xf32>
    %c64_223 = arith.constant 64 : index
    %c0_224 = arith.constant 0 : index
    %212 = vector.load %arg24[%c64_223, %c0_224] : memref<160x64xf32, #tpu.memory_space<vmem>>, vector<32x64xf32>
    tpu.vector_store %arg24[%c64_223, %c0_224], %211 {strides = array<i32>} : memref<160x64xf32, #tpu.memory_space<vmem>>, vector<32x64xf32>,
    %c0_225 = arith.constant 0 : index
    %c3_226 = arith.constant 3 : index
    %213 = vector.load %arg23[%c0_225, %c3_226] : memref<32x68xf32, #tpu.memory_space<vmem>>, vector<32x64xf32>
    %c96_227 = arith.constant 96 : index
    %c0_228 = arith.constant 0 : index
    %214 = vector.load %arg24[%c96_227, %c0_228] : memref<160x64xf32, #tpu.memory_space<vmem>>, vector<32x64xf32>
    tpu.vector_store %arg24[%c96_227, %c0_228], %213 {strides = array<i32>} : memref<160x64xf32, #tpu.memory_space<vmem>>, vector<32x64xf32>,
    %c0_229 = arith.constant 0 : index
    %c4_230 = arith.constant 4 : index
    %215 = vector.load %arg23[%c0_229, %c4_230] : memref<32x68xf32, #tpu.memory_space<vmem>>, vector<32x64xf32>
    %c128_231 = arith.constant 128 : index
    %c0_232 = arith.constant 0 : index
    %216 = vector.load %arg24[%c128_231, %c0_232] : memref<160x64xf32, #tpu.memory_space<vmem>>, vector<32x64xf32>
    tpu.vector_store %arg24[%c128_231, %c0_232], %215 {strides = array<i32>} : memref<160x64xf32, #tpu.memory_space<vmem>>, vector<32x64xf32>,
    %c0_233 = arith.constant 0 : index
    %c0_234 = arith.constant 0 : index
    %217 = vector.load %arg24[%c0_233, %c0_234] : memref<160x64xf32, #tpu.memory_space<vmem>>, vector<160x64xf32>
    %c0_235 = arith.constant 0 : index
    %c0_236 = arith.constant 0 : index
    %218 = vector.load %arg14[%c0_235, %c0_236] : memref<32x160xf32, #tpu.memory_space<vmem>>, vector<32x160xf32>
    %cst_237 = arith.constant dense<0.000000e+00> : vector<32x64xf32>
    %219 = tpu.matmul %218, %217, %cst_237 {dimension_numbers = #tpu.dot_dimension_numbers<[1], [0], [0], [1], [0, 0, 1, 1], [], []>} : vector<32x160xf32>, vector<160x64xf32>, vector<32x64xf32> -> vector<32x64xf32>
    %c0_238 = arith.constant 0 : index
    %c0_239 = arith.constant 0 : index
    %220 = vector.load %arg15[%c0_238, %c0_239] : memref<32x1xf32, #tpu.memory_space<vmem>>, vector<32x1xf32>
    %221 = vector.broadcast %220 : vector<32x1xf32> to vector<32x64xf32>
    %222 = arith.addf %219, %221 : vector<32x64xf32>
    %cst_240 = arith.constant 0.000000e+00 : f32
    %223 = vector.broadcast %cst_240 : f32 to vector<32x64xf32>
    %224 = arith.cmpf oge, %222, %223 : vector<32x64xf32>
    %cst_241 = arith.constant 0.00999999977 : f32
    %225 = vector.broadcast %cst_241 : f32 to vector<32x64xf32>
    %226 = arith.mulf %225, %222 : vector<32x64xf32>
    %227 = arith.select %224, %222, %226 : vector<32x64xi1>, vector<32x64xf32>
    %cst_242 = arith.constant dense<0.000000e+00> : vector<32xf32>
    %228 = vector.multi_reduction <add>, %227, %cst_242 [1] : vector<32x64xf32> to vector<32xf32>
    %229 = vector.shape_cast %228 : vector<32xf32> to vector<32x1xf32>
    %cst_243 = arith.constant 6.400000e+01 : f32
    %230 = vector.broadcast %cst_243 : f32 to vector<32x1xf32>
    %231 = arith.divf %229, %230 : vector<32x1xf32>
    %232 = arith.mulf %227, %227 : vector<32x64xf32>
    %cst_244 = arith.constant dense<0.000000e+00> : vector<32xf32>
    %233 = vector.multi_reduction <add>, %232, %cst_244 [1] : vector<32x64xf32> to vector<32xf32>
    %234 = vector.shape_cast %233 : vector<32xf32> to vector<32x1xf32>
    %cst_245 = arith.constant 6.400000e+01 : f32
    %235 = vector.broadcast %cst_245 : f32 to vector<32x1xf32>
    %236 = arith.divf %234, %235 : vector<32x1xf32>
    %237 = arith.mulf %231, %231 : vector<32x1xf32>
    %238 = arith.subf %236, %237 : vector<32x1xf32>
    %239 = vector.broadcast %231 : vector<32x1xf32> to vector<32x64xf32>
    %240 = arith.subf %227, %239 : vector<32x64xf32>
    %cst_246 = arith.constant 9.99999974E-6 : f32
    %241 = vector.broadcast %cst_246 : f32 to vector<32x1xf32>
    %242 = arith.addf %238, %241 : vector<32x1xf32>
    %243 = math.rsqrt %242 : vector<32x1xf32>
    %244 = vector.broadcast %243 : vector<32x1xf32> to vector<32x64xf32>
    %245 = arith.mulf %240, %244 : vector<32x64xf32>
    %246 = arith.addf %245, %167 : vector<32x64xf32>
    %c0_247 = arith.constant 0 : index
    %c1_248 = arith.constant 1 : index
    %247 = vector.load %arg23[%c0_247, %c1_248] : memref<32x68xf32, #tpu.memory_space<vmem>>, vector<32x64xf32>
    tpu.vector_store %arg23[%c0_247, %c1_248], %246 {strides = array<i32>} : memref<32x68xf32, #tpu.memory_space<vmem>>, vector<32x64xf32>,
    %248 = vector.extract_strided_slice %246 {offsets = [0, 1], sizes = [32, 1], strides = [1, 1]} : vector<32x64xf32> to vector<32x1xf32>
    %c0_249 = arith.constant 0 : index
    %c0_250 = arith.constant 0 : index
    %249 = vector.load %arg23[%c0_249, %c0_250] : memref<32x68xf32, #tpu.memory_space<vmem>>, vector<32x1xf32>
    tpu.vector_store %arg23[%c0_249, %c0_250], %248 {strides = array<i32>} : memref<32x68xf32, #tpu.memory_space<vmem>>, vector<32x1xf32>,
    %250 = vector.extract_strided_slice %246 {offsets = [0, 62], sizes = [32, 1], strides = [1, 1]} : vector<32x64xf32> to vector<32x1xf32>
    %c0_251 = arith.constant 0 : index
    %c65 = arith.constant 65 : index
    %251 = vector.load %arg23[%c0_251, %c65] : memref<32x68xf32, #tpu.memory_space<vmem>>, vector<32x1xf32>
    tpu.vector_store %arg23[%c0_251, %c65], %250 {strides = array<i32>} : memref<32x68xf32, #tpu.memory_space<vmem>>, vector<32x1xf32>,
    %c0_252 = arith.constant 0 : index
    %c0_253 = arith.constant 0 : index
    %252 = vector.load %arg23[%c0_252, %c0_253] : memref<32x68xf32, #tpu.memory_space<vmem>>, vector<32x64xf32>
    %c0_254 = arith.constant 0 : index
    %c0_255 = arith.constant 0 : index
    %253 = vector.load %arg24[%c0_254, %c0_255] : memref<160x64xf32, #tpu.memory_space<vmem>>, vector<32x64xf32>
    tpu.vector_store %arg24[%c0_254, %c0_255], %252 {strides = array<i32>} : memref<160x64xf32, #tpu.memory_space<vmem>>, vector<32x64xf32>,
    %c0_256 = arith.constant 0 : index
    %c1_257 = arith.constant 1 : index
    %254 = vector.load %arg23[%c0_256, %c1_257] : memref<32x68xf32, #tpu.memory_space<vmem>>, vector<32x64xf32>
    %c32_258 = arith.constant 32 : index
    %c0_259 = arith.constant 0 : index
    %255 = vector.load %arg24[%c32_258, %c0_259] : memref<160x64xf32, #tpu.memory_space<vmem>>, vector<32x64xf32>
    tpu.vector_store %arg24[%c32_258, %c0_259], %254 {strides = array<i32>} : memref<160x64xf32, #tpu.memory_space<vmem>>, vector<32x64xf32>,
    %c0_260 = arith.constant 0 : index
    %c2_261 = arith.constant 2 : index
    %256 = vector.load %arg23[%c0_260, %c2_261] : memref<32x68xf32, #tpu.memory_space<vmem>>, vector<32x64xf32>
    %c64_262 = arith.constant 64 : index
    %c0_263 = arith.constant 0 : index
    %257 = vector.load %arg24[%c64_262, %c0_263] : memref<160x64xf32, #tpu.memory_space<vmem>>, vector<32x64xf32>
    tpu.vector_store %arg24[%c64_262, %c0_263], %256 {strides = array<i32>} : memref<160x64xf32, #tpu.memory_space<vmem>>, vector<32x64xf32>,
    %c0_264 = arith.constant 0 : index
    %c0_265 = arith.constant 0 : index
    %258 = vector.load %arg24[%c0_264, %c0_265] : memref<160x64xf32, #tpu.memory_space<vmem>>, vector<96x64xf32>
    %c0_266 = arith.constant 0 : index
    %c0_267 = arith.constant 0 : index
    %259 = vector.load %arg16[%c0_266, %c0_267] : memref<16x96xf32, #tpu.memory_space<vmem>>, vector<16x96xf32>
    %cst_268 = arith.constant dense<0.000000e+00> : vector<16x64xf32>
    %260 = tpu.matmul %259, %258, %cst_268 {dimension_numbers = #tpu.dot_dimension_numbers<[1], [0], [0], [1], [0, 0, 1, 1], [], []>} : vector<16x96xf32>, vector<96x64xf32>, vector<16x64xf32> -> vector<16x64xf32>
    %c0_269 = arith.constant 0 : index
    %c0_270 = arith.constant 0 : index
    %261 = vector.load %arg17[%c0_269, %c0_270] : memref<16x1xf32, #tpu.memory_space<vmem>>, vector<16x1xf32>
    %262 = vector.broadcast %261 : vector<16x1xf32> to vector<16x64xf32>
    %263 = arith.addf %260, %262 : vector<16x64xf32>
    %cst_271 = arith.constant 0.000000e+00 : f32
    %264 = vector.broadcast %cst_271 : f32 to vector<16x64xf32>
    %265 = arith.cmpf oge, %263, %264 : vector<16x64xf32>
    %cst_272 = arith.constant 0.00999999977 : f32
    %266 = vector.broadcast %cst_272 : f32 to vector<16x64xf32>
    %267 = arith.mulf %266, %263 : vector<16x64xf32>
    %268 = arith.select %265, %263, %267 : vector<16x64xi1>, vector<16x64xf32>
    %c0_273 = arith.constant 0 : index
    %c1_274 = arith.constant 1 : index
    %269 = vector.load %arg23[%c0_273, %c1_274] : memref<32x68xf32, #tpu.memory_space<vmem>>, vector<16x64xf32>
    tpu.vector_store %arg23[%c0_273, %c1_274], %268 {strides = array<i32>} : memref<32x68xf32, #tpu.memory_space<vmem>>, vector<16x64xf32>,
    %270 = vector.extract_strided_slice %268 {offsets = [0, 1], sizes = [16, 1], strides = [1, 1]} : vector<16x64xf32> to vector<16x1xf32>
    %c0_275 = arith.constant 0 : index
    %c0_276 = arith.constant 0 : index
    %271 = vector.load %arg23[%c0_275, %c0_276] : memref<32x68xf32, #tpu.memory_space<vmem>>, vector<16x1xf32>
    tpu.vector_store %arg23[%c0_275, %c0_276], %270 {strides = array<i32>} : memref<32x68xf32, #tpu.memory_space<vmem>>, vector<16x1xf32>,
    %272 = vector.extract_strided_slice %268 {offsets = [0, 62], sizes = [16, 1], strides = [1, 1]} : vector<16x64xf32> to vector<16x1xf32>
    %c0_277 = arith.constant 0 : index
    %c65_278 = arith.constant 65 : index
    %273 = vector.load %arg23[%c0_277, %c65_278] : memref<32x68xf32, #tpu.memory_space<vmem>>, vector<16x1xf32>
    tpu.vector_store %arg23[%c0_277, %c65_278], %272 {strides = array<i32>} : memref<32x68xf32, #tpu.memory_space<vmem>>, vector<16x1xf32>,
    %c0_279 = arith.constant 0 : index
    %c0_280 = arith.constant 0 : index
    %274 = vector.load %arg23[%c0_279, %c0_280] : memref<32x68xf32, #tpu.memory_space<vmem>>, vector<16x64xf32>
    %c0_281 = arith.constant 0 : index
    %c0_282 = arith.constant 0 : index
    %275 = vector.load %arg24[%c0_281, %c0_282] : memref<160x64xf32, #tpu.memory_space<vmem>>, vector<16x64xf32>
    tpu.vector_store %arg24[%c0_281, %c0_282], %274 {strides = array<i32>} : memref<160x64xf32, #tpu.memory_space<vmem>>, vector<16x64xf32>,
    %c0_283 = arith.constant 0 : index
    %c1_284 = arith.constant 1 : index
    %276 = vector.load %arg23[%c0_283, %c1_284] : memref<32x68xf32, #tpu.memory_space<vmem>>, vector<16x64xf32>
    %c16 = arith.constant 16 : index
    %c0_285 = arith.constant 0 : index
    %277 = vector.load %arg24[%c16, %c0_285] : memref<160x64xf32, #tpu.memory_space<vmem>>, vector<16x64xf32>
    tpu.vector_store %arg24[%c16, %c0_285], %276 {strides = array<i32>} : memref<160x64xf32, #tpu.memory_space<vmem>>, vector<16x64xf32>,
    %c0_286 = arith.constant 0 : index
    %c2_287 = arith.constant 2 : index
    %278 = vector.load %arg23[%c0_286, %c2_287] : memref<32x68xf32, #tpu.memory_space<vmem>>, vector<16x64xf32>
    %c32_288 = arith.constant 32 : index
    %c0_289 = arith.constant 0 : index
    %279 = vector.load %arg24[%c32_288, %c0_289] : memref<160x64xf32, #tpu.memory_space<vmem>>, vector<16x64xf32>
    tpu.vector_store %arg24[%c32_288, %c0_289], %278 {strides = array<i32>} : memref<160x64xf32, #tpu.memory_space<vmem>>, vector<16x64xf32>,
    %c0_290 = arith.constant 0 : index
    %c0_291 = arith.constant 0 : index
    %280 = vector.load %arg24[%c0_290, %c0_291] : memref<160x64xf32, #tpu.memory_space<vmem>>, vector<48x64xf32>
    %c0_292 = arith.constant 0 : index
    %c0_293 = arith.constant 0 : index
    %281 = vector.load %arg18[%c0_292, %c0_293] : memref<8x48xf32, #tpu.memory_space<vmem>>, vector<8x48xf32>
    %cst_294 = arith.constant dense<0.000000e+00> : vector<8x64xf32>
    %282 = tpu.matmul %281, %280, %cst_294 {dimension_numbers = #tpu.dot_dimension_numbers<[1], [0], [0], [1], [0, 0, 1, 1], [], []>} : vector<8x48xf32>, vector<48x64xf32>, vector<8x64xf32> -> vector<8x64xf32>
    %c0_295 = arith.constant 0 : index
    %c0_296 = arith.constant 0 : index
    %283 = vector.load %arg19[%c0_295, %c0_296] : memref<8x1xf32, #tpu.memory_space<vmem>>, vector<8x1xf32>
    %284 = vector.broadcast %283 : vector<8x1xf32> to vector<8x64xf32>
    %285 = arith.addf %282, %284 : vector<8x64xf32>
    %cst_297 = arith.constant 0.000000e+00 : f32
    %286 = vector.broadcast %cst_297 : f32 to vector<8x64xf32>
    %287 = arith.cmpf oge, %285, %286 : vector<8x64xf32>
    %cst_298 = arith.constant 0.00999999977 : f32
    %288 = vector.broadcast %cst_298 : f32 to vector<8x64xf32>
    %289 = arith.mulf %288, %285 : vector<8x64xf32>
    %290 = arith.select %287, %285, %289 : vector<8x64xi1>, vector<8x64xf32>
    %cst_299 = arith.constant dense<0.000000e+00> : vector<8xf32>
    %291 = vector.multi_reduction <add>, %290, %cst_299 [1] : vector<8x64xf32> to vector<8xf32>
    %292 = vector.shape_cast %291 : vector<8xf32> to vector<8x1xf32>
    %cst_300 = arith.constant 6.400000e+01 : f32
    %293 = vector.broadcast %cst_300 : f32 to vector<8x1xf32>
    %294 = arith.divf %292, %293 : vector<8x1xf32>
    %295 = arith.mulf %290, %290 : vector<8x64xf32>
    %cst_301 = arith.constant dense<0.000000e+00> : vector<8xf32>
    %296 = vector.multi_reduction <add>, %295, %cst_301 [1] : vector<8x64xf32> to vector<8xf32>
    %297 = vector.shape_cast %296 : vector<8xf32> to vector<8x1xf32>
    %cst_302 = arith.constant 6.400000e+01 : f32
    %298 = vector.broadcast %cst_302 : f32 to vector<8x1xf32>
    %299 = arith.divf %297, %298 : vector<8x1xf32>
    %300 = arith.mulf %294, %294 : vector<8x1xf32>
    %301 = arith.subf %299, %300 : vector<8x1xf32>
    %302 = vector.broadcast %294 : vector<8x1xf32> to vector<8x64xf32>
    %303 = arith.subf %290, %302 : vector<8x64xf32>
    %cst_303 = arith.constant 9.99999974E-6 : f32
    %304 = vector.broadcast %cst_303 : f32 to vector<8x1xf32>
    %305 = arith.addf %301, %304 : vector<8x1xf32>
    %306 = math.rsqrt %305 : vector<8x1xf32>
    %307 = vector.broadcast %306 : vector<8x1xf32> to vector<8x64xf32>
    %308 = arith.mulf %303, %307 : vector<8x64xf32>
    %309 = vector.extract_strided_slice %308 {offsets = [0, 0], sizes = [8, 57], strides = [1, 1]} : vector<8x64xf32> to vector<8x57xf32>
    %c0_304 = arith.constant 0 : index
    %c0_305 = arith.constant 0 : index
    %310 = vector.load %arg24[%c0_304, %c0_305] : memref<160x64xf32, #tpu.memory_space<vmem>>, vector<8x57xf32>
    tpu.vector_store %arg24[%c0_304, %c0_305], %309 {strides = array<i32>} : memref<160x64xf32, #tpu.memory_space<vmem>>, vector<8x57xf32>,
    %311 = vector.extract_strided_slice %308 {offsets = [0, 1], sizes = [8, 57], strides = [1, 1]} : vector<8x64xf32> to vector<8x57xf32>
    %c8 = arith.constant 8 : index
    %c0_306 = arith.constant 0 : index
    %312 = vector.load %arg24[%c8, %c0_306] : memref<160x64xf32, #tpu.memory_space<vmem>>, vector<8x57xf32>
    tpu.vector_store %arg24[%c8, %c0_306], %311 {strides = array<i32>} : memref<160x64xf32, #tpu.memory_space<vmem>>, vector<8x57xf32>,
    %313 = vector.extract_strided_slice %308 {offsets = [0, 2], sizes = [8, 57], strides = [1, 1]} : vector<8x64xf32> to vector<8x57xf32>
    %c16_307 = arith.constant 16 : index
    %c0_308 = arith.constant 0 : index
    %314 = vector.load %arg24[%c16_307, %c0_308] : memref<160x64xf32, #tpu.memory_space<vmem>>, vector<8x57xf32>
    tpu.vector_store %arg24[%c16_307, %c0_308], %313 {strides = array<i32>} : memref<160x64xf32, #tpu.memory_space<vmem>>, vector<8x57xf32>,
    %315 = vector.extract_strided_slice %308 {offsets = [0, 3], sizes = [8, 57], strides = [1, 1]} : vector<8x64xf32> to vector<8x57xf32>
    %c24 = arith.constant 24 : index
    %c0_309 = arith.constant 0 : index
    %316 = vector.load %arg24[%c24, %c0_309] : memref<160x64xf32, #tpu.memory_space<vmem>>, vector<8x57xf32>
    tpu.vector_store %arg24[%c24, %c0_309], %315 {strides = array<i32>} : memref<160x64xf32, #tpu.memory_space<vmem>>, vector<8x57xf32>,
    %317 = vector.extract_strided_slice %308 {offsets = [0, 4], sizes = [8, 57], strides = [1, 1]} : vector<8x64xf32> to vector<8x57xf32>
    %c32_310 = arith.constant 32 : index
    %c0_311 = arith.constant 0 : index
    %318 = vector.load %arg24[%c32_310, %c0_311] : memref<160x64xf32, #tpu.memory_space<vmem>>, vector<8x57xf32>
    tpu.vector_store %arg24[%c32_310, %c0_311], %317 {strides = array<i32>} : memref<160x64xf32, #tpu.memory_space<vmem>>, vector<8x57xf32>,
    %319 = vector.extract_strided_slice %308 {offsets = [0, 5], sizes = [8, 57], strides = [1, 1]} : vector<8x64xf32> to vector<8x57xf32>
    %c40 = arith.constant 40 : index
    %c0_312 = arith.constant 0 : index
    %320 = vector.load %arg24[%c40, %c0_312] : memref<160x64xf32, #tpu.memory_space<vmem>>, vector<8x57xf32>
    tpu.vector_store %arg24[%c40, %c0_312], %319 {strides = array<i32>} : memref<160x64xf32, #tpu.memory_space<vmem>>, vector<8x57xf32>,
    %321 = vector.extract_strided_slice %308 {offsets = [0, 6], sizes = [8, 57], strides = [1, 1]} : vector<8x64xf32> to vector<8x57xf32>
    %c48 = arith.constant 48 : index
    %c0_313 = arith.constant 0 : index
    %322 = vector.load %arg24[%c48, %c0_313] : memref<160x64xf32, #tpu.memory_space<vmem>>, vector<8x57xf32>
    tpu.vector_store %arg24[%c48, %c0_313], %321 {strides = array<i32>} : memref<160x64xf32, #tpu.memory_space<vmem>>, vector<8x57xf32>,
    %323 = vector.extract_strided_slice %308 {offsets = [0, 7], sizes = [8, 57], strides = [1, 1]} : vector<8x64xf32> to vector<8x57xf32>
    %c56 = arith.constant 56 : index
    %c0_314 = arith.constant 0 : index
    %324 = vector.load %arg24[%c56, %c0_314] : memref<160x64xf32, #tpu.memory_space<vmem>>, vector<8x57xf32>
    tpu.vector_store %arg24[%c56, %c0_314], %323 {strides = array<i32>} : memref<160x64xf32, #tpu.memory_space<vmem>>, vector<8x57xf32>,
    %c0_315 = arith.constant 0 : index
    %c0_316 = arith.constant 0 : index
    %325 = vector.load %arg24[%c0_315, %c0_316] : memref<160x64xf32, #tpu.memory_space<vmem>>, vector<64x57xf32>
    %c0_317 = arith.constant 0 : index
    %c0_318 = arith.constant 0 : index
    %326 = vector.load %arg20[%c0_317, %c0_318] : memref<8x64xf32, #tpu.memory_space<vmem>>, vector<8x64xf32>
    %cst_319 = arith.constant dense<0.000000e+00> : vector<8x57xf32>
    %327 = tpu.matmul %326, %325, %cst_319 {dimension_numbers = #tpu.dot_dimension_numbers<[1], [0], [0], [1], [0, 0, 1, 1], [], []>} : vector<8x64xf32>, vector<64x57xf32>, vector<8x57xf32> -> vector<8x57xf32>
    %c0_320 = arith.constant 0 : index
    %c0_321 = arith.constant 0 : index
    %328 = vector.load %arg21[%c0_320, %c0_321] : memref<8x1xf32, #tpu.memory_space<vmem>>, vector<8x1xf32>
    %329 = vector.broadcast %328 : vector<8x1xf32> to vector<8x57xf32>
    %330 = arith.addf %327, %329 : vector<8x57xf32>
    %c0_322 = arith.constant 0 : index
    %c0_323 = arith.constant 0 : index
    %c0_324 = arith.constant 0 : index
    %331 = vector.load %arg22[%c0_322, %c0_323, %c0_324] : memref<1x8x57xf32, #tpu.memory_space<vmem>>, vector<1x8x57xf32>
    %332 = vector.shape_cast %331 : vector<1x8x57xf32> to vector<8x57xf32>
    %333 = vector.shape_cast %330 : vector<8x57xf32> to vector<1x8x57xf32>
    tpu.vector_store %arg22[%c0_322, %c0_323, %c0_324], %333 {strides = array<i32>} : memref<1x8x57xf32, #tpu.memory_space<vmem>>, vector<1x8x57xf32>,
    return
  }
  func.func @transform_0(%arg0: i32) -> (i32, i32, i32) {
    %c0_i32 = arith.constant 0 : i32
    %c0_i32_0 = arith.constant 0 : i32
    %c0_i32_1 = arith.constant 0 : i32
    return %arg0, %c0_i32, %c0_i32_0 : i32, i32, i32
  }
  func.func @transform_1(%arg0: i32) -> (i32, i32, i32) {
    %c0_i32 = arith.constant 0 : i32
    %c0_i32_0 = arith.constant 0 : i32
    %c0_i32_1 = arith.constant 0 : i32
    return %arg0, %c0_i32, %c0_i32_0 : i32, i32, i32
  }
  func.func @transform_2(%arg0: i32) -> (i32, i32, i32) {
    %c0_i32 = arith.constant 0 : i32
    %c0_i32_0 = arith.constant 0 : i32
    %c0_i32_1 = arith.constant 0 : i32
    return %arg0, %c0_i32, %c0_i32_0 : i32, i32, i32
  }
  func.func @transform_3(%arg0: i32) -> (i32, i32) {
    %c0_i32 = arith.constant 0 : i32
    %c0_i32_0 = arith.constant 0 : i32
    %c0_i32_1 = arith.constant 0 : i32
    return %c0_i32, %c0_i32_0 : i32, i32
  }
  func.func @transform_4(%arg0: i32) -> (i32, i32) {
    %c0_i32 = arith.constant 0 : i32
    %c0_i32_0 = arith.constant 0 : i32
    %c0_i32_1 = arith.constant 0 : i32
    return %c0_i32, %c0_i32_0 : i32, i32
  }
  func.func @transform_5(%arg0: i32) -> (i32, i32) {
    %c0_i32 = arith.constant 0 : i32
    %c0_i32_0 = arith.constant 0 : i32
    %c0_i32_1 = arith.constant 0 : i32
    return %c0_i32, %c0_i32_0 : i32, i32
  }
  func.func @transform_6(%arg0: i32) -> (i32, i32) {
    %c0_i32 = arith.constant 0 : i32
    %c0_i32_0 = arith.constant 0 : i32
    %c0_i32_1 = arith.constant 0 : i32
    return %c0_i32, %c0_i32_0 : i32, i32
  }
  func.func @transform_7(%arg0: i32) -> (i32, i32) {
    %c0_i32 = arith.constant 0 : i32
    %c0_i32_0 = arith.constant 0 : i32
    %c0_i32_1 = arith.constant 0 : i32
    return %c0_i32, %c0_i32_0 : i32, i32
  }
  func.func @transform_8(%arg0: i32) -> (i32, i32) {
    %c0_i32 = arith.constant 0 : i32
    %c0_i32_0 = arith.constant 0 : i32
    %c0_i32_1 = arith.constant 0 : i32
    return %c0_i32, %c0_i32_0 : i32, i32
  }
  func.func @transform_9(%arg0: i32) -> (i32, i32) {
    %c0_i32 = arith.constant 0 : i32
    %c0_i32_0 = arith.constant 0 : i32
    %c0_i32_1 = arith.constant 0 : i32
    return %c0_i32, %c0_i32_0 : i32, i32
  }
  func.func @transform_10(%arg0: i32) -> (i32, i32) {
    %c0_i32 = arith.constant 0 : i32
    %c0_i32_0 = arith.constant 0 : i32
    %c0_i32_1 = arith.constant 0 : i32
    return %c0_i32, %c0_i32_0 : i32, i32
  }
  func.func @transform_11(%arg0: i32) -> (i32, i32) {
    %c0_i32 = arith.constant 0 : i32
    %c0_i32_0 = arith.constant 0 : i32
    %c0_i32_1 = arith.constant 0 : i32
    return %c0_i32, %c0_i32_0 : i32, i32
  }
  func.func @transform_12(%arg0: i32) -> (i32, i32) {
    %c0_i32 = arith.constant 0 : i32
    %c0_i32_0 = arith.constant 0 : i32
    %c0_i32_1 = arith.constant 0 : i32
    return %c0_i32, %c0_i32_0 : i32, i32
  }
  func.func @transform_13(%arg0: i32) -> (i32, i32) {
    %c0_i32 = arith.constant 0 : i32
    %c0_i32_0 = arith.constant 0 : i32
    %c0_i32_1 = arith.constant 0 : i32
    return %c0_i32, %c0_i32_0 : i32, i32
  }
  func.func @transform_14(%arg0: i32) -> (i32, i32) {
    %c0_i32 = arith.constant 0 : i32
    %c0_i32_0 = arith.constant 0 : i32
    %c0_i32_1 = arith.constant 0 : i32
    return %c0_i32, %c0_i32_0 : i32, i32
  }
  func.func @transform_15(%arg0: i32) -> (i32, i32) {
    %c0_i32 = arith.constant 0 : i32
    %c0_i32_0 = arith.constant 0 : i32
    %c0_i32_1 = arith.constant 0 : i32
    return %c0_i32, %c0_i32_0 : i32, i32
  }
  func.func @transform_16(%arg0: i32) -> (i32, i32) {
    %c0_i32 = arith.constant 0 : i32
    %c0_i32_0 = arith.constant 0 : i32
    %c0_i32_1 = arith.constant 0 : i32
    return %c0_i32, %c0_i32_0 : i32, i32
  }
  func.func @transform_17(%arg0: i32) -> (i32, i32) {
    %c0_i32 = arith.constant 0 : i32
    %c0_i32_0 = arith.constant 0 : i32
    %c0_i32_1 = arith.constant 0 : i32
    return %c0_i32, %c0_i32_0 : i32, i32
  }
  func.func @transform_18(%arg0: i32) -> (i32, i32) {
    %c0_i32 = arith.constant 0 : i32
    %c0_i32_0 = arith.constant 0 : i32
    %c0_i32_1 = arith.constant 0 : i32
    return %c0_i32, %c0_i32_0 : i32, i32
  }
  func.func @transform_19(%arg0: i32) -> (i32, i32) {
    %c0_i32 = arith.constant 0 : i32
    %c0_i32_0 = arith.constant 0 : i32
    %c0_i32_1 = arith.constant 0 : i32
    return %c0_i32, %c0_i32_0 : i32, i32
  }
  func.func @transform_20(%arg0: i32) -> (i32, i32) {
    %c0_i32 = arith.constant 0 : i32
    %c0_i32_0 = arith.constant 0 : i32
    %c0_i32_1 = arith.constant 0 : i32
    return %c0_i32, %c0_i32_0 : i32, i32
  }
  func.func @transform_21(%arg0: i32) -> (i32, i32, i32) {
    %c0_i32 = arith.constant 0 : i32
    %c0_i32_0 = arith.constant 0 : i32
    %c0_i32_1 = arith.constant 0 : i32
    return %arg0, %c0_i32, %c0_i32_0 : i32, i32, i32
  }
}

</mosaic_0001>

<llo_original>
// kernel: forward.1
$region0: #{forward.1}
  #allocation0 [shape = 'u32[]', space=smem, size = 0x4, offset = 0x4, fixed_abs, tag = 'smem constant byte address 0x4 - core index']
  #allocation1 [shape = 'u32[144,128]{1,0:T(1,128)}', space=vmem, size = 0x12000, scoped, tag = 'internal scratch']
  #allocation2 [shape = 'f32[32,68]{1,0:T(8,128)}', space=vmem, size = 0x4000, scoped, tag = 'scratch operand']
  #allocation3 [shape = 'f32[160,64]{1,0:T(8,128)}', space=vmem, size = 0x14000, scoped, tag = 'scratch operand']
  %s0 = inlined_call_operand.vmem [shape: f32[2,32,64], index: 0, kind: input, shape index: {}]
  %s1 = inlined_call_operand.vmem [shape: f32[2,32,64], index: 1, kind: input, shape index: {}]
  %s2 = inlined_call_operand.vmem [shape: f32[2,32,64], index: 2, kind: input, shape index: {}]
  %s3 = inlined_call_operand.vmem [shape: f32[32,160], index: 3, kind: input, shape index: {}]
  %s4 = inlined_call_operand.vmem [shape: f32[32,1], index: 4, kind: input, shape index: {}]
  %s5 = inlined_call_operand.vmem [shape: f32[32,160], index: 5, kind: input, shape index: {}]
  %s6 = inlined_call_operand.vmem [shape: f32[32,1], index: 6, kind: input, shape index: {}]
  %s7 = inlined_call_operand.vmem [shape: f32[32,160], index: 7, kind: input, shape index: {}]
  %s8 = inlined_call_operand.vmem [shape: f32[32,1], index: 8, kind: input, shape index: {}]
  %s9 = inlined_call_operand.vmem [shape: f32[32,160], index: 9, kind: input, shape index: {}]
  %s10 = inlined_call_operand.vmem [shape: f32[32,1], index: 10, kind: input, shape index: {}]
  %s11 = inlined_call_operand.vmem [shape: f32[32,160], index: 11, kind: input, shape index: {}]
  %s12 = inlined_call_operand.vmem [shape: f32[32,1], index: 12, kind: input, shape index: {}]
  %s13 = inlined_call_operand.vmem [shape: f32[32,160], index: 13, kind: input, shape index: {}]
  %s14 = inlined_call_operand.vmem [shape: f32[32,1], index: 14, kind: input, shape index: {}]
  %s15 = inlined_call_operand.vmem [shape: f32[16,96], index: 15, kind: input, shape index: {}]
  %s16 = inlined_call_operand.vmem [shape: f32[16,1], index: 16, kind: input, shape index: {}]
  %s17 = inlined_call_operand.vmem [shape: f32[8,48], index: 17, kind: input, shape index: {}]
  %s18 = inlined_call_operand.vmem [shape: f32[8,1], index: 18, kind: input, shape index: {}]
  %s19 = inlined_call_operand.vmem [shape: f32[8,64], index: 19, kind: input, shape index: {}]
  %s20 = inlined_call_operand.vmem [shape: f32[8,1], index: 20, kind: input, shape index: {}]
  %s21 = inlined_call_operand.vmem [shape: f32[2,8,57], index: 21, kind: output, shape index: {}]
  %s22 = sld [smem:[#allocation0]]
  $region117: #{forward.1} parent=0
    _
  %s24 = ssub.s32 1, %s22
  %s25 = scalar_select 0, %s24, %s22
  loop: start=0, step=1, limit=4
  $region2: #{forward.1} parent=0 // loop_pre_header
    _
  $region3: #{forward.1} parent=0 // loop_header
    %s27 = sphi 0, %s31
    %p28 = scmp.ge.s32.totalorder %s27, 4
    %s37 = sphi 0, %s39
    %s40 = sphi 0, %s37
    %s41 = sphi 0, %s40
    %s57 = sphi 0, %s41
    %s63 = sphi 0, %s65
    %s66 = sphi 0, %s63
    %s67 = sphi 0, %s66
    %s83 = sphi 0, %s67
    %s89 = sphi 0, %s91
    %s92 = sphi 0, %s89
    %s93 = sphi 0, %s92
    %s109 = sphi 0, %s93
    %s113 = sphi 0, %s113
    %s115 = sphi 0, %s113
    %s116 = sphi 0, %s115
    %s130 = sphi 0, %s116
    %s134 = sphi 0, %s134
    %s136 = sphi 0, %s134
    %s137 = sphi 0, %s136
    %s151 = sphi 0, %s137
    %s155 = sphi 0, %s155
    %s157 = sphi 0, %s155
    %s158 = sphi 0, %s157
    %s172 = sphi 0, %s158
    %s176 = sphi 0, %s176
    %s178 = sphi 0, %s176
    %s179 = sphi 0, %s178
    %s193 = sphi 0, %s179
    %s197 = sphi 0, %s197
    %s199 = sphi 0, %s197
    %s200 = sphi 0, %s199
    %s214 = sphi 0, %s200
    %s218 = sphi 0, %s218
    %s220 = sphi 0, %s218
    %s221 = sphi 0, %s220
    %s235 = sphi 0, %s221
    %s239 = sphi 0, %s239
    %s241 = sphi 0, %s239
    %s242 = sphi 0, %s241
    %s256 = sphi 0, %s242
    %s260 = sphi 0, %s260
    %s262 = sphi 0, %s260
    %s263 = sphi 0, %s262
    %s277 = sphi 0, %s263
    %s281 = sphi 0, %s281
    %s283 = sphi 0, %s281
    %s284 = sphi 0, %s283
    %s298 = sphi 0, %s284
    %s302 = sphi 0, %s302
    %s304 = sphi 0, %s302
    %s305 = sphi 0, %s304
    %s319 = sphi 0, %s305
    %s323 = sphi 0, %s323
    %s325 = sphi 0, %s323
    %s326 = sphi 0, %s325
    %s340 = sphi 0, %s326
    %s344 = sphi 0, %s344
    %s346 = sphi 0, %s344
    %s347 = sphi 0, %s346
    %s361 = sphi 0, %s347
    %s365 = sphi 0, %s365
    %s367 = sphi 0, %s365
    %s368 = sphi 0, %s367
    %s382 = sphi 0, %s368
    %s386 = sphi 0, %s386
    %s388 = sphi 0, %s386
    %s389 = sphi 0, %s388
    %s403 = sphi 0, %s389
    %s407 = sphi 0, %s407
    %s409 = sphi 0, %s407
    %s410 = sphi 0, %s409
    %s424 = sphi 0, %s410
    %s428 = sphi 0, %s428
    %s430 = sphi 0, %s428
    %s431 = sphi 0, %s430
    %s445 = sphi 0, %s431
    %s449 = sphi 0, %s449
    %s451 = sphi 0, %s449
    %s452 = sphi 0, %s451
    %s466 = sphi 0, %s452
    %s470 = sphi 0, %s470
    %s472 = sphi 0, %s470
    %s473 = sphi 0, %s472
    %s487 = sphi 0, %s473
    %s493 = sphi 0, %s495
    %s496 = sphi 0, %s493
    %s497 = sphi 0, %s496
    %s513 = sphi 0, %s497
  $region4: #{forward.1} parent=0 // loop_header_branch
    %30 = sbr.rel (%p28) target = $region8
  $region5: #{forward.1} parent=0 // loop_body
    %s32 = ssub.s32 %s27, 1
    %s33 = ssub.s32 %s27, 2
    %s34 = sadd.s32 %s27, 1
    %s35 = ssub.s32 %s27, %s34
    %p36 = scmp.eq.s32.totalorder %s35, 0
    %s38 = sadd.s32 %s37, 1
    %s39 = scalar_select %p36, %s37, %s38
    %p42 = pneg %p36
    %p43 = scmp.eq.s32.totalorder %s27, 1
    %p44 = por %p42, %p43
    %p45 = scmp.ne.s32.totalorder %s37, %s40
    %p46 = scmp.eq.s32.totalorder %s27, 0
    %p47 = por %p45, %p46
    %p48 = scmp.ne.s32.totalorder %s37, %s40
    %p49 = scmp.eq.s32.totalorder %s32, 1
    %p50 = por %p48, %p49
    %p51 = scmp.ne.s32.totalorder %s40, %s41
    %p52 = scmp.eq.s32.totalorder %s32, 0
    %p53 = por %p51, %p52
    %p54 = scmp.ne.s32.totalorder %s40, %s41
    %p55 = scmp.eq.s32.totalorder %s33, 1
    %p56 = por %p54, %p55
    %p58 = scmp.ne.s32.totalorder %s41, %s57
    %p59 = scmp.eq.s32.totalorder %s33, 0
    %p60 = por %p58, %p59
    %s61 = ssub.s32 %s27, %s34
    %p62 = scmp.eq.s32.totalorder %s61, 0
    %s64 = sadd.s32 %s63, 1
    %s65 = scalar_select %p62, %s63, %s64
    %p68 = pneg %p62
    %p69 = scmp.eq.s32.totalorder %s27, 1
    %p70 = por %p68, %p69
    %p71 = scmp.ne.s32.totalorder %s63, %s66
    %p72 = scmp.eq.s32.totalorder %s27, 0
    %p73 = por %p71, %p72
    %p74 = scmp.ne.s32.totalorder %s63, %s66
    %p75 = scmp.eq.s32.totalorder %s32, 1
    %p76 = por %p74, %p75
    %p77 = scmp.ne.s32.totalorder %s66, %s67
    %p78 = scmp.eq.s32.totalorder %s32, 0
    %p79 = por %p77, %p78
    %p80 = scmp.ne.s32.totalorder %s66, %s67
    %p81 = scmp.eq.s32.totalorder %s33, 1
    %p82 = por %p80, %p81
    %p84 = scmp.ne.s32.totalorder %s67, %s83
    %p85 = scmp.eq.s32.totalorder %s33, 0
    %p86 = por %p84, %p85
    %s87 = ssub.s32 %s27, %s34
    %p88 = scmp.eq.s32.totalorder %s87, 0
    %s90 = sadd.s32 %s89, 1
    %s91 = scalar_select %p88, %s89, %s90
    %p94 = pneg %p88
    %p95 = scmp.eq.s32.totalorder %s27, 1
    %p96 = por %p94, %p95
    %p97 = scmp.ne.s32.totalorder %s89, %s92
    %p98 = scmp.eq.s32.totalorder %s27, 0
    %p99 = por %p97, %p98
    %p100 = scmp.ne.s32.totalorder %s89, %s92
    %p101 = scmp.eq.s32.totalorder %s32, 1
    %p102 = por %p100, %p101
    %p103 = scmp.ne.s32.totalorder %s92, %s93
    %p104 = scmp.eq.s32.totalorder %s32, 0
    %p105 = por %p103, %p104
    %p106 = scmp.ne.s32.totalorder %s92, %s93
    %p107 = scmp.eq.s32.totalorder %s33, 1
    %p108 = por %p106, %p107
    %p110 = scmp.ne.s32.totalorder %s93, %s109
    %p111 = scmp.eq.s32.totalorder %s33, 0
    %p112 = por %p110, %p111
    %s114 = sadd.s32 %s113, 1
    %p117 = scmp.eq.s32.totalorder %s27, 1
    %p118 = scmp.ne.s32.totalorder %s113, %s115
    %p119 = scmp.eq.s32.totalorder %s27, 0
    %p120 = por %p118, %p119
    %p121 = scmp.ne.s32.totalorder %s113, %s115
    %p122 = scmp.eq.s32.totalorder %s32, 1
    %p123 = por %p121, %p122
    %p124 = scmp.ne.s32.totalorder %s115, %s116
    %p125 = scmp.eq.s32.totalorder %s32, 0
    %p126 = por %p124, %p125
    %p127 = scmp.ne.s32.totalorder %s115, %s116
    %p128 = scmp.eq.s32.totalorder %s33, 1
    %p129 = por %p127, %p128
    %p131 = scmp.ne.s32.totalorder %s116, %s130
    %p132 = scmp.eq.s32.totalorder %s33, 0
    %p133 = por %p131, %p132
    %s135 = sadd.s32 %s134, 1
    %p138 = scmp.eq.s32.totalorder %s27, 1
    %p139 = scmp.ne.s32.totalorder %s134, %s136
    %p140 = scmp.eq.s32.totalorder %s27, 0
    %p141 = por %p139, %p140
    %p142 = scmp.ne.s32.totalorder %s134, %s136
    %p143 = scmp.eq.s32.totalorder %s32, 1
    %p144 = por %p142, %p143
    %p145 = scmp.ne.s32.totalorder %s136, %s137
    %p146 = scmp.eq.s32.totalorder %s32, 0
    %p147 = por %p145, %p146
    %p148 = scmp.ne.s32.totalorder %s136, %s137
    %p149 = scmp.eq.s32.totalorder %s33, 1
    %p150 = por %p148, %p149
    %p152 = scmp.ne.s32.totalorder %s137, %s151
    %p153 = scmp.eq.s32.totalorder %s33, 0
    %p154 = por %p152, %p153
    %s156 = sadd.s32 %s155, 1
    %p159 = scmp.eq.s32.totalorder %s27, 1
    %p160 = scmp.ne.s32.totalorder %s155, %s157
    %p161 = scmp.eq.s32.totalorder %s27, 0
    %p162 = por %p160, %p161
    %p163 = scmp.ne.s32.totalorder %s155, %s157
    %p164 = scmp.eq.s32.totalorder %s32, 1
    %p165 = por %p163, %p164
    %p166 = scmp.ne.s32.totalorder %s157, %s158
    %p167 = scmp.eq.s32.totalorder %s32, 0
    %p168 = por %p166, %p167
    %p169 = scmp.ne.s32.totalorder %s157, %s158
    %p170 = scmp.eq.s32.totalorder %s33, 1
    %p171 = por %p169, %p170
    %p173 = scmp.ne.s32.totalorder %s158, %s172
    %p174 = scmp.eq.s32.totalorder %s33, 0
    %p175 = por %p173, %p174
    %s177 = sadd.s32 %s176, 1
    %p180 = scmp.eq.s32.totalorder %s27, 1
    %p181 = scmp.ne.s32.totalorder %s176, %s178
    %p182 = scmp.eq.s32.totalorder %s27, 0
    %p183 = por %p181, %p182
    %p184 = scmp.ne.s32.totalorder %s176, %s178
    %p185 = scmp.eq.s32.totalorder %s32, 1
    %p186 = por %p184, %p185
    %p187 = scmp.ne.s32.totalorder %s178, %s179
    %p188 = scmp.eq.s32.totalorder %s32, 0
    %p189 = por %p187, %p188
    %p190 = scmp.ne.s32.totalorder %s178, %s179
    %p191 = scmp.eq.s32.totalorder %s33, 1
    %p192 = por %p190, %p191
    %p194 = scmp.ne.s32.totalorder %s179, %s193
    %p195 = scmp.eq.s32.totalorder %s33, 0
    %p196 = por %p194, %p195
    %s198 = sadd.s32 %s197, 1
    %p201 = scmp.eq.s32.totalorder %s27, 1
    %p202 = scmp.ne.s32.totalorder %s197, %s199
    %p203 = scmp.eq.s32.totalorder %s27, 0
    %p204 = por %p202, %p203
    %p205 = scmp.ne.s32.totalorder %s197, %s199
    %p206 = scmp.eq.s32.totalorder %s32, 1
    %p207 = por %p205, %p206
    %p208 = scmp.ne.s32.totalorder %s199, %s200
    %p209 = scmp.eq.s32.totalorder %s32, 0
    %p210 = por %p208, %p209
    %p211 = scmp.ne.s32.totalorder %s199, %s200
    %p212 = scmp.eq.s32.totalorder %s33, 1
    %p213 = por %p211, %p212
    %p215 = scmp.ne.s32.totalorder %s200, %s214
    %p216 = scmp.eq.s32.totalorder %s33, 0
    %p217 = por %p215, %p216
    %s219 = sadd.s32 %s218, 1
    %p222 = scmp.eq.s32.totalorder %s27, 1
    %p223 = scmp.ne.s32.totalorder %s218, %s220
    %p224 = scmp.eq.s32.totalorder %s27, 0
    %p225 = por %p223, %p224
    %p226 = scmp.ne.s32.totalorder %s218, %s220
    %p227 = scmp.eq.s32.totalorder %s32, 1
    %p228 = por %p226, %p227
    %p229 = scmp.ne.s32.totalorder %s220, %s221
    %p230 = scmp.eq.s32.totalorder %s32, 0
    %p231 = por %p229, %p230
    %p232 = scmp.ne.s32.totalorder %s220, %s221
    %p233 = scmp.eq.s32.totalorder %s33, 1
    %p234 = por %p232, %p233
    %p236 = scmp.ne.s32.totalorder %s221, %s235
    %p237 = scmp.eq.s32.totalorder %s33, 0
    %p238 = por %p236, %p237
    %s240 = sadd.s32 %s239, 1
    %p243 = scmp.eq.s32.totalorder %s27, 1
    %p244 = scmp.ne.s32.totalorder %s239, %s241
    %p245 = scmp.eq.s32.totalorder %s27, 0
    %p246 = por %p244, %p245
    %p247 = scmp.ne.s32.totalorder %s239, %s241
    %p248 = scmp.eq.s32.totalorder %s32, 1
    %p249 = por %p247, %p248
    %p250 = scmp.ne.s32.totalorder %s241, %s242
    %p251 = scmp.eq.s32.totalorder %s32, 0
    %p252 = por %p250, %p251
    %p253 = scmp.ne.s32.totalorder %s241, %s242
    %p254 = scmp.eq.s32.totalorder %s33, 1
    %p255 = por %p253, %p254
    %p257 = scmp.ne.s32.totalorder %s242, %s256
    %p258 = scmp.eq.s32.totalorder %s33, 0
    %p259 = por %p257, %p258
    %s261 = sadd.s32 %s260, 1
    %p264 = scmp.eq.s32.totalorder %s27, 1
    %p265 = scmp.ne.s32.totalorder %s260, %s262
    %p266 = scmp.eq.s32.totalorder %s27, 0
    %p267 = por %p265, %p266
    %p268 = scmp.ne.s32.totalorder %s260, %s262
    %p269 = scmp.eq.s32.totalorder %s32, 1
    %p270 = por %p268, %p269
    %p271 = scmp.ne.s32.totalorder %s262, %s263
    %p272 = scmp.eq.s32.totalorder %s32, 0
    %p273 = por %p271, %p272
    %p274 = scmp.ne.s32.totalorder %s262, %s263
    %p275 = scmp.eq.s32.totalorder %s33, 1
    %p276 = por %p274, %p275
    %p278 = scmp.ne.s32.totalorder %s263, %s277
    %p279 = scmp.eq.s32.totalorder %s33, 0
    %p280 = por %p278, %p279
    %s282 = sadd.s32 %s281, 1
    %p285 = scmp.eq.s32.totalorder %s27, 1
    %p286 = scmp.ne.s32.totalorder %s281, %s283
    %p287 = scmp.eq.s32.totalorder %s27, 0
    %p288 = por %p286, %p287
    %p289 = scmp.ne.s32.totalorder %s281, %s283
    %p290 = scmp.eq.s32.totalorder %s32, 1
    %p291 = por %p289, %p290
    %p292 = scmp.ne.s32.totalorder %s283, %s284
    %p293 = scmp.eq.s32.totalorder %s32, 0
    %p294 = por %p292, %p293
    %p295 = scmp.ne.s32.totalorder %s283, %s284
    %p296 = scmp.eq.s32.totalorder %s33, 1
    %p297 = por %p295, %p296
    %p299 = scmp.ne.s32.totalorder %s284, %s298
    %p300 = scmp.eq.s32.totalorder %s33, 0
    %p301 = por %p299, %p300
    %s303 = sadd.s32 %s302, 1
    %p306 = scmp.eq.s32.totalorder %s27, 1
    %p307 = scmp.ne.s32.totalorder %s302, %s304
    %p308 = scmp.eq.s32.totalorder %s27, 0
    %p309 = por %p307, %p308
    %p310 = scmp.ne.s32.totalorder %s302, %s304
    %p311 = scmp.eq.s32.totalorder %s32, 1
    %p312 = por %p310, %p311
    %p313 = scmp.ne.s32.totalorder %s304, %s305
    %p314 = scmp.eq.s32.totalorder %s32, 0
    %p315 = por %p313, %p314
    %p316 = scmp.ne.s32.totalorder %s304, %s305
    %p317 = scmp.eq.s32.totalorder %s33, 1
    %p318 = por %p316, %p317
    %p320 = scmp.ne.s32.totalorder %s305, %s319
    %p321 = scmp.eq.s32.totalorder %s33, 0
    %p322 = por %p320, %p321
    %s324 = sadd.s32 %s323, 1
    %p327 = scmp.eq.s32.totalorder %s27, 1
    %p328 = scmp.ne.s32.totalorder %s323, %s325
    %p329 = scmp.eq.s32.totalorder %s27, 0
    %p330 = por %p328, %p329
    %p331 = scmp.ne.s32.totalorder %s323, %s325
    %p332 = scmp.eq.s32.totalorder %s32, 1
    %p333 = por %p331, %p332
    %p334 = scmp.ne.s32.totalorder %s325, %s326
    %p335 = scmp.eq.s32.totalorder %s32, 0
    %p336 = por %p334, %p335
    %p337 = scmp.ne.s32.totalorder %s325, %s326
    %p338 = scmp.eq.s32.totalorder %s33, 1
    %p339 = por %p337, %p338
    %p341 = scmp.ne.s32.totalorder %s326, %s340
    %p342 = scmp.eq.s32.totalorder %s33, 0
    %p343 = por %p341, %p342
    %s345 = sadd.s32 %s344, 1
    %p348 = scmp.eq.s32.totalorder %s27, 1
    %p349 = scmp.ne.s32.totalorder %s344, %s346
    %p350 = scmp.eq.s32.totalorder %s27, 0
    %p351 = por %p349, %p350
    %p352 = scmp.ne.s32.totalorder %s344, %s346
    %p353 = scmp.eq.s32.totalorder %s32, 1
    %p354 = por %p352, %p353
    %p355 = scmp.ne.s32.totalorder %s346, %s347
    %p356 = scmp.eq.s32.totalorder %s32, 0
    %p357 = por %p355, %p356
    %p358 = scmp.ne.s32.totalorder %s346, %s347
    %p359 = scmp.eq.s32.totalorder %s33, 1
    %p360 = por %p358, %p359
    %p362 = scmp.ne.s32.totalorder %s347, %s361
    %p363 = scmp.eq.s32.totalorder %s33, 0
    %p364 = por %p362, %p363
    %s366 = sadd.s32 %s365, 1
    %p369 = scmp.eq.s32.totalorder %s27, 1
    %p370 = scmp.ne.s32.totalorder %s365, %s367
    %p371 = scmp.eq.s32.totalorder %s27, 0
    %p372 = por %p370, %p371
    %p373 = scmp.ne.s32.totalorder %s365, %s367
    %p374 = scmp.eq.s32.totalorder %s32, 1
    %p375 = por %p373, %p374
    %p376 = scmp.ne.s32.totalorder %s367, %s368
    %p377 = scmp.eq.s32.totalorder %s32, 0
    %p378 = por %p376, %p377
    %p379 = scmp.ne.s32.totalorder %s367, %s368
    %p380 = scmp.eq.s32.totalorder %s33, 1
    %p381 = por %p379, %p380
    %p383 = scmp.ne.s32.totalorder %s368, %s382
    %p384 = scmp.eq.s32.totalorder %s33, 0
    %p385 = por %p383, %p384
    %s387 = sadd.s32 %s386, 1
    %p390 = scmp.eq.s32.totalorder %s27, 1
    %p391 = scmp.ne.s32.totalorder %s386, %s388
    %p392 = scmp.eq.s32.totalorder %s27, 0
    %p393 = por %p391, %p392
    %p394 = scmp.ne.s32.totalorder %s386, %s388
    %p395 = scmp.eq.s32.totalorder %s32, 1
    %p396 = por %p394, %p395
    %p397 = scmp.ne.s32.totalorder %s388, %s389
    %p398 = scmp.eq.s32.totalorder %s32, 0
    %p399 = por %p397, %p398
    %p400 = scmp.ne.s32.totalorder %s388, %s389
    %p401 = scmp.eq.s32.totalorder %s33, 1
    %p402 = por %p400, %p401
    %p404 = scmp.ne.s32.totalorder %s389, %s403
    %p405 = scmp.eq.s32.totalorder %s33, 0
    %p406 = por %p404, %p405
    %s408 = sadd.s32 %s407, 1
    %p411 = scmp.eq.s32.totalorder %s27, 1
    %p412 = scmp.ne.s32.totalorder %s407, %s409
    %p413 = scmp.eq.s32.totalorder %s27, 0
    %p414 = por %p412, %p413
    %p415 = scmp.ne.s32.totalorder %s407, %s409
    %p416 = scmp.eq.s32.totalorder %s32, 1
    %p417 = por %p415, %p416
    %p418 = scmp.ne.s32.totalorder %s409, %s410
    %p419 = scmp.eq.s32.totalorder %s32, 0
    %p420 = por %p418, %p419
    %p421 = scmp.ne.s32.totalorder %s409, %s410
    %p422 = scmp.eq.s32.totalorder %s33, 1
    %p423 = por %p421, %p422
    %p425 = scmp.ne.s32.totalorder %s410, %s424
    %p426 = scmp.eq.s32.totalorder %s33, 0
    %p427 = por %p425, %p426
    %s429 = sadd.s32 %s428, 1
    %p432 = scmp.eq.s32.totalorder %s27, 1
    %p433 = scmp.ne.s32.totalorder %s428, %s430
    %p434 = scmp.eq.s32.totalorder %s27, 0
    %p435 = por %p433, %p434
    %p436 = scmp.ne.s32.totalorder %s428, %s430
    %p437 = scmp.eq.s32.totalorder %s32, 1
    %p438 = por %p436, %p437
    %p439 = scmp.ne.s32.totalorder %s430, %s431
    %p440 = scmp.eq.s32.totalorder %s32, 0
    %p441 = por %p439, %p440
    %p442 = scmp.ne.s32.totalorder %s430, %s431
    %p443 = scmp.eq.s32.totalorder %s33, 1
    %p444 = por %p442, %p443
    %p446 = scmp.ne.s32.totalorder %s431, %s445
    %p447 = scmp.eq.s32.totalorder %s33, 0
    %p448 = por %p446, %p447
    %s450 = sadd.s32 %s449, 1
    %p453 = scmp.eq.s32.totalorder %s27, 1
    %p454 = scmp.ne.s32.totalorder %s449, %s451
    %p455 = scmp.eq.s32.totalorder %s27, 0
    %p456 = por %p454, %p455
    %p457 = scmp.ne.s32.totalorder %s449, %s451
    %p458 = scmp.eq.s32.totalorder %s32, 1
    %p459 = por %p457, %p458
    %p460 = scmp.ne.s32.totalorder %s451, %s452
    %p461 = scmp.eq.s32.totalorder %s32, 0
    %p462 = por %p460, %p461
    %p463 = scmp.ne.s32.totalorder %s451, %s452
    %p464 = scmp.eq.s32.totalorder %s33, 1
    %p465 = por %p463, %p464
    %p467 = scmp.ne.s32.totalorder %s452, %s466
    %p468 = scmp.eq.s32.totalorder %s33, 0
    %p469 = por %p467, %p468
    %s471 = sadd.s32 %s470, 1
    %p474 = scmp.eq.s32.totalorder %s27, 1
    %p475 = scmp.ne.s32.totalorder %s470, %s472
    %p476 = scmp.eq.s32.totalorder %s27, 0
    %p477 = por %p475, %p476
    %p478 = scmp.ne.s32.totalorder %s470, %s472
    %p479 = scmp.eq.s32.totalorder %s32, 1
    %p480 = por %p478, %p479
    %p481 = scmp.ne.s32.totalorder %s472, %s473
    %p482 = scmp.eq.s32.totalorder %s32, 0
    %p483 = por %p481, %p482
    %p484 = scmp.ne.s32.totalorder %s472, %s473
    %p485 = scmp.eq.s32.totalorder %s33, 1
    %p486 = por %p484, %p485
    %p488 = scmp.ne.s32.totalorder %s473, %s487
    %p489 = scmp.eq.s32.totalorder %s33, 0
    %p490 = por %p488, %p489
    %s491 = ssub.s32 %s27, %s34
    %p492 = scmp.eq.s32.totalorder %s491, 0
    %s494 = sadd.s32 %s493, 1
    %s495 = scalar_select %p492, %s493, %s494
    %p498 = pneg %p492
    %p499 = scmp.eq.s32.totalorder %s27, 1
    %p500 = por %p498, %p499
    %p501 = scmp.ne.s32.totalorder %s493, %s496
    %p502 = scmp.eq.s32.totalorder %s27, 0
    %p503 = por %p501, %p502
    %p504 = scmp.ne.s32.totalorder %s493, %s496
    %p505 = scmp.eq.s32.totalorder %s32, 1
    %p506 = por %p504, %p505
    %p507 = scmp.ne.s32.totalorder %s496, %s497
    %p508 = scmp.eq.s32.totalorder %s32, 0
    %p509 = por %p507, %p508
    %p510 = scmp.ne.s32.totalorder %s496, %s497
    %p511 = scmp.eq.s32.totalorder %s33, 1
    %p512 = por %p510, %p511
    %p514 = scmp.ne.s32.totalorder %s497, %s513
    %p515 = scmp.eq.s32.totalorder %s33, 0
    %p516 = por %p514, %p515
    %p517 = scmp.le.s32.totalorder 1, %s27
    %p518 = scmp.lt.s32.totalorder %s27, 3
    %p519 = pnand %p517, %p518
    %p520 = pneg %p519
    // Predicated region
    $region9: #{forward.1} parent=5 // pred_check
      _
    $region10: #{forward.1} parent=5 // pred_check_branch
      %522 = sbr.rel (%p519) target = $region12
    $region11: #{forward.1} parent=5 // pred_region
      %s523 = ssub.s32 %s27, 1
      // Predicated region
      $region13: #{forward.1} parent=11 // pred_check
        %p524 = pneg %p126
      $region14: #{forward.1} parent=11 // pred_check_branch
        %526 = sbr.rel (%p524) target = $region16
      $region15: #{forward.1} parent=11 // pred_region
        _
      $region16: #{forward.1} parent=11 // pred_fallthru
        _
      // Predicated region
      $region17: #{forward.1} parent=11 // pred_check
        %p527 = pneg %p147
      $region18: #{forward.1} parent=11 // pred_check_branch
        %529 = sbr.rel (%p527) target = $region20
      $region19: #{forward.1} parent=11 // pred_region
        _
      $region20: #{forward.1} parent=11 // pred_fallthru
        _
      // Predicated region
      $region21: #{forward.1} parent=11 // pred_check
        %p530 = pneg %p168
      $region22: #{forward.1} parent=11 // pred_check_branch
        %532 = sbr.rel (%p530) target = $region24
      $region23: #{forward.1} parent=11 // pred_region
        _
      $region24: #{forward.1} parent=11 // pred_fallthru
        _
      // Predicated region
      $region25: #{forward.1} parent=11 // pred_check
        %p533 = pneg %p189
      $region26: #{forward.1} parent=11 // pred_check_branch
        %535 = sbr.rel (%p533) target = $region28
      $region27: #{forward.1} parent=11 // pred_region
        _
      $region28: #{forward.1} parent=11 // pred_fallthru
        _
      // Predicated region
      $region29: #{forward.1} parent=11 // pred_check
        %p536 = pneg %p210
      $region30: #{forward.1} parent=11 // pred_check_branch
        %538 = sbr.rel (%p536) target = $region32
      $region31: #{forward.1} parent=11 // pred_region
        _
      $region32: #{forward.1} parent=11 // pred_fallthru
        _
      // Predicated region
      $region33: #{forward.1} parent=11 // pred_check
        %p539 = pneg %p231
      $region34: #{forward.1} parent=11 // pred_check_branch
        %541 = sbr.rel (%p539) target = $region36
      $region35: #{forward.1} parent=11 // pred_region
        _
      $region36: #{forward.1} parent=11 // pred_fallthru
        _
      // Predicated region
      $region37: #{forward.1} parent=11 // pred_check
        %p542 = pneg %p252
      $region38: #{forward.1} parent=11 // pred_check_branch
        %544 = sbr.rel (%p542) target = $region40
      $region39: #{forward.1} parent=11 // pred_region
        _
      $region40: #{forward.1} parent=11 // pred_fallthru
        _
      // Predicated region
      $region41: #{forward.1} parent=11 // pred_check
        %p545 = pneg %p273
      $region42: #{forward.1} parent=11 // pred_check_branch
        %547 = sbr.rel (%p545) target = $region44
      $region43: #{forward.1} parent=11 // pred_region
        _
      $region44: #{forward.1} parent=11 // pred_fallthru
        _
      // Predicated region
      $region45: #{forward.1} parent=11 // pred_check
        %p548 = pneg %p294
      $region46: #{forward.1} parent=11 // pred_check_branch
        %550 = sbr.rel (%p548) target = $region48
      $region47: #{forward.1} parent=11 // pred_region
        _
      $region48: #{forward.1} parent=11 // pred_fallthru
        _
      // Predicated region
      $region49: #{forward.1} parent=11 // pred_check
        %p551 = pneg %p315
      $region50: #{forward.1} parent=11 // pred_check_branch
        %553 = sbr.rel (%p551) target = $region52
      $region51: #{forward.1} parent=11 // pred_region
        _
      $region52: #{forward.1} parent=11 // pred_fallthru
        _
      // Predicated region
      $region53: #{forward.1} parent=11 // pred_check
        %p554 = pneg %p336
      $region54: #{forward.1} parent=11 // pred_check_branch
        %556 = sbr.rel (%p554) target = $region56
      $region55: #{forward.1} parent=11 // pred_region
        _
      $region56: #{forward.1} parent=11 // pred_fallthru
        _
      // Predicated region
      $region57: #{forward.1} parent=11 // pred_check
        %p557 = pneg %p357
      $region58: #{forward.1} parent=11 // pred_check_branch
        %559 = sbr.rel (%p557) target = $region60
      $region59: #{forward.1} parent=11 // pred_region
        _
      $region60: #{forward.1} parent=11 // pred_fallthru
        _
      // Predicated region
      $region61: #{forward.1} parent=11 // pred_check
        %p560 = pneg %p378
      $region62: #{forward.1} parent=11 // pred_check_branch
        %562 = sbr.rel (%p560) target = $region64
      $region63: #{forward.1} parent=11 // pred_region
        _
      $region64: #{forward.1} parent=11 // pred_fallthru
        _
      // Predicated region
      $region65: #{forward.1} parent=11 // pred_check
        %p563 = pneg %p399
      $region66: #{forward.1} parent=11 // pred_check_branch
        %565 = sbr.rel (%p563) target = $region68
      $region67: #{forward.1} parent=11 // pred_region
        _
      $region68: #{forward.1} parent=11 // pred_fallthru
        _
      // Predicated region
      $region69: #{forward.1} parent=11 // pred_check
        %p566 = pneg %p420
      $region70: #{forward.1} parent=11 // pred_check_branch
        %568 = sbr.rel (%p566) target = $region72
      $region71: #{forward.1} parent=11 // pred_region
        _
      $region72: #{forward.1} parent=11 // pred_fallthru
        _
      // Predicated region
      $region73: #{forward.1} parent=11 // pred_check
        %p569 = pneg %p441
      $region74: #{forward.1} parent=11 // pred_check_branch
        %571 = sbr.rel (%p569) target = $region76
      $region75: #{forward.1} parent=11 // pred_region
        _
      $region76: #{forward.1} parent=11 // pred_fallthru
        _
      // Predicated region
      $region77: #{forward.1} parent=11 // pred_check
        %p572 = pneg %p462
      $region78: #{forward.1} parent=11 // pred_check_branch
        %574 = sbr.rel (%p572) target = $region80
      $region79: #{forward.1} parent=11 // pred_region
        _
      $region80: #{forward.1} parent=11 // pred_fallthru
        _
      // Predicated region
      $region81: #{forward.1} parent=11 // pred_check
        %p575 = pneg %p483
      $region82: #{forward.1} parent=11 // pred_check_branch
        %577 = sbr.rel (%p575) target = $region84
      $region83: #{forward.1} parent=11 // pred_region
        _
      $region84: #{forward.1} parent=11 // pred_fallthru
        _
    $region12: #{forward.1} parent=5 // pred_fallthru
      _
    %p578 = scmp.lt.s32.totalorder %s27, 2
    // Predicated region
    $region85: #{forward.1} parent=5 // pred_check
      %p579 = pneg %p578
    $region86: #{forward.1} parent=5 // pred_check_branch
      %581 = sbr.rel (%p579) target = $region88
    $region87: #{forward.1} parent=5 // pred_region
      // Predicated region
      $region89: #{forward.1} parent=87 // pred_check
        %p582 = pneg %p47
      $region90: #{forward.1} parent=87 // pred_check_branch
        %584 = sbr.rel (%p582) target = $region92
      $region91: #{forward.1} parent=87 // pred_region
        %p585 = scmp.lt.s32.totalorder %s27, 1
        %s586 = scalar_select %p585, %s27, 1
        %s587 = smul.addr %s586, 4
        %s588 = smul.addr %s587, 8
        %s589 = scalar_lea.vmem %s0, %s588
      $region92: #{forward.1} parent=87 // pred_fallthru
        _
      // Predicated region
      $region93: #{forward.1} parent=87 // pred_check
        %p590 = pneg %p73
      $region94: #{forward.1} parent=87 // pred_check_branch
        %592 = sbr.rel (%p590) target = $region96
      $region95: #{forward.1} parent=87 // pred_region
        %p593 = scmp.lt.s32.totalorder %s27, 1
        %s594 = scalar_select %p593, %s27, 1
        %s595 = smul.addr %s594, 4
        %s596 = smul.addr %s595, 8
        %s597 = scalar_lea.vmem %s1, %s596
      $region96: #{forward.1} parent=87 // pred_fallthru
        _
      // Predicated region
      $region97: #{forward.1} parent=87 // pred_check
        %p598 = pneg %p99
      $region98: #{forward.1} parent=87 // pred_check_branch
        %600 = sbr.rel (%p598) target = $region100
      $region99: #{forward.1} parent=87 // pred_region
        %p601 = scmp.lt.s32.totalorder %s27, 1
        %s602 = scalar_select %p601, %s27, 1
        %s603 = smul.addr %s602, 4
        %s604 = smul.addr %s603, 8
        %s605 = scalar_lea.vmem %s2, %s604
      $region100: #{forward.1} parent=87 // pred_fallthru
        _
    $region88: #{forward.1} parent=5 // pred_fallthru
      _
    %p606 = scmp.le.s32.totalorder 1, %s27
    %p607 = scmp.lt.s32.totalorder %s27, 3
    %p608 = pnand %p606, %p607
    %p609 = pneg %p608
    // Predicated region
    $region101: #{forward.1} parent=5 // pred_check
      _
    $region102: #{forward.1} parent=5 // pred_check_branch
      %611 = sbr.rel (%p608) target = $region104
    $region103: #{forward.1} parent=5 // pred_region
      %s612 = ssub.s32 %s27, 1
      %p613 = scmp.lt.s32.totalorder %s32, 1
      %s614 = scalar_select %p613, %s32, 1
      %s615 = smul.addr %s614, 4
      %s616 = smul.addr %s615, 8
      %s617 = scalar_lea.vmem %s0, %s616
      %p618 = pneg %p53
      %p619 = pneg %p50
      %p620 = scmp.lt.s32.totalorder %s32, 1
      %s621 = scalar_select %p620, %s32, 1
      %s622 = smul.addr %s621, 4
      %s623 = smul.addr %s622, 8
      %s624 = scalar_lea.vmem %s1, %s623
      %p625 = pneg %p79
      %p626 = pneg %p76
      %p627 = scmp.lt.s32.totalorder %s32, 1
      %s628 = scalar_select %p627, %s32, 1
      %s629 = smul.addr %s628, 4
      %s630 = smul.addr %s629, 8
      %s631 = scalar_lea.vmem %s2, %s630
      %p632 = pneg %p105
      %p633 = pneg %p102
      %p634 = pneg %p126
      %p635 = pneg %p123
      %p636 = pneg %p147
      %p637 = pneg %p144
      %p638 = pneg %p168
      %p639 = pneg %p165
      %p640 = pneg %p189
      %p641 = pneg %p186
      %p642 = pneg %p210
      %p643 = pneg %p207
      %p644 = pneg %p231
      %p645 = pneg %p228
      %p646 = pneg %p252
      %p647 = pneg %p249
      %p648 = pneg %p273
      %p649 = pneg %p270
      %p650 = pneg %p294
      %p651 = pneg %p291
      %p652 = pneg %p315
      %p653 = pneg %p312
      %p654 = pneg %p336
      %p655 = pneg %p333
      %p656 = pneg %p357
      %p657 = pneg %p354
      %p658 = pneg %p378
      %p659 = pneg %p375
      %p660 = pneg %p399
      %p661 = pneg %p396
      %p662 = pneg %p420
      %p663 = pneg %p417
      %p664 = pneg %p441
      %p665 = pneg %p438
      %p666 = pneg %p462
      %p667 = pneg %p459
      %p668 = pneg %p483
      %p669 = pneg %p480
      %p670 = pneg %p509
      %p671 = pneg %p506
      %p672 = scmp.lt.s32.totalorder %s32, 1
      %s673 = scalar_select %p672, %s32, 1
      %s674 = smul.addr %s673, 8
      %s675 = scalar_lea.vmem %s21, %s674
      %p676 = scmp.lt.s32.totalorder %s32, 1
      %s677 = scalar_select %p676, %s32, 1
      %s678 = smul.addr %s677, 4
      %s679 = smul.addr %s678, 8
      %s680 = scalar_lea.vmem %s0, %s679
      %p681 = scmp.lt.s32.totalorder %s32, 1
      %s682 = scalar_select %p681, %s32, 1
      %s683 = smul.addr %s682, 4
      %s684 = smul.addr %s683, 8
      %s685 = scalar_lea.vmem %s1, %s684
      %p686 = scmp.lt.s32.totalorder %s32, 1
      %s687 = scalar_select %p686, %s32, 1
      %s688 = smul.addr %s687, 4
      %s689 = smul.addr %s688, 8
      %s690 = scalar_lea.vmem %s2, %s689
      %p691 = scmp.lt.s32.totalorder %s32, 1
      %s692 = scalar_select %p691, %s32, 1
      %s693 = smul.addr %s692, 8
      %s694 = scalar_lea.vmem %s21, %s693
      %v695 = vld [vmem:[%s680] sm:$0xff]
      %v696 = vld [vmem:[%s680 + $0x8] sm:$0xff]
      %v697 = vld [vmem:[%s680 + $0x10] sm:$0xff]
      %v698 = vld [vmem:[%s680 + $0x18] sm:$0xff]
      %v699 = vld [vmem:[%s690] sm:$0xff]
      %v700 = vld [vmem:[%s690 + $0x8] sm:$0xff]
      %v701 = vld [vmem:[%s690 + $0x10] sm:$0xff]
      %v702 = vld [vmem:[%s690 + $0x18] sm:$0xff]
      %v703 = vmul.f32 %v699, 0.5
      %v704 = vmul.f32 %v700, 0.5
      %v705 = vmul.f32 %v701, 0.5
      %v706 = vmul.f32 %v702, 0.5
      %v707 = vmul.f32 %v703, 1.442695
      %v708 = vpow.pop %v707
      %v709 = vmul.f32 %v704, 1.442695
      %v710 = vpow.pop %v709
      %v711 = vmul.f32 %v705, 1.442695
      %v712 = vpow.pop %v711
      %v713 = vmul.f32 %v706, 1.442695
      %v714 = vpow.pop %v713
      %v715 = vmul.f32 %v695, %v708
      %v716 = vmul.f32 %v696, %v710
      %v717 = vmul.f32 %v697, %v712
      %v718 = vmul.f32 %v698, %v714
      %v719 = vld [vmem:[%s685] sm:$0xff]
      %v720 = vld [vmem:[%s685 + $0x8] sm:$0xff]
      %v721 = vld [vmem:[%s685 + $0x10] sm:$0xff]
      %v722 = vld [vmem:[%s685 + $0x18] sm:$0xff]
      %v723 = vadd.f32 %v715, %v719
      %v724 = vadd.f32 %v716, %v720
      %v725 = vadd.f32 %v717, %v721
      %v726 = vadd.f32 %v718, %v722
      %731 = vrot.lane.b32.xlu0 %v723, 2
      %v732 = vpop.permute.xlu0 %731
      %733 = vrot.lane.b32.xlu0 %v724, 2
      %v734 = vpop.permute.xlu0 %733
      %735 = vrot.lane.b32.xlu0 %v725, 2
      %v736 = vpop.permute.xlu0 %735
      %737 = vrot.lane.b32.xlu0 %v726, 2
      %v738 = vpop.permute.xlu0 %737
      %vm743 = vcmask 539664
      %744 = vst.msk [vmem:[#allocation2] sm:$0xff] %vm743, %v732
      %745 = vst.msk [vmem:[#allocation2 + $0x8] sm:$0xff] %vm743, %v734
      %746 = vst.msk [vmem:[#allocation2 + $0x10] sm:$0xff] %vm743, %v736
      %747 = vst.msk [vmem:[#allocation2 + $0x18] sm:$0xff] %vm743, %v738
      %748 = vrot.lane.b32.xlu0 %v723, 126
      %v749 = vpop.permute.xlu0 %748
      %750 = vrot.lane.b32.xlu0 %v724, 126
      %v751 = vpop.permute.xlu0 %750
      %752 = vrot.lane.b32.xlu0 %v725, 126
      %v753 = vpop.permute.xlu0 %752
      %754 = vrot.lane.b32.xlu0 %v726, 126
      %v755 = vpop.permute.xlu0 %754
      %vm760 = vcmask 7168
      %761 = vst.msk [vmem:[#allocation2] sm:$0xff] %vm760, %v749
      %762 = vst.msk [vmem:[#allocation2 + $0x8] sm:$0xff] %vm760, %v751
      %763 = vst.msk [vmem:[#allocation2 + $0x10] sm:$0xff] %vm760, %v753
      %764 = vst.msk [vmem:[#allocation2 + $0x18] sm:$0xff] %vm760, %v755
      %765 = vrot.lane.b32.xlu0 %v723, 4
      %v766 = vpop.permute.xlu0 %765
      %767 = vrot.lane.b32.xlu0 %v724, 4
      %v768 = vpop.permute.xlu0 %767
      %769 = vrot.lane.b32.xlu0 %v725, 4
      %v770 = vpop.permute.xlu0 %769
      %771 = vrot.lane.b32.xlu0 %v726, 4
      %v772 = vpop.permute.xlu0 %771
      %vm777 = vcmask 548368
      %778 = vst.msk [vmem:[#allocation2] sm:$0xff] %vm777, %v766
      %779 = vst.msk [vmem:[#allocation2 + $0x8] sm:$0xff] %vm777, %v768
      %780 = vst.msk [vmem:[#allocation2 + $0x10] sm:$0xff] %vm777, %v770
      %781 = vst.msk [vmem:[#allocation2 + $0x18] sm:$0xff] %vm777, %v772
      %vm782 = vcmask 15368
      %783 = vst.msk [vmem:[#allocation2] sm:$0xff] %vm782, %v723
      %784 = vst.msk [vmem:[#allocation2 + $0x8] sm:$0xff] %vm782, %v724
      %785 = vst.msk [vmem:[#allocation2 + $0x10] sm:$0xff] %vm782, %v725
      %786 = vst.msk [vmem:[#allocation2 + $0x18] sm:$0xff] %vm782, %v726
      %787 = vrot.lane.b32.xlu0 %v723, 6
      %v788 = vpop.permute.xlu0 %787
      %789 = vrot.lane.b32.xlu0 %v724, 6
      %v790 = vpop.permute.xlu0 %789
      %791 = vrot.lane.b32.xlu0 %v725, 6
      %v792 = vpop.permute.xlu0 %791
      %793 = vrot.lane.b32.xlu0 %v726, 6
      %v794 = vpop.permute.xlu0 %793
      %vm799 = vcmask 556568
      %800 = vst.msk [vmem:[#allocation2] sm:$0xff] %vm799, %v788
      %801 = vst.msk [vmem:[#allocation2 + $0x8] sm:$0xff] %vm799, %v790
      %802 = vst.msk [vmem:[#allocation2 + $0x10] sm:$0xff] %vm799, %v792
      %803 = vst.msk [vmem:[#allocation2 + $0x18] sm:$0xff] %vm799, %v794
      %v804 = vld [vmem:[#allocation2] sm:$0xff]
      %v805 = vld [vmem:[#allocation2 + $0x8] sm:$0xff]
      %v806 = vld [vmem:[#allocation2 + $0x10] sm:$0xff]
      %v807 = vld [vmem:[#allocation2 + $0x18] sm:$0xff]
      %vm808 = vcmask 523264
      %809 = vst.msk [vmem:[#allocation3] sm:$0xff] %vm808, %v804
      %810 = vst.msk [vmem:[#allocation3 + $0x8] sm:$0xff] %vm808, %v805
      %811 = vst.msk [vmem:[#allocation3 + $0x10] sm:$0xff] %vm808, %v806
      %812 = vst.msk [vmem:[#allocation3 + $0x18] sm:$0xff] %vm808, %v807
      %v813 = vld [vmem:[#allocation2] sm:$0xff]
      %v814 = vld [vmem:[#allocation2 + $0x8] sm:$0xff]
      %v815 = vld [vmem:[#allocation2 + $0x10] sm:$0xff]
      %v816 = vld [vmem:[#allocation2 + $0x18] sm:$0xff]
      %821 = vrot.lane.b32.xlu0 %v813, 127
      %v822 = vpop.permute.xlu0 %821
      %823 = vrot.lane.b32.xlu0 %v814, 127
      %v824 = vpop.permute.xlu0 %823
      %825 = vrot.lane.b32.xlu0 %v815, 127
      %v826 = vpop.permute.xlu0 %825
      %827 = vrot.lane.b32.xlu0 %v816, 127
      %v828 = vpop.permute.xlu0 %827
      %833 = vst.msk [vmem:[#allocation3 + $0x20] sm:$0xff] %vm808, %v822
      %834 = vst.msk [vmem:[#allocation3 + $0x28] sm:$0xff] %vm808, %v824
      %835 = vst.msk [vmem:[#allocation3 + $0x30] sm:$0xff] %vm808, %v826
      %836 = vst.msk [vmem:[#allocation3 + $0x38] sm:$0xff] %vm808, %v828
      %v837 = vld [vmem:[#allocation2] sm:$0xff]
      %v838 = vld [vmem:[#allocation2 + $0x8] sm:$0xff]
      %v839 = vld [vmem:[#allocation2 + $0x10] sm:$0xff]
      %v840 = vld [vmem:[#allocation2 + $0x18] sm:$0xff]
      %845 = vrot.lane.b32.xlu0 %v837, 126
      %v846 = vpop.permute.xlu0 %845
      %847 = vrot.lane.b32.xlu0 %v838, 126
      %v848 = vpop.permute.xlu0 %847
      %849 = vrot.lane.b32.xlu0 %v839, 126
      %v850 = vpop.permute.xlu0 %849
      %851 = vrot.lane.b32.xlu0 %v840, 126
      %v852 = vpop.permute.xlu0 %851
      %857 = vst.msk [vmem:[#allocation3 + $0x40] sm:$0xff] %vm808, %v846
      %858 = vst.msk [vmem:[#allocation3 + $0x48] sm:$0xff] %vm808, %v848
      %859 = vst.msk [vmem:[#allocation3 + $0x50] sm:$0xff] %vm808, %v850
      %860 = vst.msk [vmem:[#allocation3 + $0x58] sm:$0xff] %vm808, %v852
      %v861 = vld [vmem:[#allocation2] sm:$0xff]
      %v862 = vld [vmem:[#allocation2 + $0x8] sm:$0xff]
      %v863 = vld [vmem:[#allocation2 + $0x10] sm:$0xff]
      %v864 = vld [vmem:[#allocation2 + $0x18] sm:$0xff]
      %869 = vrot.lane.b32.xlu0 %v861, 125
      %v870 = vpop.permute.xlu0 %869
      %871 = vrot.lane.b32.xlu0 %v862, 125
      %v872 = vpop.permute.xlu0 %871
      %873 = vrot.lane.b32.xlu0 %v863, 125
      %v874 = vpop.permute.xlu0 %873
      %875 = vrot.lane.b32.xlu0 %v864, 125
      %v876 = vpop.permute.xlu0 %875
      %881 = vst.msk [vmem:[#allocation3 + $0x60] sm:$0xff] %vm808, %v870
      %882 = vst.msk [vmem:[#allocation3 + $0x68] sm:$0xff] %vm808, %v872
      %883 = vst.msk [vmem:[#allocation3 + $0x70] sm:$0xff] %vm808, %v874
      %884 = vst.msk [vmem:[#allocation3 + $0x78] sm:$0xff] %vm808, %v876
      %v885 = vld [vmem:[#allocation2] sm:$0xff]
      %v886 = vld [vmem:[#allocation2 + $0x8] sm:$0xff]
      %v887 = vld [vmem:[#allocation2 + $0x10] sm:$0xff]
      %v888 = vld [vmem:[#allocation2 + $0x18] sm:$0xff]
      %893 = vrot.lane.b32.xlu0 %v885, 124
      %v894 = vpop.permute.xlu0 %893
      %895 = vrot.lane.b32.xlu0 %v886, 124
      %v896 = vpop.permute.xlu0 %895
      %897 = vrot.lane.b32.xlu0 %v887, 124
      %v898 = vpop.permute.xlu0 %897
      %899 = vrot.lane.b32.xlu0 %v888, 124
      %v900 = vpop.permute.xlu0 %899
      %905 = vst.msk [vmem:[#allocation3 + $0x80] sm:$0xff] %vm808, %v894
      %906 = vst.msk [vmem:[#allocation3 + $0x88] sm:$0xff] %vm808, %v896
      %907 = vst.msk [vmem:[#allocation3 + $0x90] sm:$0xff] %vm808, %v898
      %908 = vst.msk [vmem:[#allocation3 + $0x98] sm:$0xff] %vm808, %v900
      %v909 = vld [vmem:[#allocation3] sm:$0xff]
      %v910 = vld [vmem:[#allocation3 + $0x8] sm:$0xff]
      %v911 = vld [vmem:[#allocation3 + $0x10] sm:$0xff]
      %v912 = vld [vmem:[#allocation3 + $0x18] sm:$0xff]
      %v913 = vld [vmem:[#allocation3 + $0x20] sm:$0xff]
      %v914 = vld [vmem:[#allocation3 + $0x28] sm:$0xff]
      %v915 = vld [vmem:[#allocation3 + $0x30] sm:$0xff]
      %v916 = vld [vmem:[#allocation3 + $0x38] sm:$0xff]
      %v917 = vld [vmem:[#allocation3 + $0x40] sm:$0xff]
      %v918 = vld [vmem:[#allocation3 + $0x48] sm:$0xff]
      %v919 = vld [vmem:[#allocation3 + $0x50] sm:$0xff]
      %v920 = vld [vmem:[#allocation3 + $0x58] sm:$0xff]
      %v921 = vld [vmem:[#allocation3 + $0x60] sm:$0xff]
      %v922 = vld [vmem:[#allocation3 + $0x68] sm:$0xff]
      %v923 = vld [vmem:[#allocation3 + $0x70] sm:$0xff]
      %v924 = vld [vmem:[#allocation3 + $0x78] sm:$0xff]
      %v925 = vld [vmem:[#allocation3 + $0x80] sm:$0xff]
      %v926 = vld [vmem:[#allocation3 + $0x88] sm:$0xff]
      %v927 = vld [vmem:[#allocation3 + $0x90] sm:$0xff]
      %v928 = vld [vmem:[#allocation3 + $0x98] sm:$0xff]
      %v929 = vld [vmem:[%s3] sm:$0xff]
      %v930 = vld [vmem:[%s3 + $0x8] sm:$0xff]
      %v931 = vld [vmem:[%s3 + $0x10] sm:$0xff]
      %v932 = vld [vmem:[%s3 + $0x18] sm:$0xff]
      %v933 = vld [vmem:[%s3 + $0x20] sm:$0xff]
      %v934 = vld [vmem:[%s3 + $0x28] sm:$0xff]
      %v935 = vld [vmem:[%s3 + $0x30] sm:$0xff]
      %v936 = vld [vmem:[%s3 + $0x38] sm:$0xff]
      %v937 = vld [vmem:[%s4] sm:$0xff]
      %v938 = vld [vmem:[%s4 + $0x8] sm:$0xff]
      %v939 = vld [vmem:[%s4 + $0x10] sm:$0xff]
      %v940 = vld [vmem:[%s4 + $0x18] sm:$0xff]
      %942 = vset.pattern.permute.xlu0 0
      %943 = vperm.xlu0 %942, %v937
      %v944 = vpop.permute.xlu0 %943
      %947 = vset.pattern.permute.xlu0 0
      %948 = vperm.xlu0 %947, %v938
      %v949 = vpop.permute.xlu0 %948
      %952 = vset.pattern.permute.xlu0 0
      %953 = vperm.xlu0 %952, %v939
      %v954 = vpop.permute.xlu0 %953
      %957 = vset.pattern.permute.xlu0 0
      %958 = vperm.xlu0 %957, %v940
      %v959 = vpop.permute.xlu0 %958
      %vm961 = vcmask 261120
      %v963 = vsel %vm961, %v930, 0
      %v966 = vsel %vm961, %v932, 0
      %v969 = vsel %vm961, %v934, 0
      %v972 = vsel %vm961, %v936, 0
      %974 = vmatprep.subr.mxu0 0.0
      %975 = vmatpush1.msra.mxu0 %v909
      %976 = vmatprep.subr.mxu0 0.0
      %977 = vmatpush1.msra.mxu0 %v910
      %978 = vmatprep.subr.mxu0 0.0
      %979 = vmatpush1.msra.mxu0 %v911
      %980 = vmatprep.subr.mxu0 0.0
      %981 = vmatpush1.msra.mxu0 %v912
      %982 = vmatprep.subr.mxu0 0.0
      %983 = vmatpush1.msra.mxu0 %v913
      %984 = vmatprep.subr.mxu0 0.0
      %985 = vmatpush1.msra.mxu0 %v914
      %986 = vmatprep.subr.mxu0 0.0
      %987 = vmatpush1.msra.mxu0 %v915
      %988 = vmatprep.subr.mxu0 0.0
      %989 = vmatpush1.msra.mxu0 %v916
      %990 = vmatprep.subr.mxu0 0.0
      %991 = vmatpush1.msra.mxu0 %v917
      %992 = vmatprep.subr.mxu0 0.0
      %993 = vmatpush1.msra.mxu0 %v918
      %994 = vmatprep.subr.mxu0 0.0
      %995 = vmatpush1.msra.mxu0 %v919
      %996 = vmatprep.subr.mxu0 0.0
      %997 = vmatpush1.msra.mxu0 %v920
      %998 = vmatprep.subr.mxu0 0.0
      %999 = vmatpush1.msra.mxu0 %v921
      %1000 = vmatprep.subr.mxu0 0.0
      %1001 = vmatpush1.msra.mxu0 %v922
      %1002 = vmatprep.subr.mxu0 0.0
      %1003 = vmatpush1.msra.mxu0 %v923
      %1004 = vmatprep.subr.mxu0 0.0
      %1005 = vmatpush1.msra.mxu0 %v924
      %1006 = vmatprep.subr.mxu0 0.0
      %1007 = vmatpush1.msra.mxu0 %v925
      %1008 = vmatprep.subr.mxu0 0.0
      %1009 = vmatpush1.msra.mxu0 %v926
      %1010 = vmatprep.subr.mxu0 0.0
      %1011 = vmatpush1.msra.mxu0 %v927
      %1012 = vmatprep.subr.mxu0 0.0
      %1013 = vmatpush1.msra.mxu0 %v928
      %1014 = vmatprep.subr.mxu0 0.0
      %1015 = vmatpush1.msra.mxu0 0.0
      %1016 = vmatprep.subr.mxu0 0.0
      %1017 = vmatpush1.msra.mxu0 0.0
      %1018 = vmatprep.subr.mxu0 0.0
      %1019 = vmatpush1.msra.mxu0 0.0
      %1020 = vmatprep.subr.mxu0 0.0
      %1021 = vmatpush1.msra.mxu0 0.0
      %1022 = vmatprep.subr.mxu0 0.0
      %1023 = vmatpush1.msra.mxu0 0.0
      %1024 = vmatprep.subr.mxu0 0.0
      %1025 = vmatpush1.msra.mxu0 0.0
      %1026 = vmatprep.subr.mxu0 0.0
      %1027 = vmatpush1.msra.mxu0 0.0
      %1028 = vmatprep.subr.mxu0 0.0
      %1029 = vmatpush1.msra.mxu0 0.0
      %1030 = vmatprep.subr.mxu0 0.0
      %1031 = vmatpush1.msra.mxu0 0.0
      %1032 = vmatprep.subr.mxu0 0.0
      %1033 = vmatpush1.msra.mxu0 0.0
      %1034 = vmatprep.subr.mxu0 0.0
      %1035 = vmatpush1.msra.mxu0 0.0
      %1036 = vmatprep.subr.mxu0 0.0
      %1037 = vmatpush1.msra.mxu0 0.0
      %1038 = vmatprep.mubr.f32.mxu0 %v963
      %1039 = vmatmul.mubr.f32.gmra.mrb[0].mxu0 %v929
      %v1040 = vpop.f32.mrb[0].mxu0
      %v1041 = vadd.f32 %v944, %v1040
      %v1042 = vpop.f32.mrb[0].mxu0
      %1043 = vmatprep.mubr.f32.mxu0 %v966
      %1044 = vmatmul.mubr.f32.gmra.mrb[0].mxu0 %v931
      %v1045 = vpop.f32.mrb[0].mxu0
      %v1046 = vadd.f32 %v949, %v1045
      %v1047 = vpop.f32.mrb[0].mxu0
      %1048 = vmatprep.mubr.f32.mxu0 %v969
      %1049 = vmatmul.mubr.f32.gmra.mrb[0].mxu0 %v933
      %v1050 = vpop.f32.mrb[0].mxu0
      %v1051 = vadd.f32 %v954, %v1050
      %v1052 = vpop.f32.mrb[0].mxu0
      %1053 = vmatprep.mubr.f32.mxu0 %v972
      %1054 = vmatmul.mubr.f32.gmra.mrb[0].mxu0 %v935
      %v1055 = vpop.f32.mrb[0].mxu0
      %v1056 = vadd.f32 %v959, %v1055
      %v1057 = vpop.f32.mrb[0].mxu0
      %1058 = vdwg.mxu0
      %vm1059 = vcmp.ge.f32.partialorder %v1041, 0.0
      %vm1060 = vcmp.ge.f32.partialorder %v1046, 0.0
      %vm1061 = vcmp.ge.f32.partialorder %v1051, 0.0
      %vm1062 = vcmp.ge.f32.partialorder %v1056, 0.0
      %v1063 = vmul.f32 %v1041, 0.01
      %v1064 = vmul.f32 %v1046, 0.01
      %v1065 = vmul.f32 %v1051, 0.01
      %v1066 = vmul.f32 %v1056, 0.01
      %v1067 = vsel %vm1059, %v1041, %v1063
      %v1068 = vsel %vm1060, %v1046, %v1064
      %v1069 = vsel %vm1061, %v1051, %v1065
      %v1070 = vsel %vm1062, %v1056, %v1066
      %1075 = vrot.lane.b32.xlu0 %v1067, 2
      %v1076 = vpop.permute.xlu0 %1075
      %1077 = vrot.lane.b32.xlu0 %v1068, 2
      %v1078 = vpop.permute.xlu0 %1077
      %1079 = vrot.lane.b32.xlu0 %v1069, 2
      %v1080 = vpop.permute.xlu0 %1079
      %1081 = vrot.lane.b32.xlu0 %v1070, 2
      %v1082 = vpop.permute.xlu0 %1081
      %1087 = vst.msk [vmem:[#allocation2] sm:$0xff] %vm743, %v1076
      %1088 = vst.msk [vmem:[#allocation2 + $0x8] sm:$0xff] %vm743, %v1078
      %1089 = vst.msk [vmem:[#allocation2 + $0x10] sm:$0xff] %vm743, %v1080
      %1090 = vst.msk [vmem:[#allocation2 + $0x18] sm:$0xff] %vm743, %v1082
      %1091 = vrot.lane.b32.xlu0 %v1067, 126
      %v1092 = vpop.permute.xlu0 %1091
      %1093 = vrot.lane.b32.xlu0 %v1068, 126
      %v1094 = vpop.permute.xlu0 %1093
      %1095 = vrot.lane.b32.xlu0 %v1069, 126
      %v1096 = vpop.permute.xlu0 %1095
      %1097 = vrot.lane.b32.xlu0 %v1070, 126
      %v1098 = vpop.permute.xlu0 %1097
      %1103 = vst.msk [vmem:[#allocation2] sm:$0xff] %vm760, %v1092
      %1104 = vst.msk [vmem:[#allocation2 + $0x8] sm:$0xff] %vm760, %v1094
      %1105 = vst.msk [vmem:[#allocation2 + $0x10] sm:$0xff] %vm760, %v1096
      %1106 = vst.msk [vmem:[#allocation2 + $0x18] sm:$0xff] %vm760, %v1098
      %1107 = vrot.lane.b32.xlu0 %v1067, 4
      %v1108 = vpop.permute.xlu0 %1107
      %1109 = vrot.lane.b32.xlu0 %v1068, 4
      %v1110 = vpop.permute.xlu0 %1109
      %1111 = vrot.lane.b32.xlu0 %v1069, 4
      %v1112 = vpop.permute.xlu0 %1111
      %1113 = vrot.lane.b32.xlu0 %v1070, 4
      %v1114 = vpop.permute.xlu0 %1113
      %1119 = vst.msk [vmem:[#allocation2] sm:$0xff] %vm777, %v1108
      %1120 = vst.msk [vmem:[#allocation2 + $0x8] sm:$0xff] %vm777, %v1110
      %1121 = vst.msk [vmem:[#allocation2 + $0x10] sm:$0xff] %vm777, %v1112
      %1122 = vst.msk [vmem:[#allocation2 + $0x18] sm:$0xff] %vm777, %v1114
      %1123 = vst.msk [vmem:[#allocation2] sm:$0xff] %vm782, %v1067
      %1124 = vst.msk [vmem:[#allocation2 + $0x8] sm:$0xff] %vm782, %v1068
      %1125 = vst.msk [vmem:[#allocation2 + $0x10] sm:$0xff] %vm782, %v1069
      %1126 = vst.msk [vmem:[#allocation2 + $0x18] sm:$0xff] %vm782, %v1070
      %1127 = vrot.lane.b32.xlu0 %v1067, 6
      %v1128 = vpop.permute.xlu0 %1127
      %1129 = vrot.lane.b32.xlu0 %v1068, 6
      %v1130 = vpop.permute.xlu0 %1129
      %1131 = vrot.lane.b32.xlu0 %v1069, 6
      %v1132 = vpop.permute.xlu0 %1131
      %1133 = vrot.lane.b32.xlu0 %v1070, 6
      %v1134 = vpop.permute.xlu0 %1133
      %1139 = vst.msk [vmem:[#allocation2] sm:$0xff] %vm799, %v1128
      %1140 = vst.msk [vmem:[#allocation2 + $0x8] sm:$0xff] %vm799, %v1130
      %1141 = vst.msk [vmem:[#allocation2 + $0x10] sm:$0xff] %vm799, %v1132
      %1142 = vst.msk [vmem:[#allocation2 + $0x18] sm:$0xff] %vm799, %v1134
      %v1143 = vld [vmem:[#allocation2] sm:$0xff]
      %v1144 = vld [vmem:[#allocation2 + $0x8] sm:$0xff]
      %v1145 = vld [vmem:[#allocation2 + $0x10] sm:$0xff]
      %v1146 = vld [vmem:[#allocation2 + $0x18] sm:$0xff]
      %1147 = vst.msk [vmem:[#allocation3] sm:$0xff] %vm808, %v1143
      %1148 = vst.msk [vmem:[#allocation3 + $0x8] sm:$0xff] %vm808, %v1144
      %1149 = vst.msk [vmem:[#allocation3 + $0x10] sm:$0xff] %vm808, %v1145
      %1150 = vst.msk [vmem:[#allocation3 + $0x18] sm:$0xff] %vm808, %v1146
      %v1151 = vld [vmem:[#allocation2] sm:$0xff]
      %v1152 = vld [vmem:[#allocation2 + $0x8] sm:$0xff]
      %v1153 = vld [vmem:[#allocation2 + $0x10] sm:$0xff]
      %v1154 = vld [vmem:[#allocation2 + $0x18] sm:$0xff]
      %1159 = vrot.lane.b32.xlu0 %v1151, 127
      %v1160 = vpop.permute.xlu0 %1159
      %1161 = vrot.lane.b32.xlu0 %v1152, 127
      %v1162 = vpop.permute.xlu0 %1161
      %1163 = vrot.lane.b32.xlu0 %v1153, 127
      %v1164 = vpop.permute.xlu0 %1163
      %1165 = vrot.lane.b32.xlu0 %v1154, 127
      %v1166 = vpop.permute.xlu0 %1165
      %1171 = vst.msk [vmem:[#allocation3 + $0x20] sm:$0xff] %vm808, %v1160
      %1172 = vst.msk [vmem:[#allocation3 + $0x28] sm:$0xff] %vm808, %v1162
      %1173 = vst.msk [vmem:[#allocation3 + $0x30] sm:$0xff] %vm808, %v1164
      %1174 = vst.msk [vmem:[#allocation3 + $0x38] sm:$0xff] %vm808, %v1166
      %v1175 = vld [vmem:[#allocation2] sm:$0xff]
      %v1176 = vld [vmem:[#allocation2 + $0x8] sm:$0xff]
      %v1177 = vld [vmem:[#allocation2 + $0x10] sm:$0xff]
      %v1178 = vld [vmem:[#allocation2 + $0x18] sm:$0xff]
      %1183 = vrot.lane.b32.xlu0 %v1175, 126
      %v1184 = vpop.permute.xlu0 %1183
      %1185 = vrot.lane.b32.xlu0 %v1176, 126
      %v1186 = vpop.permute.xlu0 %1185
      %1187 = vrot.lane.b32.xlu0 %v1177, 126
      %v1188 = vpop.permute.xlu0 %1187
      %1189 = vrot.lane.b32.xlu0 %v1178, 126
      %v1190 = vpop.permute.xlu0 %1189
      %1195 = vst.msk [vmem:[#allocation3 + $0x40] sm:$0xff] %vm808, %v1184
      %1196 = vst.msk [vmem:[#allocation3 + $0x48] sm:$0xff] %vm808, %v1186
      %1197 = vst.msk [vmem:[#allocation3 + $0x50] sm:$0xff] %vm808, %v1188
      %1198 = vst.msk [vmem:[#allocation3 + $0x58] sm:$0xff] %vm808, %v1190
      %v1199 = vld [vmem:[#allocation2] sm:$0xff]
      %v1200 = vld [vmem:[#allocation2 + $0x8] sm:$0xff]
      %v1201 = vld [vmem:[#allocation2 + $0x10] sm:$0xff]
      %v1202 = vld [vmem:[#allocation2 + $0x18] sm:$0xff]
      %1207 = vrot.lane.b32.xlu0 %v1199, 125
      %v1208 = vpop.permute.xlu0 %1207
      %1209 = vrot.lane.b32.xlu0 %v1200, 125
      %v1210 = vpop.permute.xlu0 %1209
      %1211 = vrot.lane.b32.xlu0 %v1201, 125
      %v1212 = vpop.permute.xlu0 %1211
      %1213 = vrot.lane.b32.xlu0 %v1202, 125
      %v1214 = vpop.permute.xlu0 %1213
      %1219 = vst.msk [vmem:[#allocation3 + $0x60] sm:$0xff] %vm808, %v1208
      %1220 = vst.msk [vmem:[#allocation3 + $0x68] sm:$0xff] %vm808, %v1210
      %1221 = vst.msk [vmem:[#allocation3 + $0x70] sm:$0xff] %vm808, %v1212
      %1222 = vst.msk [vmem:[#allocation3 + $0x78] sm:$0xff] %vm808, %v1214
      %v1223 = vld [vmem:[#allocation2] sm:$0xff]
      %v1224 = vld [vmem:[#allocation2 + $0x8] sm:$0xff]
      %v1225 = vld [vmem:[#allocation2 + $0x10] sm:$0xff]
      %v1226 = vld [vmem:[#allocation2 + $0x18] sm:$0xff]
      %1231 = vrot.lane.b32.xlu0 %v1223, 124
      %v1232 = vpop.permute.xlu0 %1231
      %1233 = vrot.lane.b32.xlu0 %v1224, 124
      %v1234 = vpop.permute.xlu0 %1233
      %1235 = vrot.lane.b32.xlu0 %v1225, 124
      %v1236 = vpop.permute.xlu0 %1235
      %1237 = vrot.lane.b32.xlu0 %v1226, 124
      %v1238 = vpop.permute.xlu0 %1237
      %1243 = vst.msk [vmem:[#allocation3 + $0x80] sm:$0xff] %vm808, %v1232
      %1244 = vst.msk [vmem:[#allocation3 + $0x88] sm:$0xff] %vm808, %v1234
      %1245 = vst.msk [vmem:[#allocation3 + $0x90] sm:$0xff] %vm808, %v1236
      %1246 = vst.msk [vmem:[#allocation3 + $0x98] sm:$0xff] %vm808, %v1238
      %v1247 = vld [vmem:[#allocation3] sm:$0xff]
      %v1248 = vld [vmem:[#allocation3 + $0x8] sm:$0xff]
      %v1249 = vld [vmem:[#allocation3 + $0x10] sm:$0xff]
      %v1250 = vld [vmem:[#allocation3 + $0x18] sm:$0xff]
      %v1251 = vld [vmem:[#allocation3 + $0x20] sm:$0xff]
      %v1252 = vld [vmem:[#allocation3 + $0x28] sm:$0xff]
      %v1253 = vld [vmem:[#allocation3 + $0x30] sm:$0xff]
      %v1254 = vld [vmem:[#allocation3 + $0x38] sm:$0xff]
      %v1255 = vld [vmem:[#allocation3 + $0x40] sm:$0xff]
      %v1256 = vld [vmem:[#allocation3 + $0x48] sm:$0xff]
      %v1257 = vld [vmem:[#allocation3 + $0x50] sm:$0xff]
      %v1258 = vld [vmem:[#allocation3 + $0x58] sm:$0xff]
      %v1259 = vld [vmem:[#allocation3 + $0x60] sm:$0xff]
      %v1260 = vld [vmem:[#allocation3 + $0x68] sm:$0xff]
      %v1261 = vld [vmem:[#allocation3 + $0x70] sm:$0xff]
      %v1262 = vld [vmem:[#allocation3 + $0x78] sm:$0xff]
      %v1263 = vld [vmem:[#allocation3 + $0x80] sm:$0xff]
      %v1264 = vld [vmem:[#allocation3 + $0x88] sm:$0xff]
      %v1265 = vld [vmem:[#allocation3 + $0x90] sm:$0xff]
      %v1266 = vld [vmem:[#allocation3 + $0x98] sm:$0xff]
      %v1267 = vld [vmem:[%s5] sm:$0xff]
      %v1268 = vld [vmem:[%s5 + $0x8] sm:$0xff]
      %v1269 = vld [vmem:[%s5 + $0x10] sm:$0xff]
      %v1270 = vld [vmem:[%s5 + $0x18] sm:$0xff]
      %v1271 = vld [vmem:[%s5 + $0x20] sm:$0xff]
      %v1272 = vld [vmem:[%s5 + $0x28] sm:$0xff]
      %v1273 = vld [vmem:[%s5 + $0x30] sm:$0xff]
      %v1274 = vld [vmem:[%s5 + $0x38] sm:$0xff]
      %v1275 = vld [vmem:[%s6] sm:$0xff]
      %v1276 = vld [vmem:[%s6 + $0x8] sm:$0xff]
      %v1277 = vld [vmem:[%s6 + $0x10] sm:$0xff]
      %v1278 = vld [vmem:[%s6 + $0x18] sm:$0xff]
      %1280 = vset.pattern.permute.xlu0 0
      %1281 = vperm.xlu0 %1280, %v1275
      %v1282 = vpop.permute.xlu0 %1281
      %1285 = vset.pattern.permute.xlu0 0
      %1286 = vperm.xlu0 %1285, %v1276
      %v1287 = vpop.permute.xlu0 %1286
      %1290 = vset.pattern.permute.xlu0 0
      %1291 = vperm.xlu0 %1290, %v1277
      %v1292 = vpop.permute.xlu0 %1291
      %1295 = vset.pattern.permute.xlu0 0
      %1296 = vperm.xlu0 %1295, %v1278
      %v1297 = vpop.permute.xlu0 %1296
      %v1300 = vsel %vm961, %v1268, 0
      %v1303 = vsel %vm961, %v1270, 0
      %v1306 = vsel %vm961, %v1272, 0
      %v1309 = vsel %vm961, %v1274, 0
      %1311 = vmatprep.subr.mxu0 0.0
      %1312 = vmatpush1.msra.mxu0 %v1247
      %1313 = vmatprep.subr.mxu0 0.0
      %1314 = vmatpush1.msra.mxu0 %v1248
      %1315 = vmatprep.subr.mxu0 0.0
      %1316 = vmatpush1.msra.mxu0 %v1249
      %1317 = vmatprep.subr.mxu0 0.0
      %1318 = vmatpush1.msra.mxu0 %v1250
      %1319 = vmatprep.subr.mxu0 0.0
      %1320 = vmatpush1.msra.mxu0 %v1251
      %1321 = vmatprep.subr.mxu0 0.0
      %1322 = vmatpush1.msra.mxu0 %v1252
      %1323 = vmatprep.subr.mxu0 0.0
      %1324 = vmatpush1.msra.mxu0 %v1253
      %1325 = vmatprep.subr.mxu0 0.0
      %1326 = vmatpush1.msra.mxu0 %v1254
      %1327 = vmatprep.subr.mxu0 0.0
      %1328 = vmatpush1.msra.mxu0 %v1255
      %1329 = vmatprep.subr.mxu0 0.0
      %1330 = vmatpush1.msra.mxu0 %v1256
      %1331 = vmatprep.subr.mxu0 0.0
      %1332 = vmatpush1.msra.mxu0 %v1257
      %1333 = vmatprep.subr.mxu0 0.0
      %1334 = vmatpush1.msra.mxu0 %v1258
      %1335 = vmatprep.subr.mxu0 0.0
      %1336 = vmatpush1.msra.mxu0 %v1259
      %1337 = vmatprep.subr.mxu0 0.0
      %1338 = vmatpush1.msra.mxu0 %v1260
      %1339 = vmatprep.subr.mxu0 0.0
      %1340 = vmatpush1.msra.mxu0 %v1261
      %1341 = vmatprep.subr.mxu0 0.0
      %1342 = vmatpush1.msra.mxu0 %v1262
      %1343 = vmatprep.subr.mxu0 0.0
      %1344 = vmatpush1.msra.mxu0 %v1263
      %1345 = vmatprep.subr.mxu0 0.0
      %1346 = vmatpush1.msra.mxu0 %v1264
      %1347 = vmatprep.subr.mxu0 0.0
      %1348 = vmatpush1.msra.mxu0 %v1265
      %1349 = vmatprep.subr.mxu0 0.0
      %1350 = vmatpush1.msra.mxu0 %v1266
      %1351 = vmatprep.subr.mxu0 0.0
      %1352 = vmatpush1.msra.mxu0 0.0
      %1353 = vmatprep.subr.mxu0 0.0
      %1354 = vmatpush1.msra.mxu0 0.0
      %1355 = vmatprep.subr.mxu0 0.0
      %1356 = vmatpush1.msra.mxu0 0.0
      %1357 = vmatprep.subr.mxu0 0.0
      %1358 = vmatpush1.msra.mxu0 0.0
      %1359 = vmatprep.subr.mxu0 0.0
      %1360 = vmatpush1.msra.mxu0 0.0
      %1361 = vmatprep.subr.mxu0 0.0
      %1362 = vmatpush1.msra.mxu0 0.0
      %1363 = vmatprep.subr.mxu0 0.0
      %1364 = vmatpush1.msra.mxu0 0.0
      %1365 = vmatprep.subr.mxu0 0.0
      %1366 = vmatpush1.msra.mxu0 0.0
      %1367 = vmatprep.subr.mxu0 0.0
      %1368 = vmatpush1.msra.mxu0 0.0
      %1369 = vmatprep.subr.mxu0 0.0
      %1370 = vmatpush1.msra.mxu0 0.0
      %1371 = vmatprep.subr.mxu0 0.0
      %1372 = vmatpush1.msra.mxu0 0.0
      %1373 = vmatprep.subr.mxu0 0.0
      %1374 = vmatpush1.msra.mxu0 0.0
      %1375 = vmatprep.mubr.f32.mxu0 %v1300
      %1376 = vmatmul.mubr.f32.gmra.mrb[0].mxu0 %v1267
      %v1377 = vpop.f32.mrb[0].mxu0
      %v1378 = vadd.f32 %v1282, %v1377
      %v1379 = vpop.f32.mrb[0].mxu0
      %1380 = vmatprep.mubr.f32.mxu0 %v1303
      %1381 = vmatmul.mubr.f32.gmra.mrb[0].mxu0 %v1269
      %v1382 = vpop.f32.mrb[0].mxu0
      %v1383 = vadd.f32 %v1287, %v1382
      %v1384 = vpop.f32.mrb[0].mxu0
      %1385 = vmatprep.mubr.f32.mxu0 %v1306
      %1386 = vmatmul.mubr.f32.gmra.mrb[0].mxu0 %v1271
      %v1387 = vpop.f32.mrb[0].mxu0
      %v1388 = vadd.f32 %v1292, %v1387
      %v1389 = vpop.f32.mrb[0].mxu0
      %1390 = vmatprep.mubr.f32.mxu0 %v1309
      %1391 = vmatmul.mubr.f32.gmra.mrb[0].mxu0 %v1273
      %v1392 = vpop.f32.mrb[0].mxu0
      %v1393 = vadd.f32 %v1297, %v1392
      %v1394 = vpop.f32.mrb[0].mxu0
      %1395 = vdwg.mxu0
      %vm1396 = vcmp.ge.f32.partialorder %v1378, 0.0
      %vm1397 = vcmp.ge.f32.partialorder %v1383, 0.0
      %vm1398 = vcmp.ge.f32.partialorder %v1388, 0.0
      %vm1399 = vcmp.ge.f32.partialorder %v1393, 0.0
      %v1400 = vmul.f32 %v1378, 0.01
      %v1401 = vmul.f32 %v1383, 0.01
      %v1402 = vmul.f32 %v1388, 0.01
      %v1403 = vmul.f32 %v1393, 0.01
      %v1404 = vsel %vm1396, %v1378, %v1400
      %v1405 = vsel %vm1397, %v1383, %v1401
      %v1406 = vsel %vm1398, %v1388, %v1402
      %v1407 = vsel %vm1399, %v1393, %v1403
      %v1408 = vsel %vm808, %v1404, 0.0
      %1409 = vadd.xlane.f32.xlu0 %v1408
      %v1410 = vpop.xlane.xlu0 %1409
      %v1411 = vsel %vm808, %v1405, 0.0
      %1412 = vadd.xlane.f32.xlu0 %v1411
      %v1413 = vpop.xlane.xlu0 %1412
      %v1414 = vsel %vm808, %v1406, 0.0
      %1415 = vadd.xlane.f32.xlu0 %v1414
      %v1416 = vpop.xlane.xlu0 %1415
      %v1417 = vsel %vm808, %v1407, 0.0
      %1418 = vadd.xlane.f32.xlu0 %v1417
      %v1419 = vpop.xlane.xlu0 %1418
      %v1420 = vrcp.pop 64.0
      %v1421 = vmul.f32 %v1410, %v1420
      %v1422 = vmul.f32 %v1413, %v1420
      %v1423 = vmul.f32 %v1416, %v1420
      %v1424 = vmul.f32 %v1419, %v1420
      %v1425 = vmul.f32 %v1404, %v1404
      %v1426 = vmul.f32 %v1405, %v1405
      %v1427 = vmul.f32 %v1406, %v1406
      %v1428 = vmul.f32 %v1407, %v1407
      %v1429 = vsel %vm808, %v1425, 0.0
      %1430 = vadd.xlane.f32.xlu0 %v1429
      %v1431 = vpop.xlane.xlu0 %1430
      %v1432 = vsel %vm808, %v1426, 0.0
      %1433 = vadd.xlane.f32.xlu0 %v1432
      %v1434 = vpop.xlane.xlu0 %1433
      %v1435 = vsel %vm808, %v1427, 0.0
      %1436 = vadd.xlane.f32.xlu0 %v1435
      %v1437 = vpop.xlane.xlu0 %1436
      %v1438 = vsel %vm808, %v1428, 0.0
      %1439 = vadd.xlane.f32.xlu0 %v1438
      %v1440 = vpop.xlane.xlu0 %1439
      %v1441 = vmul.f32 %v1431, %v1420
      %v1442 = vmul.f32 %v1434, %v1420
      %v1443 = vmul.f32 %v1437, %v1420
      %v1444 = vmul.f32 %v1440, %v1420
      %v1445 = vmul.f32 %v1421, %v1421
      %v1446 = vmul.f32 %v1422, %v1422
      %v1447 = vmul.f32 %v1423, %v1423
      %v1448 = vmul.f32 %v1424, %v1424
      %v1449 = vsub.f32 %v1441, %v1445
      %v1450 = vsub.f32 %v1442, %v1446
      %v1451 = vsub.f32 %v1443, %v1447
      %v1452 = vsub.f32 %v1444, %v1448
      %v1453 = vsub.f32 %v1404, %v1421
      %v1454 = vsub.f32 %v1405, %v1422
      %v1455 = vsub.f32 %v1406, %v1423
      %v1456 = vsub.f32 %v1407, %v1424
      %v1457 = vadd.f32 %v1449, 1e-05
      %v1458 = vadd.f32 %v1450, 1e-05
      %v1459 = vadd.f32 %v1451, 1e-05
      %v1460 = vadd.f32 %v1452, 1e-05
      %v1461 = vrsqrt.pop %v1457
      %v1462 = vrsqrt.pop %v1458
      %v1463 = vrsqrt.pop %v1459
      %v1464 = vrsqrt.pop %v1460
      %v1465 = vmul.f32 %v1453, %v1461
      %v1466 = vmul.f32 %v1454, %v1462
      %v1467 = vmul.f32 %v1455, %v1463
      %v1468 = vmul.f32 %v1456, %v1464
      %1473 = vrot.lane.b32.xlu0 %v1465, 2
      %v1474 = vpop.permute.xlu0 %1473
      %1475 = vrot.lane.b32.xlu0 %v1466, 2
      %v1476 = vpop.permute.xlu0 %1475
      %1477 = vrot.lane.b32.xlu0 %v1467, 2
      %v1478 = vpop.permute.xlu0 %1477
      %1479 = vrot.lane.b32.xlu0 %v1468, 2
      %v1480 = vpop.permute.xlu0 %1479
      %1485 = vst.msk [vmem:[#allocation2] sm:$0xff] %vm743, %v1474
      %1486 = vst.msk [vmem:[#allocation2 + $0x8] sm:$0xff] %vm743, %v1476
      %1487 = vst.msk [vmem:[#allocation2 + $0x10] sm:$0xff] %vm743, %v1478
      %1488 = vst.msk [vmem:[#allocation2 + $0x18] sm:$0xff] %vm743, %v1480
      %1489 = vrot.lane.b32.xlu0 %v1465, 126
      %v1490 = vpop.permute.xlu0 %1489
      %1491 = vrot.lane.b32.xlu0 %v1466, 126
      %v1492 = vpop.permute.xlu0 %1491
      %1493 = vrot.lane.b32.xlu0 %v1467, 126
      %v1494 = vpop.permute.xlu0 %1493
      %1495 = vrot.lane.b32.xlu0 %v1468, 126
      %v1496 = vpop.permute.xlu0 %1495
      %1501 = vst.msk [vmem:[#allocation2] sm:$0xff] %vm760, %v1490
      %1502 = vst.msk [vmem:[#allocation2 + $0x8] sm:$0xff] %vm760, %v1492
      %1503 = vst.msk [vmem:[#allocation2 + $0x10] sm:$0xff] %vm760, %v1494
      %1504 = vst.msk [vmem:[#allocation2 + $0x18] sm:$0xff] %vm760, %v1496
      %1505 = vrot.lane.b32.xlu0 %v1465, 4
      %v1506 = vpop.permute.xlu0 %1505
      %1507 = vrot.lane.b32.xlu0 %v1466, 4
      %v1508 = vpop.permute.xlu0 %1507
      %1509 = vrot.lane.b32.xlu0 %v1467, 4
      %v1510 = vpop.permute.xlu0 %1509
      %1511 = vrot.lane.b32.xlu0 %v1468, 4
      %v1512 = vpop.permute.xlu0 %1511
      %1517 = vst.msk [vmem:[#allocation2] sm:$0xff] %vm777, %v1506
      %1518 = vst.msk [vmem:[#allocation2 + $0x8] sm:$0xff] %vm777, %v1508
      %1519 = vst.msk [vmem:[#allocation2 + $0x10] sm:$0xff] %vm777, %v1510
      %1520 = vst.msk [vmem:[#allocation2 + $0x18] sm:$0xff] %vm777, %v1512
      %1521 = vst.msk [vmem:[#allocation2] sm:$0xff] %vm782, %v1465
      %1522 = vst.msk [vmem:[#allocation2 + $0x8] sm:$0xff] %vm782, %v1466
      %1523 = vst.msk [vmem:[#allocation2 + $0x10] sm:$0xff] %vm782, %v1467
      %1524 = vst.msk [vmem:[#allocation2 + $0x18] sm:$0xff] %vm782, %v1468
      %1525 = vrot.lane.b32.xlu0 %v1465, 6
      %v1526 = vpop.permute.xlu0 %1525
      %1527 = vrot.lane.b32.xlu0 %v1466, 6
      %v1528 = vpop.permute.xlu0 %1527
      %1529 = vrot.lane.b32.xlu0 %v1467, 6
      %v1530 = vpop.permute.xlu0 %1529
      %1531 = vrot.lane.b32.xlu0 %v1468, 6
      %v1532 = vpop.permute.xlu0 %1531
      %1537 = vst.msk [vmem:[#allocation2] sm:$0xff] %vm799, %v1526
      %1538 = vst.msk [vmem:[#allocation2 + $0x8] sm:$0xff] %vm799, %v1528
      %1539 = vst.msk [vmem:[#allocation2 + $0x10] sm:$0xff] %vm799, %v1530
      %1540 = vst.msk [vmem:[#allocation2 + $0x18] sm:$0xff] %vm799, %v1532
      %v1541 = vld [vmem:[#allocation2] sm:$0xff]
      %v1542 = vld [vmem:[#allocation2 + $0x8] sm:$0xff]
      %v1543 = vld [vmem:[#allocation2 + $0x10] sm:$0xff]
      %v1544 = vld [vmem:[#allocation2 + $0x18] sm:$0xff]
      %1545 = vst.msk [vmem:[#allocation3] sm:$0xff] %vm808, %v1541
      %1546 = vst.msk [vmem:[#allocation3 + $0x8] sm:$0xff] %vm808, %v1542
      %1547 = vst.msk [vmem:[#allocation3 + $0x10] sm:$0xff] %vm808, %v1543
      %1548 = vst.msk [vmem:[#allocation3 + $0x18] sm:$0xff] %vm808, %v1544
      %v1549 = vld [vmem:[#allocation2] sm:$0xff]
      %v1550 = vld [vmem:[#allocation2 + $0x8] sm:$0xff]
      %v1551 = vld [vmem:[#allocation2 + $0x10] sm:$0xff]
      %v1552 = vld [vmem:[#allocation2 + $0x18] sm:$0xff]
      %1557 = vrot.lane.b32.xlu0 %v1549, 127
      %v1558 = vpop.permute.xlu0 %1557
      %1559 = vrot.lane.b32.xlu0 %v1550, 127
      %v1560 = vpop.permute.xlu0 %1559
      %1561 = vrot.lane.b32.xlu0 %v1551, 127
      %v1562 = vpop.permute.xlu0 %1561
      %1563 = vrot.lane.b32.xlu0 %v1552, 127
      %v1564 = vpop.permute.xlu0 %1563
      %1569 = vst.msk [vmem:[#allocation3 + $0x20] sm:$0xff] %vm808, %v1558
      %1570 = vst.msk [vmem:[#allocation3 + $0x28] sm:$0xff] %vm808, %v1560
      %1571 = vst.msk [vmem:[#allocation3 + $0x30] sm:$0xff] %vm808, %v1562
      %1572 = vst.msk [vmem:[#allocation3 + $0x38] sm:$0xff] %vm808, %v1564
      %v1573 = vld [vmem:[#allocation2] sm:$0xff]
      %v1574 = vld [vmem:[#allocation2 + $0x8] sm:$0xff]
      %v1575 = vld [vmem:[#allocation2 + $0x10] sm:$0xff]
      %v1576 = vld [vmem:[#allocation2 + $0x18] sm:$0xff]
      %1581 = vrot.lane.b32.xlu0 %v1573, 126
      %v1582 = vpop.permute.xlu0 %1581
      %1583 = vrot.lane.b32.xlu0 %v1574, 126
      %v1584 = vpop.permute.xlu0 %1583
      %1585 = vrot.lane.b32.xlu0 %v1575, 126
      %v1586 = vpop.permute.xlu0 %1585
      %1587 = vrot.lane.b32.xlu0 %v1576, 126
      %v1588 = vpop.permute.xlu0 %1587
      %1593 = vst.msk [vmem:[#allocation3 + $0x40] sm:$0xff] %vm808, %v1582
      %1594 = vst.msk [vmem:[#allocation3 + $0x48] sm:$0xff] %vm808, %v1584
      %1595 = vst.msk [vmem:[#allocation3 + $0x50] sm:$0xff] %vm808, %v1586
      %1596 = vst.msk [vmem:[#allocation3 + $0x58] sm:$0xff] %vm808, %v1588
      %v1597 = vld [vmem:[#allocation2] sm:$0xff]
      %v1598 = vld [vmem:[#allocation2 + $0x8] sm:$0xff]
      %v1599 = vld [vmem:[#allocation2 + $0x10] sm:$0xff]
      %v1600 = vld [vmem:[#allocation2 + $0x18] sm:$0xff]
      %1605 = vrot.lane.b32.xlu0 %v1597, 125
      %v1606 = vpop.permute.xlu0 %1605
      %1607 = vrot.lane.b32.xlu0 %v1598, 125
      %v1608 = vpop.permute.xlu0 %1607
      %1609 = vrot.lane.b32.xlu0 %v1599, 125
      %v1610 = vpop.permute.xlu0 %1609
      %1611 = vrot.lane.b32.xlu0 %v1600, 125
      %v1612 = vpop.permute.xlu0 %1611
      %1617 = vst.msk [vmem:[#allocation3 + $0x60] sm:$0xff] %vm808, %v1606
      %1618 = vst.msk [vmem:[#allocation3 + $0x68] sm:$0xff] %vm808, %v1608
      %1619 = vst.msk [vmem:[#allocation3 + $0x70] sm:$0xff] %vm808, %v1610
      %1620 = vst.msk [vmem:[#allocation3 + $0x78] sm:$0xff] %vm808, %v1612
      %v1621 = vld [vmem:[#allocation2] sm:$0xff]
      %v1622 = vld [vmem:[#allocation2 + $0x8] sm:$0xff]
      %v1623 = vld [vmem:[#allocation2 + $0x10] sm:$0xff]
      %v1624 = vld [vmem:[#allocation2 + $0x18] sm:$0xff]
      %1629 = vrot.lane.b32.xlu0 %v1621, 124
      %v1630 = vpop.permute.xlu0 %1629
      %1631 = vrot.lane.b32.xlu0 %v1622, 124
      %v1632 = vpop.permute.xlu0 %1631
      %1633 = vrot.lane.b32.xlu0 %v1623, 124
      %v1634 = vpop.permute.xlu0 %1633
      %1635 = vrot.lane.b32.xlu0 %v1624, 124
      %v1636 = vpop.permute.xlu0 %1635
      %1641 = vst.msk [vmem:[#allocation3 + $0x80] sm:$0xff] %vm808, %v1630
      %1642 = vst.msk [vmem:[#allocation3 + $0x88] sm:$0xff] %vm808, %v1632
      %1643 = vst.msk [vmem:[#allocation3 + $0x90] sm:$0xff] %vm808, %v1634
      %1644 = vst.msk [vmem:[#allocation3 + $0x98] sm:$0xff] %vm808, %v1636
      %v1645 = vld [vmem:[#allocation3] sm:$0xff]
      %v1646 = vld [vmem:[#allocation3 + $0x8] sm:$0xff]
      %v1647 = vld [vmem:[#allocation3 + $0x10] sm:$0xff]
      %v1648 = vld [vmem:[#allocation3 + $0x18] sm:$0xff]
      %v1649 = vld [vmem:[#allocation3 + $0x20] sm:$0xff]
      %v1650 = vld [vmem:[#allocation3 + $0x28] sm:$0xff]
      %v1651 = vld [vmem:[#allocation3 + $0x30] sm:$0xff]
      %v1652 = vld [vmem:[#allocation3 + $0x38] sm:$0xff]
      %v1653 = vld [vmem:[#allocation3 + $0x40] sm:$0xff]
      %v1654 = vld [vmem:[#allocation3 + $0x48] sm:$0xff]
      %v1655 = vld [vmem:[#allocation3 + $0x50] sm:$0xff]
      %v1656 = vld [vmem:[#allocation3 + $0x58] sm:$0xff]
      %v1657 = vld [vmem:[#allocation3 + $0x60] sm:$0xff]
      %v1658 = vld [vmem:[#allocation3 + $0x68] sm:$0xff]
      %v1659 = vld [vmem:[#allocation3 + $0x70] sm:$0xff]
      %v1660 = vld [vmem:[#allocation3 + $0x78] sm:$0xff]
      %v1661 = vld [vmem:[#allocation3 + $0x80] sm:$0xff]
      %v1662 = vld [vmem:[#allocation3 + $0x88] sm:$0xff]
      %v1663 = vld [vmem:[#allocation3 + $0x90] sm:$0xff]
      %v1664 = vld [vmem:[#allocation3 + $0x98] sm:$0xff]
      %v1665 = vld [vmem:[%s7] sm:$0xff]
      %v1666 = vld [vmem:[%s7 + $0x8] sm:$0xff]
      %v1667 = vld [vmem:[%s7 + $0x10] sm:$0xff]
      %v1668 = vld [vmem:[%s7 + $0x18] sm:$0xff]
      %v1669 = vld [vmem:[%s7 + $0x20] sm:$0xff]
      %v1670 = vld [vmem:[%s7 + $0x28] sm:$0xff]
      %v1671 = vld [vmem:[%s7 + $0x30] sm:$0xff]
      %v1672 = vld [vmem:[%s7 + $0x38] sm:$0xff]
      %v1673 = vld [vmem:[%s8] sm:$0xff]
      %v1674 = vld [vmem:[%s8 + $0x8] sm:$0xff]
      %v1675 = vld [vmem:[%s8 + $0x10] sm:$0xff]
      %v1676 = vld [vmem:[%s8 + $0x18] sm:$0xff]
      %1678 = vset.pattern.permute.xlu0 0
      %1679 = vperm.xlu0 %1678, %v1673
      %v1680 = vpop.permute.xlu0 %1679
      %1683 = vset.pattern.permute.xlu0 0
      %1684 = vperm.xlu0 %1683, %v1674
      %v1685 = vpop.permute.xlu0 %1684
      %1688 = vset.pattern.permute.xlu0 0
      %1689 = vperm.xlu0 %1688, %v1675
      %v1690 = vpop.permute.xlu0 %1689
      %1693 = vset.pattern.permute.xlu0 0
      %1694 = vperm.xlu0 %1693, %v1676
      %v1695 = vpop.permute.xlu0 %1694
      %v1698 = vsel %vm961, %v1666, 0
      %v1701 = vsel %vm961, %v1668, 0
      %v1704 = vsel %vm961, %v1670, 0
      %v1707 = vsel %vm961, %v1672, 0
      %1709 = vmatprep.subr.mxu0 0.0
      %1710 = vmatpush1.msra.mxu0 %v1645
      %1711 = vmatprep.subr.mxu0 0.0
      %1712 = vmatpush1.msra.mxu0 %v1646
      %1713 = vmatprep.subr.mxu0 0.0
      %1714 = vmatpush1.msra.mxu0 %v1647
      %1715 = vmatprep.subr.mxu0 0.0
      %1716 = vmatpush1.msra.mxu0 %v1648
      %1717 = vmatprep.subr.mxu0 0.0
      %1718 = vmatpush1.msra.mxu0 %v1649
      %1719 = vmatprep.subr.mxu0 0.0
      %1720 = vmatpush1.msra.mxu0 %v1650
      %1721 = vmatprep.subr.mxu0 0.0
      %1722 = vmatpush1.msra.mxu0 %v1651
      %1723 = vmatprep.subr.mxu0 0.0
      %1724 = vmatpush1.msra.mxu0 %v1652
      %1725 = vmatprep.subr.mxu0 0.0
      %1726 = vmatpush1.msra.mxu0 %v1653
      %1727 = vmatprep.subr.mxu0 0.0
      %1728 = vmatpush1.msra.mxu0 %v1654
      %1729 = vmatprep.subr.mxu0 0.0
      %1730 = vmatpush1.msra.mxu0 %v1655
      %1731 = vmatprep.subr.mxu0 0.0
      %1732 = vmatpush1.msra.mxu0 %v1656
      %1733 = vmatprep.subr.mxu0 0.0
      %1734 = vmatpush1.msra.mxu0 %v1657
      %1735 = vmatprep.subr.mxu0 0.0
      %1736 = vmatpush1.msra.mxu0 %v1658
      %1737 = vmatprep.subr.mxu0 0.0
      %1738 = vmatpush1.msra.mxu0 %v1659
      %1739 = vmatprep.subr.mxu0 0.0
      %1740 = vmatpush1.msra.mxu0 %v1660
      %1741 = vmatprep.subr.mxu0 0.0
      %1742 = vmatpush1.msra.mxu0 %v1661
      %1743 = vmatprep.subr.mxu0 0.0
      %1744 = vmatpush1.msra.mxu0 %v1662
      %1745 = vmatprep.subr.mxu0 0.0
      %1746 = vmatpush1.msra.mxu0 %v1663
      %1747 = vmatprep.subr.mxu0 0.0
      %1748 = vmatpush1.msra.mxu0 %v1664
      %1749 = vmatprep.subr.mxu0 0.0
      %1750 = vmatpush1.msra.mxu0 0.0
      %1751 = vmatprep.subr.mxu0 0.0
      %1752 = vmatpush1.msra.mxu0 0.0
      %1753 = vmatprep.subr.mxu0 0.0
      %1754 = vmatpush1.msra.mxu0 0.0
      %1755 = vmatprep.subr.mxu0 0.0
      %1756 = vmatpush1.msra.mxu0 0.0
      %1757 = vmatprep.subr.mxu0 0.0
      %1758 = vmatpush1.msra.mxu0 0.0
      %1759 = vmatprep.subr.mxu0 0.0
      %1760 = vmatpush1.msra.mxu0 0.0
      %1761 = vmatprep.subr.mxu0 0.0
      %1762 = vmatpush1.msra.mxu0 0.0
      %1763 = vmatprep.subr.mxu0 0.0
      %1764 = vmatpush1.msra.mxu0 0.0
      %1765 = vmatprep.subr.mxu0 0.0
      %1766 = vmatpush1.msra.mxu0 0.0
      %1767 = vmatprep.subr.mxu0 0.0
      %1768 = vmatpush1.msra.mxu0 0.0
      %1769 = vmatprep.subr.mxu0 0.0
      %1770 = vmatpush1.msra.mxu0 0.0
      %1771 = vmatprep.subr.mxu0 0.0
      %1772 = vmatpush1.msra.mxu0 0.0
      %1773 = vmatprep.mubr.f32.mxu0 %v1698
      %1774 = vmatmul.mubr.f32.gmra.mrb[0].mxu0 %v1665
      %v1775 = vpop.f32.mrb[0].mxu0
      %v1776 = vadd.f32 %v1680, %v1775
      %v1777 = vpop.f32.mrb[0].mxu0
      %1778 = vmatprep.mubr.f32.mxu0 %v1701
      %1779 = vmatmul.mubr.f32.gmra.mrb[0].mxu0 %v1667
      %v1780 = vpop.f32.mrb[0].mxu0
      %v1781 = vadd.f32 %v1685, %v1780
      %v1782 = vpop.f32.mrb[0].mxu0
      %1783 = vmatprep.mubr.f32.mxu0 %v1704
      %1784 = vmatmul.mubr.f32.gmra.mrb[0].mxu0 %v1669
      %v1785 = vpop.f32.mrb[0].mxu0
      %v1786 = vadd.f32 %v1690, %v1785
      %v1787 = vpop.f32.mrb[0].mxu0
      %1788 = vmatprep.mubr.f32.mxu0 %v1707
      %1789 = vmatmul.mubr.f32.gmra.mrb[0].mxu0 %v1671
      %v1790 = vpop.f32.mrb[0].mxu0
      %v1791 = vadd.f32 %v1695, %v1790
      %v1792 = vpop.f32.mrb[0].mxu0
      %1793 = vdwg.mxu0
      %vm1794 = vcmp.ge.f32.partialorder %v1776, 0.0
      %vm1795 = vcmp.ge.f32.partialorder %v1781, 0.0
      %vm1796 = vcmp.ge.f32.partialorder %v1786, 0.0
      %vm1797 = vcmp.ge.f32.partialorder %v1791, 0.0
      %v1798 = vmul.f32 %v1776, 0.01
      %v1799 = vmul.f32 %v1781, 0.01
      %v1800 = vmul.f32 %v1786, 0.01
      %v1801 = vmul.f32 %v1791, 0.01
      %v1802 = vsel %vm1794, %v1776, %v1798
      %v1803 = vsel %vm1795, %v1781, %v1799
      %v1804 = vsel %vm1796, %v1786, %v1800
      %v1805 = vsel %vm1797, %v1791, %v1801
      %1810 = vrot.lane.b32.xlu0 %v1802, 2
      %v1811 = vpop.permute.xlu0 %1810
      %1812 = vrot.lane.b32.xlu0 %v1803, 2
      %v1813 = vpop.permute.xlu0 %1812
      %1814 = vrot.lane.b32.xlu0 %v1804, 2
      %v1815 = vpop.permute.xlu0 %1814
      %1816 = vrot.lane.b32.xlu0 %v1805, 2
      %v1817 = vpop.permute.xlu0 %1816
      %1822 = vst.msk [vmem:[#allocation2] sm:$0xff] %vm743, %v1811
      %1823 = vst.msk [vmem:[#allocation2 + $0x8] sm:$0xff] %vm743, %v1813
      %1824 = vst.msk [vmem:[#allocation2 + $0x10] sm:$0xff] %vm743, %v1815
      %1825 = vst.msk [vmem:[#allocation2 + $0x18] sm:$0xff] %vm743, %v1817
      %1826 = vrot.lane.b32.xlu0 %v1802, 126
      %v1827 = vpop.permute.xlu0 %1826
      %1828 = vrot.lane.b32.xlu0 %v1803, 126
      %v1829 = vpop.permute.xlu0 %1828
      %1830 = vrot.lane.b32.xlu0 %v1804, 126
      %v1831 = vpop.permute.xlu0 %1830
      %1832 = vrot.lane.b32.xlu0 %v1805, 126
      %v1833 = vpop.permute.xlu0 %1832
      %1838 = vst.msk [vmem:[#allocation2] sm:$0xff] %vm760, %v1827
      %1839 = vst.msk [vmem:[#allocation2 + $0x8] sm:$0xff] %vm760, %v1829
      %1840 = vst.msk [vmem:[#allocation2 + $0x10] sm:$0xff] %vm760, %v1831
      %1841 = vst.msk [vmem:[#allocation2 + $0x18] sm:$0xff] %vm760, %v1833
      %1842 = vrot.lane.b32.xlu0 %v1802, 4
      %v1843 = vpop.permute.xlu0 %1842
      %1844 = vrot.lane.b32.xlu0 %v1803, 4
      %v1845 = vpop.permute.xlu0 %1844
      %1846 = vrot.lane.b32.xlu0 %v1804, 4
      %v1847 = vpop.permute.xlu0 %1846
      %1848 = vrot.lane.b32.xlu0 %v1805, 4
      %v1849 = vpop.permute.xlu0 %1848
      %1854 = vst.msk [vmem:[#allocation2] sm:$0xff] %vm777, %v1843
      %1855 = vst.msk [vmem:[#allocation2 + $0x8] sm:$0xff] %vm777, %v1845
      %1856 = vst.msk [vmem:[#allocation2 + $0x10] sm:$0xff] %vm777, %v1847
      %1857 = vst.msk [vmem:[#allocation2 + $0x18] sm:$0xff] %vm777, %v1849
      %1858 = vst.msk [vmem:[#allocation2] sm:$0xff] %vm782, %v1802
      %1859 = vst.msk [vmem:[#allocation2 + $0x8] sm:$0xff] %vm782, %v1803
      %1860 = vst.msk [vmem:[#allocation2 + $0x10] sm:$0xff] %vm782, %v1804
      %1861 = vst.msk [vmem:[#allocation2 + $0x18] sm:$0xff] %vm782, %v1805
      %1862 = vrot.lane.b32.xlu0 %v1802, 6
      %v1863 = vpop.permute.xlu0 %1862
      %1864 = vrot.lane.b32.xlu0 %v1803, 6
      %v1865 = vpop.permute.xlu0 %1864
      %1866 = vrot.lane.b32.xlu0 %v1804, 6
      %v1867 = vpop.permute.xlu0 %1866
      %1868 = vrot.lane.b32.xlu0 %v1805, 6
      %v1869 = vpop.permute.xlu0 %1868
      %1874 = vst.msk [vmem:[#allocation2] sm:$0xff] %vm799, %v1863
      %1875 = vst.msk [vmem:[#allocation2 + $0x8] sm:$0xff] %vm799, %v1865
      %1876 = vst.msk [vmem:[#allocation2 + $0x10] sm:$0xff] %vm799, %v1867
      %1877 = vst.msk [vmem:[#allocation2 + $0x18] sm:$0xff] %vm799, %v1869
      %v1878 = vld [vmem:[#allocation2] sm:$0xff]
      %v1879 = vld [vmem:[#allocation2 + $0x8] sm:$0xff]
      %v1880 = vld [vmem:[#allocation2 + $0x10] sm:$0xff]
      %v1881 = vld [vmem:[#allocation2 + $0x18] sm:$0xff]
      %1882 = vst.msk [vmem:[#allocation3] sm:$0xff] %vm808, %v1878
      %1883 = vst.msk [vmem:[#allocation3 + $0x8] sm:$0xff] %vm808, %v1879
      %1884 = vst.msk [vmem:[#allocation3 + $0x10] sm:$0xff] %vm808, %v1880
      %1885 = vst.msk [vmem:[#allocation3 + $0x18] sm:$0xff] %vm808, %v1881
      %v1886 = vld [vmem:[#allocation2] sm:$0xff]
      %v1887 = vld [vmem:[#allocation2 + $0x8] sm:$0xff]
      %v1888 = vld [vmem:[#allocation2 + $0x10] sm:$0xff]
      %v1889 = vld [vmem:[#allocation2 + $0x18] sm:$0xff]
      %1894 = vrot.lane.b32.xlu0 %v1886, 127
      %v1895 = vpop.permute.xlu0 %1894
      %1896 = vrot.lane.b32.xlu0 %v1887, 127
      %v1897 = vpop.permute.xlu0 %1896
      %1898 = vrot.lane.b32.xlu0 %v1888, 127
      %v1899 = vpop.permute.xlu0 %1898
      %1900 = vrot.lane.b32.xlu0 %v1889, 127
      %v1901 = vpop.permute.xlu0 %1900
      %1906 = vst.msk [vmem:[#allocation3 + $0x20] sm:$0xff] %vm808, %v1895
      %1907 = vst.msk [vmem:[#allocation3 + $0x28] sm:$0xff] %vm808, %v1897
      %1908 = vst.msk [vmem:[#allocation3 + $0x30] sm:$0xff] %vm808, %v1899
      %1909 = vst.msk [vmem:[#allocation3 + $0x38] sm:$0xff] %vm808, %v1901
      %v1910 = vld [vmem:[#allocation2] sm:$0xff]
      %v1911 = vld [vmem:[#allocation2 + $0x8] sm:$0xff]
      %v1912 = vld [vmem:[#allocation2 + $0x10] sm:$0xff]
      %v1913 = vld [vmem:[#allocation2 + $0x18] sm:$0xff]
      %1918 = vrot.lane.b32.xlu0 %v1910, 126
      %v1919 = vpop.permute.xlu0 %1918
      %1920 = vrot.lane.b32.xlu0 %v1911, 126
      %v1921 = vpop.permute.xlu0 %1920
      %1922 = vrot.lane.b32.xlu0 %v1912, 126
      %v1923 = vpop.permute.xlu0 %1922
      %1924 = vrot.lane.b32.xlu0 %v1913, 126
      %v1925 = vpop.permute.xlu0 %1924
      %1930 = vst.msk [vmem:[#allocation3 + $0x40] sm:$0xff] %vm808, %v1919
      %1931 = vst.msk [vmem:[#allocation3 + $0x48] sm:$0xff] %vm808, %v1921
      %1932 = vst.msk [vmem:[#allocation3 + $0x50] sm:$0xff] %vm808, %v1923
      %1933 = vst.msk [vmem:[#allocation3 + $0x58] sm:$0xff] %vm808, %v1925
      %v1934 = vld [vmem:[#allocation2] sm:$0xff]
      %v1935 = vld [vmem:[#allocation2 + $0x8] sm:$0xff]
      %v1936 = vld [vmem:[#allocation2 + $0x10] sm:$0xff]
      %v1937 = vld [vmem:[#allocation2 + $0x18] sm:$0xff]
      %1942 = vrot.lane.b32.xlu0 %v1934, 125
      %v1943 = vpop.permute.xlu0 %1942
      %1944 = vrot.lane.b32.xlu0 %v1935, 125
      %v1945 = vpop.permute.xlu0 %1944
      %1946 = vrot.lane.b32.xlu0 %v1936, 125
      %v1947 = vpop.permute.xlu0 %1946
      %1948 = vrot.lane.b32.xlu0 %v1937, 125
      %v1949 = vpop.permute.xlu0 %1948
      %1954 = vst.msk [vmem:[#allocation3 + $0x60] sm:$0xff] %vm808, %v1943
      %1955 = vst.msk [vmem:[#allocation3 + $0x68] sm:$0xff] %vm808, %v1945
      %1956 = vst.msk [vmem:[#allocation3 + $0x70] sm:$0xff] %vm808, %v1947
      %1957 = vst.msk [vmem:[#allocation3 + $0x78] sm:$0xff] %vm808, %v1949
      %v1958 = vld [vmem:[#allocation2] sm:$0xff]
      %v1959 = vld [vmem:[#allocation2 + $0x8] sm:$0xff]
      %v1960 = vld [vmem:[#allocation2 + $0x10] sm:$0xff]
      %v1961 = vld [vmem:[#allocation2 + $0x18] sm:$0xff]
      %1966 = vrot.lane.b32.xlu0 %v1958, 124
      %v1967 = vpop.permute.xlu0 %1966
      %1968 = vrot.lane.b32.xlu0 %v1959, 124
      %v1969 = vpop.permute.xlu0 %1968
      %1970 = vrot.lane.b32.xlu0 %v1960, 124
      %v1971 = vpop.permute.xlu0 %1970
      %1972 = vrot.lane.b32.xlu0 %v1961, 124
      %v1973 = vpop.permute.xlu0 %1972
      %1978 = vst.msk [vmem:[#allocation3 + $0x80] sm:$0xff] %vm808, %v1967
      %1979 = vst.msk [vmem:[#allocation3 + $0x88] sm:$0xff] %vm808, %v1969
      %1980 = vst.msk [vmem:[#allocation3 + $0x90] sm:$0xff] %vm808, %v1971
      %1981 = vst.msk [vmem:[#allocation3 + $0x98] sm:$0xff] %vm808, %v1973
      %v1982 = vld [vmem:[#allocation3] sm:$0xff]
      %v1983 = vld [vmem:[#allocation3 + $0x8] sm:$0xff]
      %v1984 = vld [vmem:[#allocation3 + $0x10] sm:$0xff]
      %v1985 = vld [vmem:[#allocation3 + $0x18] sm:$0xff]
      %v1986 = vld [vmem:[#allocation3 + $0x20] sm:$0xff]
      %v1987 = vld [vmem:[#allocation3 + $0x28] sm:$0xff]
      %v1988 = vld [vmem:[#allocation3 + $0x30] sm:$0xff]
      %v1989 = vld [vmem:[#allocation3 + $0x38] sm:$0xff]
      %v1990 = vld [vmem:[#allocation3 + $0x40] sm:$0xff]
      %v1991 = vld [vmem:[#allocation3 + $0x48] sm:$0xff]
      %v1992 = vld [vmem:[#allocation3 + $0x50] sm:$0xff]
      %v1993 = vld [vmem:[#allocation3 + $0x58] sm:$0xff]
      %v1994 = vld [vmem:[#allocation3 + $0x60] sm:$0xff]
      %v1995 = vld [vmem:[#allocation3 + $0x68] sm:$0xff]
      %v1996 = vld [vmem:[#allocation3 + $0x70] sm:$0xff]
      %v1997 = vld [vmem:[#allocation3 + $0x78] sm:$0xff]
      %v1998 = vld [vmem:[#allocation3 + $0x80] sm:$0xff]
      %v1999 = vld [vmem:[#allocation3 + $0x88] sm:$0xff]
      %v2000 = vld [vmem:[#allocation3 + $0x90] sm:$0xff]
      %v2001 = vld [vmem:[#allocation3 + $0x98] sm:$0xff]
      %v2002 = vld [vmem:[%s9] sm:$0xff]
      %v2003 = vld [vmem:[%s9 + $0x8] sm:$0xff]
      %v2004 = vld [vmem:[%s9 + $0x10] sm:$0xff]
      %v2005 = vld [vmem:[%s9 + $0x18] sm:$0xff]
      %v2006 = vld [vmem:[%s9 + $0x20] sm:$0xff]
      %v2007 = vld [vmem:[%s9 + $0x28] sm:$0xff]
      %v2008 = vld [vmem:[%s9 + $0x30] sm:$0xff]
      %v2009 = vld [vmem:[%s9 + $0x38] sm:$0xff]
      %v2010 = vld [vmem:[%s10] sm:$0xff]
      %v2011 = vld [vmem:[%s10 + $0x8] sm:$0xff]
      %v2012 = vld [vmem:[%s10 + $0x10] sm:$0xff]
      %v2013 = vld [vmem:[%s10 + $0x18] sm:$0xff]
      %2015 = vset.pattern.permute.xlu0 0
      %2016 = vperm.xlu0 %2015, %v2010
      %v2017 = vpop.permute.xlu0 %2016
      %2020 = vset.pattern.permute.xlu0 0
      %2021 = vperm.xlu0 %2020, %v2011
      %v2022 = vpop.permute.xlu0 %2021
      %2025 = vset.pattern.permute.xlu0 0
      %2026 = vperm.xlu0 %2025, %v2012
      %v2027 = vpop.permute.xlu0 %2026
      %2030 = vset.pattern.permute.xlu0 0
      %2031 = vperm.xlu0 %2030, %v2013
      %v2032 = vpop.permute.xlu0 %2031
      %v2035 = vsel %vm961, %v2003, 0
      %v2038 = vsel %vm961, %v2005, 0
      %v2041 = vsel %vm961, %v2007, 0
      %v2044 = vsel %vm961, %v2009, 0
      %2046 = vmatprep.subr.mxu0 0.0
      %2047 = vmatpush1.msra.mxu0 %v1982
      %2048 = vmatprep.subr.mxu0 0.0
      %2049 = vmatpush1.msra.mxu0 %v1983
      %2050 = vmatprep.subr.mxu0 0.0
      %2051 = vmatpush1.msra.mxu0 %v1984
      %2052 = vmatprep.subr.mxu0 0.0
      %2053 = vmatpush1.msra.mxu0 %v1985
      %2054 = vmatprep.subr.mxu0 0.0
      %2055 = vmatpush1.msra.mxu0 %v1986
      %2056 = vmatprep.subr.mxu0 0.0
      %2057 = vmatpush1.msra.mxu0 %v1987
      %2058 = vmatprep.subr.mxu0 0.0
      %2059 = vmatpush1.msra.mxu0 %v1988
      %2060 = vmatprep.subr.mxu0 0.0
      %2061 = vmatpush1.msra.mxu0 %v1989
      %2062 = vmatprep.subr.mxu0 0.0
      %2063 = vmatpush1.msra.mxu0 %v1990
      %2064 = vmatprep.subr.mxu0 0.0
      %2065 = vmatpush1.msra.mxu0 %v1991
      %2066 = vmatprep.subr.mxu0 0.0
      %2067 = vmatpush1.msra.mxu0 %v1992
      %2068 = vmatprep.subr.mxu0 0.0
      %2069 = vmatpush1.msra.mxu0 %v1993
      %2070 = vmatprep.subr.mxu0 0.0
      %2071 = vmatpush1.msra.mxu0 %v1994
      %2072 = vmatprep.subr.mxu0 0.0
      %2073 = vmatpush1.msra.mxu0 %v1995
      %2074 = vmatprep.subr.mxu0 0.0
      %2075 = vmatpush1.msra.mxu0 %v1996
      %2076 = vmatprep.subr.mxu0 0.0
      %2077 = vmatpush1.msra.mxu0 %v1997
      %2078 = vmatprep.subr.mxu0 0.0
      %2079 = vmatpush1.msra.mxu0 %v1998
      %2080 = vmatprep.subr.mxu0 0.0
      %2081 = vmatpush1.msra.mxu0 %v1999
      %2082 = vmatprep.subr.mxu0 0.0
      %2083 = vmatpush1.msra.mxu0 %v2000
      %2084 = vmatprep.subr.mxu0 0.0
      %2085 = vmatpush1.msra.mxu0 %v2001
      %2086 = vmatprep.subr.mxu0 0.0
      %2087 = vmatpush1.msra.mxu0 0.0
      %2088 = vmatprep.subr.mxu0 0.0
      %2089 = vmatpush1.msra.mxu0 0.0
      %2090 = vmatprep.subr.mxu0 0.0
      %2091 = vmatpush1.msra.mxu0 0.0
      %2092 = vmatprep.subr.mxu0 0.0
      %2093 = vmatpush1.msra.mxu0 0.0
      %2094 = vmatprep.subr.mxu0 0.0
      %2095 = vmatpush1.msra.mxu0 0.0
      %2096 = vmatprep.subr.mxu0 0.0
      %2097 = vmatpush1.msra.mxu0 0.0
      %2098 = vmatprep.subr.mxu0 0.0
      %2099 = vmatpush1.msra.mxu0 0.0
      %2100 = vmatprep.subr.mxu0 0.0
      %2101 = vmatpush1.msra.mxu0 0.0
      %2102 = vmatprep.subr.mxu0 0.0
      %2103 = vmatpush1.msra.mxu0 0.0
      %2104 = vmatprep.subr.mxu0 0.0
      %2105 = vmatpush1.msra.mxu0 0.0
      %2106 = vmatprep.subr.mxu0 0.0
      %2107 = vmatpush1.msra.mxu0 0.0
      %2108 = vmatprep.subr.mxu0 0.0
      %2109 = vmatpush1.msra.mxu0 0.0
      %2110 = vmatprep.mubr.f32.mxu0 %v2035
      %2111 = vmatmul.mubr.f32.gmra.mrb[0].mxu0 %v2002
      %v2112 = vpop.f32.mrb[0].mxu0
      %v2113 = vadd.f32 %v2017, %v2112
      %v2114 = vpop.f32.mrb[0].mxu0
      %2115 = vmatprep.mubr.f32.mxu0 %v2038
      %2116 = vmatmul.mubr.f32.gmra.mrb[0].mxu0 %v2004
      %v2117 = vpop.f32.mrb[0].mxu0
      %v2118 = vadd.f32 %v2022, %v2117
      %v2119 = vpop.f32.mrb[0].mxu0
      %2120 = vmatprep.mubr.f32.mxu0 %v2041
      %2121 = vmatmul.mubr.f32.gmra.mrb[0].mxu0 %v2006
      %v2122 = vpop.f32.mrb[0].mxu0
      %v2123 = vadd.f32 %v2027, %v2122
      %v2124 = vpop.f32.mrb[0].mxu0
      %2125 = vmatprep.mubr.f32.mxu0 %v2044
      %2126 = vmatmul.mubr.f32.gmra.mrb[0].mxu0 %v2008
      %v2127 = vpop.f32.mrb[0].mxu0
      %v2128 = vadd.f32 %v2032, %v2127
      %v2129 = vpop.f32.mrb[0].mxu0
      %2130 = vdwg.mxu0
      %vm2131 = vcmp.ge.f32.partialorder %v2113, 0.0
      %vm2132 = vcmp.ge.f32.partialorder %v2118, 0.0
      %vm2133 = vcmp.ge.f32.partialorder %v2123, 0.0
      %vm2134 = vcmp.ge.f32.partialorder %v2128, 0.0
      %v2135 = vmul.f32 %v2113, 0.01
      %v2136 = vmul.f32 %v2118, 0.01
      %v2137 = vmul.f32 %v2123, 0.01
      %v2138 = vmul.f32 %v2128, 0.01
      %v2139 = vsel %vm2131, %v2113, %v2135
      %v2140 = vsel %vm2132, %v2118, %v2136
      %v2141 = vsel %vm2133, %v2123, %v2137
      %v2142 = vsel %vm2134, %v2128, %v2138
      %v2143 = vsel %vm808, %v2139, 0.0
      %2144 = vadd.xlane.f32.xlu0 %v2143
      %v2145 = vpop.xlane.xlu0 %2144
      %v2146 = vsel %vm808, %v2140, 0.0
      %2147 = vadd.xlane.f32.xlu0 %v2146
      %v2148 = vpop.xlane.xlu0 %2147
      %v2149 = vsel %vm808, %v2141, 0.0
      %2150 = vadd.xlane.f32.xlu0 %v2149
      %v2151 = vpop.xlane.xlu0 %2150
      %v2152 = vsel %vm808, %v2142, 0.0
      %2153 = vadd.xlane.f32.xlu0 %v2152
      %v2154 = vpop.xlane.xlu0 %2153
      %v2155 = vmul.f32 %v2145, %v1420
      %v2156 = vmul.f32 %v2148, %v1420
      %v2157 = vmul.f32 %v2151, %v1420
      %v2158 = vmul.f32 %v2154, %v1420
      %v2159 = vmul.f32 %v2139, %v2139
      %v2160 = vmul.f32 %v2140, %v2140
      %v2161 = vmul.f32 %v2141, %v2141
      %v2162 = vmul.f32 %v2142, %v2142
      %v2163 = vsel %vm808, %v2159, 0.0
      %2164 = vadd.xlane.f32.xlu0 %v2163
      %v2165 = vpop.xlane.xlu0 %2164
      %v2166 = vsel %vm808, %v2160, 0.0
      %2167 = vadd.xlane.f32.xlu0 %v2166
      %v2168 = vpop.xlane.xlu0 %2167
      %v2169 = vsel %vm808, %v2161, 0.0
      %2170 = vadd.xlane.f32.xlu0 %v2169
      %v2171 = vpop.xlane.xlu0 %2170
      %v2172 = vsel %vm808, %v2162, 0.0
      %2173 = vadd.xlane.f32.xlu0 %v2172
      %v2174 = vpop.xlane.xlu0 %2173
      %v2175 = vmul.f32 %v2165, %v1420
      %v2176 = vmul.f32 %v2168, %v1420
      %v2177 = vmul.f32 %v2171, %v1420
      %v2178 = vmul.f32 %v2174, %v1420
      %v2179 = vmul.f32 %v2155, %v2155
      %v2180 = vmul.f32 %v2156, %v2156
      %v2181 = vmul.f32 %v2157, %v2157
      %v2182 = vmul.f32 %v2158, %v2158
      %v2183 = vsub.f32 %v2175, %v2179
      %v2184 = vsub.f32 %v2176, %v2180
      %v2185 = vsub.f32 %v2177, %v2181
      %v2186 = vsub.f32 %v2178, %v2182
      %v2187 = vsub.f32 %v2139, %v2155
      %v2188 = vsub.f32 %v2140, %v2156
      %v2189 = vsub.f32 %v2141, %v2157
      %v2190 = vsub.f32 %v2142, %v2158
      %v2191 = vadd.f32 %v2183, 1e-05
      %v2192 = vadd.f32 %v2184, 1e-05
      %v2193 = vadd.f32 %v2185, 1e-05
      %v2194 = vadd.f32 %v2186, 1e-05
      %v2195 = vrsqrt.pop %v2191
      %v2196 = vrsqrt.pop %v2192
      %v2197 = vrsqrt.pop %v2193
      %v2198 = vrsqrt.pop %v2194
      %v2199 = vmul.f32 %v2187, %v2195
      %v2200 = vmul.f32 %v2188, %v2196
      %v2201 = vmul.f32 %v2189, %v2197
      %v2202 = vmul.f32 %v2190, %v2198
      %v2203 = vadd.f32 %v2199, %v1465
      %v2204 = vadd.f32 %v2200, %v1466
      %v2205 = vadd.f32 %v2201, %v1467
      %v2206 = vadd.f32 %v2202, %v1468
      %2211 = vrot.lane.b32.xlu0 %v2203, 2
      %v2212 = vpop.permute.xlu0 %2211
      %2213 = vrot.lane.b32.xlu0 %v2204, 2
      %v2214 = vpop.permute.xlu0 %2213
      %2215 = vrot.lane.b32.xlu0 %v2205, 2
      %v2216 = vpop.permute.xlu0 %2215
      %2217 = vrot.lane.b32.xlu0 %v2206, 2
      %v2218 = vpop.permute.xlu0 %2217
      %2223 = vst.msk [vmem:[#allocation2] sm:$0xff] %vm743, %v2212
      %2224 = vst.msk [vmem:[#allocation2 + $0x8] sm:$0xff] %vm743, %v2214
      %2225 = vst.msk [vmem:[#allocation2 + $0x10] sm:$0xff] %vm743, %v2216
      %2226 = vst.msk [vmem:[#allocation2 + $0x18] sm:$0xff] %vm743, %v2218
      %2227 = vrot.lane.b32.xlu0 %v2203, 126
      %v2228 = vpop.permute.xlu0 %2227
      %2229 = vrot.lane.b32.xlu0 %v2204, 126
      %v2230 = vpop.permute.xlu0 %2229
      %2231 = vrot.lane.b32.xlu0 %v2205, 126
      %v2232 = vpop.permute.xlu0 %2231
      %2233 = vrot.lane.b32.xlu0 %v2206, 126
      %v2234 = vpop.permute.xlu0 %2233
      %2239 = vst.msk [vmem:[#allocation2] sm:$0xff] %vm760, %v2228
      %2240 = vst.msk [vmem:[#allocation2 + $0x8] sm:$0xff] %vm760, %v2230
      %2241 = vst.msk [vmem:[#allocation2 + $0x10] sm:$0xff] %vm760, %v2232
      %2242 = vst.msk [vmem:[#allocation2 + $0x18] sm:$0xff] %vm760, %v2234
      %2243 = vrot.lane.b32.xlu0 %v2203, 4
      %v2244 = vpop.permute.xlu0 %2243
      %2245 = vrot.lane.b32.xlu0 %v2204, 4
      %v2246 = vpop.permute.xlu0 %2245
      %2247 = vrot.lane.b32.xlu0 %v2205, 4
      %v2248 = vpop.permute.xlu0 %2247
      %2249 = vrot.lane.b32.xlu0 %v2206, 4
      %v2250 = vpop.permute.xlu0 %2249
      %2255 = vst.msk [vmem:[#allocation2] sm:$0xff] %vm777, %v2244
      %2256 = vst.msk [vmem:[#allocation2 + $0x8] sm:$0xff] %vm777, %v2246
      %2257 = vst.msk [vmem:[#allocation2 + $0x10] sm:$0xff] %vm777, %v2248
      %2258 = vst.msk [vmem:[#allocation2 + $0x18] sm:$0xff] %vm777, %v2250
      %2259 = vst.msk [vmem:[#allocation2] sm:$0xff] %vm782, %v2203
      %2260 = vst.msk [vmem:[#allocation2 + $0x8] sm:$0xff] %vm782, %v2204
      %2261 = vst.msk [vmem:[#allocation2 + $0x10] sm:$0xff] %vm782, %v2205
      %2262 = vst.msk [vmem:[#allocation2 + $0x18] sm:$0xff] %vm782, %v2206
      %2263 = vrot.lane.b32.xlu0 %v2203, 6
      %v2264 = vpop.permute.xlu0 %2263
      %2265 = vrot.lane.b32.xlu0 %v2204, 6
      %v2266 = vpop.permute.xlu0 %2265
      %2267 = vrot.lane.b32.xlu0 %v2205, 6
      %v2268 = vpop.permute.xlu0 %2267
      %2269 = vrot.lane.b32.xlu0 %v2206, 6
      %v2270 = vpop.permute.xlu0 %2269
      %2275 = vst.msk [vmem:[#allocation2] sm:$0xff] %vm799, %v2264
      %2276 = vst.msk [vmem:[#allocation2 + $0x8] sm:$0xff] %vm799, %v2266
      %2277 = vst.msk [vmem:[#allocation2 + $0x10] sm:$0xff] %vm799, %v2268
      %2278 = vst.msk [vmem:[#allocation2 + $0x18] sm:$0xff] %vm799, %v2270
      %v2279 = vld [vmem:[#allocation2] sm:$0xff]
      %v2280 = vld [vmem:[#allocation2 + $0x8] sm:$0xff]
      %v2281 = vld [vmem:[#allocation2 + $0x10] sm:$0xff]
      %v2282 = vld [vmem:[#allocation2 + $0x18] sm:$0xff]
      %2283 = vst.msk [vmem:[#allocation3] sm:$0xff] %vm808, %v2279
      %2284 = vst.msk [vmem:[#allocation3 + $0x8] sm:$0xff] %vm808, %v2280
      %2285 = vst.msk [vmem:[#allocation3 + $0x10] sm:$0xff] %vm808, %v2281
      %2286 = vst.msk [vmem:[#allocation3 + $0x18] sm:$0xff] %vm808, %v2282
      %v2287 = vld [vmem:[#allocation2] sm:$0xff]
      %v2288 = vld [vmem:[#allocation2 + $0x8] sm:$0xff]
      %v2289 = vld [vmem:[#allocation2 + $0x10] sm:$0xff]
      %v2290 = vld [vmem:[#allocation2 + $0x18] sm:$0xff]
      %2295 = vrot.lane.b32.xlu0 %v2287, 127
      %v2296 = vpop.permute.xlu0 %2295
      %2297 = vrot.lane.b32.xlu0 %v2288, 127
      %v2298 = vpop.permute.xlu0 %2297
      %2299 = vrot.lane.b32.xlu0 %v2289, 127
      %v2300 = vpop.permute.xlu0 %2299
      %2301 = vrot.lane.b32.xlu0 %v2290, 127
      %v2302 = vpop.permute.xlu0 %2301
      %2307 = vst.msk [vmem:[#allocation3 + $0x20] sm:$0xff] %vm808, %v2296
      %2308 = vst.msk [vmem:[#allocation3 + $0x28] sm:$0xff] %vm808, %v2298
      %2309 = vst.msk [vmem:[#allocation3 + $0x30] sm:$0xff] %vm808, %v2300
      %2310 = vst.msk [vmem:[#allocation3 + $0x38] sm:$0xff] %vm808, %v2302
      %v2311 = vld [vmem:[#allocation2] sm:$0xff]
      %v2312 = vld [vmem:[#allocation2 + $0x8] sm:$0xff]
      %v2313 = vld [vmem:[#allocation2 + $0x10] sm:$0xff]
      %v2314 = vld [vmem:[#allocation2 + $0x18] sm:$0xff]
      %2319 = vrot.lane.b32.xlu0 %v2311, 126
      %v2320 = vpop.permute.xlu0 %2319
      %2321 = vrot.lane.b32.xlu0 %v2312, 126
      %v2322 = vpop.permute.xlu0 %2321
      %2323 = vrot.lane.b32.xlu0 %v2313, 126
      %v2324 = vpop.permute.xlu0 %2323
      %2325 = vrot.lane.b32.xlu0 %v2314, 126
      %v2326 = vpop.permute.xlu0 %2325
      %2331 = vst.msk [vmem:[#allocation3 + $0x40] sm:$0xff] %vm808, %v2320
      %2332 = vst.msk [vmem:[#allocation3 + $0x48] sm:$0xff] %vm808, %v2322
      %2333 = vst.msk [vmem:[#allocation3 + $0x50] sm:$0xff] %vm808, %v2324
      %2334 = vst.msk [vmem:[#allocation3 + $0x58] sm:$0xff] %vm808, %v2326
      %v2335 = vld [vmem:[#allocation2] sm:$0xff]
      %v2336 = vld [vmem:[#allocation2 + $0x8] sm:$0xff]
      %v2337 = vld [vmem:[#allocation2 + $0x10] sm:$0xff]
      %v2338 = vld [vmem:[#allocation2 + $0x18] sm:$0xff]
      %2343 = vrot.lane.b32.xlu0 %v2335, 125
      %v2344 = vpop.permute.xlu0 %2343
      %2345 = vrot.lane.b32.xlu0 %v2336, 125
      %v2346 = vpop.permute.xlu0 %2345
      %2347 = vrot.lane.b32.xlu0 %v2337, 125
      %v2348 = vpop.permute.xlu0 %2347
      %2349 = vrot.lane.b32.xlu0 %v2338, 125
      %v2350 = vpop.permute.xlu0 %2349
      %2355 = vst.msk [vmem:[#allocation3 + $0x60] sm:$0xff] %vm808, %v2344
      %2356 = vst.msk [vmem:[#allocation3 + $0x68] sm:$0xff] %vm808, %v2346
      %2357 = vst.msk [vmem:[#allocation3 + $0x70] sm:$0xff] %vm808, %v2348
      %2358 = vst.msk [vmem:[#allocation3 + $0x78] sm:$0xff] %vm808, %v2350
      %v2359 = vld [vmem:[#allocation2] sm:$0xff]
      %v2360 = vld [vmem:[#allocation2 + $0x8] sm:$0xff]
      %v2361 = vld [vmem:[#allocation2 + $0x10] sm:$0xff]
      %v2362 = vld [vmem:[#allocation2 + $0x18] sm:$0xff]
      %2367 = vrot.lane.b32.xlu0 %v2359, 124
      %v2368 = vpop.permute.xlu0 %2367
      %2369 = vrot.lane.b32.xlu0 %v2360, 124
      %v2370 = vpop.permute.xlu0 %2369
      %2371 = vrot.lane.b32.xlu0 %v2361, 124
      %v2372 = vpop.permute.xlu0 %2371
      %2373 = vrot.lane.b32.xlu0 %v2362, 124
      %v2374 = vpop.permute.xlu0 %2373
      %2379 = vst.msk [vmem:[#allocation3 + $0x80] sm:$0xff] %vm808, %v2368
      %2380 = vst.msk [vmem:[#allocation3 + $0x88] sm:$0xff] %vm808, %v2370
      %2381 = vst.msk [vmem:[#allocation3 + $0x90] sm:$0xff] %vm808, %v2372
      %2382 = vst.msk [vmem:[#allocation3 + $0x98] sm:$0xff] %vm808, %v2374
      %v2383 = vld [vmem:[#allocation3] sm:$0xff]
      %v2384 = vld [vmem:[#allocation3 + $0x8] sm:$0xff]
      %v2385 = vld [vmem:[#allocation3 + $0x10] sm:$0xff]
      %v2386 = vld [vmem:[#allocation3 + $0x18] sm:$0xff]
      %v2387 = vld [vmem:[#allocation3 + $0x20] sm:$0xff]
      %v2388 = vld [vmem:[#allocation3 + $0x28] sm:$0xff]
      %v2389 = vld [vmem:[#allocation3 + $0x30] sm:$0xff]
      %v2390 = vld [vmem:[#allocation3 + $0x38] sm:$0xff]
      %v2391 = vld [vmem:[#allocation3 + $0x40] sm:$0xff]
      %v2392 = vld [vmem:[#allocation3 + $0x48] sm:$0xff]
      %v2393 = vld [vmem:[#allocation3 + $0x50] sm:$0xff]
      %v2394 = vld [vmem:[#allocation3 + $0x58] sm:$0xff]
      %v2395 = vld [vmem:[#allocation3 + $0x60] sm:$0xff]
      %v2396 = vld [vmem:[#allocation3 + $0x68] sm:$0xff]
      %v2397 = vld [vmem:[#allocation3 + $0x70] sm:$0xff]
      %v2398 = vld [vmem:[#allocation3 + $0x78] sm:$0xff]
      %v2399 = vld [vmem:[#allocation3 + $0x80] sm:$0xff]
      %v2400 = vld [vmem:[#allocation3 + $0x88] sm:$0xff]
      %v2401 = vld [vmem:[#allocation3 + $0x90] sm:$0xff]
      %v2402 = vld [vmem:[#allocation3 + $0x98] sm:$0xff]
      %v2403 = vld [vmem:[%s11] sm:$0xff]
      %v2404 = vld [vmem:[%s11 + $0x8] sm:$0xff]
      %v2405 = vld [vmem:[%s11 + $0x10] sm:$0xff]
      %v2406 = vld [vmem:[%s11 + $0x18] sm:$0xff]
      %v2407 = vld [vmem:[%s11 + $0x20] sm:$0xff]
      %v2408 = vld [vmem:[%s11 + $0x28] sm:$0xff]
      %v2409 = vld [vmem:[%s11 + $0x30] sm:$0xff]
      %v2410 = vld [vmem:[%s11 + $0x38] sm:$0xff]
      %v2411 = vld [vmem:[%s12] sm:$0xff]
      %v2412 = vld [vmem:[%s12 + $0x8] sm:$0xff]
      %v2413 = vld [vmem:[%s12 + $0x10] sm:$0xff]
      %v2414 = vld [vmem:[%s12 + $0x18] sm:$0xff]
      %2416 = vset.pattern.permute.xlu0 0
      %2417 = vperm.xlu0 %2416, %v2411
      %v2418 = vpop.permute.xlu0 %2417
      %2421 = vset.pattern.permute.xlu0 0
      %2422 = vperm.xlu0 %2421, %v2412
      %v2423 = vpop.permute.xlu0 %2422
      %2426 = vset.pattern.permute.xlu0 0
      %2427 = vperm.xlu0 %2426, %v2413
      %v2428 = vpop.permute.xlu0 %2427
      %2431 = vset.pattern.permute.xlu0 0
      %2432 = vperm.xlu0 %2431, %v2414
      %v2433 = vpop.permute.xlu0 %2432
      %v2436 = vsel %vm961, %v2404, 0
      %v2439 = vsel %vm961, %v2406, 0
      %v2442 = vsel %vm961, %v2408, 0
      %v2445 = vsel %vm961, %v2410, 0
      %2447 = vmatprep.subr.mxu0 0.0
      %2448 = vmatpush1.msra.mxu0 %v2383
      %2449 = vmatprep.subr.mxu0 0.0
      %2450 = vmatpush1.msra.mxu0 %v2384
      %2451 = vmatprep.subr.mxu0 0.0
      %2452 = vmatpush1.msra.mxu0 %v2385
      %2453 = vmatprep.subr.mxu0 0.0
      %2454 = vmatpush1.msra.mxu0 %v2386
      %2455 = vmatprep.subr.mxu0 0.0
      %2456 = vmatpush1.msra.mxu0 %v2387
      %2457 = vmatprep.subr.mxu0 0.0
      %2458 = vmatpush1.msra.mxu0 %v2388
      %2459 = vmatprep.subr.mxu0 0.0
      %2460 = vmatpush1.msra.mxu0 %v2389
      %2461 = vmatprep.subr.mxu0 0.0
      %2462 = vmatpush1.msra.mxu0 %v2390
      %2463 = vmatprep.subr.mxu0 0.0
      %2464 = vmatpush1.msra.mxu0 %v2391
      %2465 = vmatprep.subr.mxu0 0.0
      %2466 = vmatpush1.msra.mxu0 %v2392
      %2467 = vmatprep.subr.mxu0 0.0
      %2468 = vmatpush1.msra.mxu0 %v2393
      %2469 = vmatprep.subr.mxu0 0.0
      %2470 = vmatpush1.msra.mxu0 %v2394
      %2471 = vmatprep.subr.mxu0 0.0
      %2472 = vmatpush1.msra.mxu0 %v2395
      %2473 = vmatprep.subr.mxu0 0.0
      %2474 = vmatpush1.msra.mxu0 %v2396
      %2475 = vmatprep.subr.mxu0 0.0
      %2476 = vmatpush1.msra.mxu0 %v2397
      %2477 = vmatprep.subr.mxu0 0.0
      %2478 = vmatpush1.msra.mxu0 %v2398
      %2479 = vmatprep.subr.mxu0 0.0
      %2480 = vmatpush1.msra.mxu0 %v2399
      %2481 = vmatprep.subr.mxu0 0.0
      %2482 = vmatpush1.msra.mxu0 %v2400
      %2483 = vmatprep.subr.mxu0 0.0
      %2484 = vmatpush1.msra.mxu0 %v2401
      %2485 = vmatprep.subr.mxu0 0.0
      %2486 = vmatpush1.msra.mxu0 %v2402
      %2487 = vmatprep.subr.mxu0 0.0
      %2488 = vmatpush1.msra.mxu0 0.0
      %2489 = vmatprep.subr.mxu0 0.0
      %2490 = vmatpush1.msra.mxu0 0.0
      %2491 = vmatprep.subr.mxu0 0.0
      %2492 = vmatpush1.msra.mxu0 0.0
      %2493 = vmatprep.subr.mxu0 0.0
      %2494 = vmatpush1.msra.mxu0 0.0
      %2495 = vmatprep.subr.mxu0 0.0
      %2496 = vmatpush1.msra.mxu0 0.0
      %2497 = vmatprep.subr.mxu0 0.0
      %2498 = vmatpush1.msra.mxu0 0.0
      %2499 = vmatprep.subr.mxu0 0.0
      %2500 = vmatpush1.msra.mxu0 0.0
      %2501 = vmatprep.subr.mxu0 0.0
      %2502 = vmatpush1.msra.mxu0 0.0
      %2503 = vmatprep.subr.mxu0 0.0
      %2504 = vmatpush1.msra.mxu0 0.0
      %2505 = vmatprep.subr.mxu0 0.0
      %2506 = vmatpush1.msra.mxu0 0.0
      %2507 = vmatprep.subr.mxu0 0.0
      %2508 = vmatpush1.msra.mxu0 0.0
      %2509 = vmatprep.subr.mxu0 0.0
      %2510 = vmatpush1.msra.mxu0 0.0
      %2511 = vmatprep.mubr.f32.mxu0 %v2436
      %2512 = vmatmul.mubr.f32.gmra.mrb[0].mxu0 %v2403
      %v2513 = vpop.f32.mrb[0].mxu0
      %v2514 = vadd.f32 %v2418, %v2513
      %v2515 = vpop.f32.mrb[0].mxu0
      %2516 = vmatprep.mubr.f32.mxu0 %v2439
      %2517 = vmatmul.mubr.f32.gmra.mrb[0].mxu0 %v2405
      %v2518 = vpop.f32.mrb[0].mxu0
      %v2519 = vadd.f32 %v2423, %v2518
      %v2520 = vpop.f32.mrb[0].mxu0
      %2521 = vmatprep.mubr.f32.mxu0 %v2442
      %2522 = vmatmul.mubr.f32.gmra.mrb[0].mxu0 %v2407
      %v2523 = vpop.f32.mrb[0].mxu0
      %v2524 = vadd.f32 %v2428, %v2523
      %v2525 = vpop.f32.mrb[0].mxu0
      %2526 = vmatprep.mubr.f32.mxu0 %v2445
      %2527 = vmatmul.mubr.f32.gmra.mrb[0].mxu0 %v2409
      %v2528 = vpop.f32.mrb[0].mxu0
      %v2529 = vadd.f32 %v2433, %v2528
      %v2530 = vpop.f32.mrb[0].mxu0
      %2531 = vdwg.mxu0
      %vm2532 = vcmp.ge.f32.partialorder %v2514, 0.0
      %vm2533 = vcmp.ge.f32.partialorder %v2519, 0.0
      %vm2534 = vcmp.ge.f32.partialorder %v2524, 0.0
      %vm2535 = vcmp.ge.f32.partialorder %v2529, 0.0
      %v2536 = vmul.f32 %v2514, 0.01
      %v2537 = vmul.f32 %v2519, 0.01
      %v2538 = vmul.f32 %v2524, 0.01
      %v2539 = vmul.f32 %v2529, 0.01
      %v2540 = vsel %vm2532, %v2514, %v2536
      %v2541 = vsel %vm2533, %v2519, %v2537
      %v2542 = vsel %vm2534, %v2524, %v2538
      %v2543 = vsel %vm2535, %v2529, %v2539
      %2548 = vrot.lane.b32.xlu0 %v2540, 2
      %v2549 = vpop.permute.xlu0 %2548
      %2550 = vrot.lane.b32.xlu0 %v2541, 2
      %v2551 = vpop.permute.xlu0 %2550
      %2552 = vrot.lane.b32.xlu0 %v2542, 2
      %v2553 = vpop.permute.xlu0 %2552
      %2554 = vrot.lane.b32.xlu0 %v2543, 2
      %v2555 = vpop.permute.xlu0 %2554
      %2560 = vst.msk [vmem:[#allocation2] sm:$0xff] %vm743, %v2549
      %2561 = vst.msk [vmem:[#allocation2 + $0x8] sm:$0xff] %vm743, %v2551
      %2562 = vst.msk [vmem:[#allocation2 + $0x10] sm:$0xff] %vm743, %v2553
      %2563 = vst.msk [vmem:[#allocation2 + $0x18] sm:$0xff] %vm743, %v2555
      %2564 = vrot.lane.b32.xlu0 %v2540, 126
      %v2565 = vpop.permute.xlu0 %2564
      %2566 = vrot.lane.b32.xlu0 %v2541, 126
      %v2567 = vpop.permute.xlu0 %2566
      %2568 = vrot.lane.b32.xlu0 %v2542, 126
      %v2569 = vpop.permute.xlu0 %2568
      %2570 = vrot.lane.b32.xlu0 %v2543, 126
      %v2571 = vpop.permute.xlu0 %2570
      %2576 = vst.msk [vmem:[#allocation2] sm:$0xff] %vm760, %v2565
      %2577 = vst.msk [vmem:[#allocation2 + $0x8] sm:$0xff] %vm760, %v2567
      %2578 = vst.msk [vmem:[#allocation2 + $0x10] sm:$0xff] %vm760, %v2569
      %2579 = vst.msk [vmem:[#allocation2 + $0x18] sm:$0xff] %vm760, %v2571
      %2580 = vrot.lane.b32.xlu0 %v2540, 4
      %v2581 = vpop.permute.xlu0 %2580
      %2582 = vrot.lane.b32.xlu0 %v2541, 4
      %v2583 = vpop.permute.xlu0 %2582
      %2584 = vrot.lane.b32.xlu0 %v2542, 4
      %v2585 = vpop.permute.xlu0 %2584
      %2586 = vrot.lane.b32.xlu0 %v2543, 4
      %v2587 = vpop.permute.xlu0 %2586
      %2592 = vst.msk [vmem:[#allocation2] sm:$0xff] %vm777, %v2581
      %2593 = vst.msk [vmem:[#allocation2 + $0x8] sm:$0xff] %vm777, %v2583
      %2594 = vst.msk [vmem:[#allocation2 + $0x10] sm:$0xff] %vm777, %v2585
      %2595 = vst.msk [vmem:[#allocation2 + $0x18] sm:$0xff] %vm777, %v2587
      %2596 = vst.msk [vmem:[#allocation2] sm:$0xff] %vm782, %v2540
      %2597 = vst.msk [vmem:[#allocation2 + $0x8] sm:$0xff] %vm782, %v2541
      %2598 = vst.msk [vmem:[#allocation2 + $0x10] sm:$0xff] %vm782, %v2542
      %2599 = vst.msk [vmem:[#allocation2 + $0x18] sm:$0xff] %vm782, %v2543
      %2600 = vrot.lane.b32.xlu0 %v2540, 6
      %v2601 = vpop.permute.xlu0 %2600
      %2602 = vrot.lane.b32.xlu0 %v2541, 6
      %v2603 = vpop.permute.xlu0 %2602
      %2604 = vrot.lane.b32.xlu0 %v2542, 6
      %v2605 = vpop.permute.xlu0 %2604
      %2606 = vrot.lane.b32.xlu0 %v2543, 6
      %v2607 = vpop.permute.xlu0 %2606
      %2612 = vst.msk [vmem:[#allocation2] sm:$0xff] %vm799, %v2601
      %2613 = vst.msk [vmem:[#allocation2 + $0x8] sm:$0xff] %vm799, %v2603
      %2614 = vst.msk [vmem:[#allocation2 + $0x10] sm:$0xff] %vm799, %v2605
      %2615 = vst.msk [vmem:[#allocation2 + $0x18] sm:$0xff] %vm799, %v2607
      %v2616 = vld [vmem:[#allocation2] sm:$0xff]
      %v2617 = vld [vmem:[#allocation2 + $0x8] sm:$0xff]
      %v2618 = vld [vmem:[#allocation2 + $0x10] sm:$0xff]
      %v2619 = vld [vmem:[#allocation2 + $0x18] sm:$0xff]
      %2620 = vst.msk [vmem:[#allocation3] sm:$0xff] %vm808, %v2616
      %2621 = vst.msk [vmem:[#allocation3 + $0x8] sm:$0xff] %vm808, %v2617
      %2622 = vst.msk [vmem:[#allocation3 + $0x10] sm:$0xff] %vm808, %v2618
      %2623 = vst.msk [vmem:[#allocation3 + $0x18] sm:$0xff] %vm808, %v2619
      %v2624 = vld [vmem:[#allocation2] sm:$0xff]
      %v2625 = vld [vmem:[#allocation2 + $0x8] sm:$0xff]
      %v2626 = vld [vmem:[#allocation2 + $0x10] sm:$0xff]
      %v2627 = vld [vmem:[#allocation2 + $0x18] sm:$0xff]
      %2632 = vrot.lane.b32.xlu0 %v2624, 127
      %v2633 = vpop.permute.xlu0 %2632
      %2634 = vrot.lane.b32.xlu0 %v2625, 127
      %v2635 = vpop.permute.xlu0 %2634
      %2636 = vrot.lane.b32.xlu0 %v2626, 127
      %v2637 = vpop.permute.xlu0 %2636
      %2638 = vrot.lane.b32.xlu0 %v2627, 127
      %v2639 = vpop.permute.xlu0 %2638
      %2644 = vst.msk [vmem:[#allocation3 + $0x20] sm:$0xff] %vm808, %v2633
      %2645 = vst.msk [vmem:[#allocation3 + $0x28] sm:$0xff] %vm808, %v2635
      %2646 = vst.msk [vmem:[#allocation3 + $0x30] sm:$0xff] %vm808, %v2637
      %2647 = vst.msk [vmem:[#allocation3 + $0x38] sm:$0xff] %vm808, %v2639
      %v2648 = vld [vmem:[#allocation2] sm:$0xff]
      %v2649 = vld [vmem:[#allocation2 + $0x8] sm:$0xff]
      %v2650 = vld [vmem:[#allocation2 + $0x10] sm:$0xff]
      %v2651 = vld [vmem:[#allocation2 + $0x18] sm:$0xff]
      %2656 = vrot.lane.b32.xlu0 %v2648, 126
      %v2657 = vpop.permute.xlu0 %2656
      %2658 = vrot.lane.b32.xlu0 %v2649, 126
      %v2659 = vpop.permute.xlu0 %2658
      %2660 = vrot.lane.b32.xlu0 %v2650, 126
      %v2661 = vpop.permute.xlu0 %2660
      %2662 = vrot.lane.b32.xlu0 %v2651, 126
      %v2663 = vpop.permute.xlu0 %2662
      %2668 = vst.msk [vmem:[#allocation3 + $0x40] sm:$0xff] %vm808, %v2657
      %2669 = vst.msk [vmem:[#allocation3 + $0x48] sm:$0xff] %vm808, %v2659
      %2670 = vst.msk [vmem:[#allocation3 + $0x50] sm:$0xff] %vm808, %v2661
      %2671 = vst.msk [vmem:[#allocation3 + $0x58] sm:$0xff] %vm808, %v2663
      %v2672 = vld [vmem:[#allocation2] sm:$0xff]
      %v2673 = vld [vmem:[#allocation2 + $0x8] sm:$0xff]
      %v2674 = vld [vmem:[#allocation2 + $0x10] sm:$0xff]
      %v2675 = vld [vmem:[#allocation2 + $0x18] sm:$0xff]
      %2680 = vrot.lane.b32.xlu0 %v2672, 125
      %v2681 = vpop.permute.xlu0 %2680
      %2682 = vrot.lane.b32.xlu0 %v2673, 125
      %v2683 = vpop.permute.xlu0 %2682
      %2684 = vrot.lane.b32.xlu0 %v2674, 125
      %v2685 = vpop.permute.xlu0 %2684
      %2686 = vrot.lane.b32.xlu0 %v2675, 125
      %v2687 = vpop.permute.xlu0 %2686
      %2692 = vst.msk [vmem:[#allocation3 + $0x60] sm:$0xff] %vm808, %v2681
      %2693 = vst.msk [vmem:[#allocation3 + $0x68] sm:$0xff] %vm808, %v2683
      %2694 = vst.msk [vmem:[#allocation3 + $0x70] sm:$0xff] %vm808, %v2685
      %2695 = vst.msk [vmem:[#allocation3 + $0x78] sm:$0xff] %vm808, %v2687
      %v2696 = vld [vmem:[#allocation2] sm:$0xff]
      %v2697 = vld [vmem:[#allocation2 + $0x8] sm:$0xff]
      %v2698 = vld [vmem:[#allocation2 + $0x10] sm:$0xff]
      %v2699 = vld [vmem:[#allocation2 + $0x18] sm:$0xff]
      %2704 = vrot.lane.b32.xlu0 %v2696, 124
      %v2705 = vpop.permute.xlu0 %2704
      %2706 = vrot.lane.b32.xlu0 %v2697, 124
      %v2707 = vpop.permute.xlu0 %2706
      %2708 = vrot.lane.b32.xlu0 %v2698, 124
      %v2709 = vpop.permute.xlu0 %2708
      %2710 = vrot.lane.b32.xlu0 %v2699, 124
      %v2711 = vpop.permute.xlu0 %2710
      %2716 = vst.msk [vmem:[#allocation3 + $0x80] sm:$0xff] %vm808, %v2705
      %2717 = vst.msk [vmem:[#allocation3 + $0x88] sm:$0xff] %vm808, %v2707
      %2718 = vst.msk [vmem:[#allocation3 + $0x90] sm:$0xff] %vm808, %v2709
      %2719 = vst.msk [vmem:[#allocation3 + $0x98] sm:$0xff] %vm808, %v2711
      %v2720 = vld [vmem:[#allocation3] sm:$0xff]
      %v2721 = vld [vmem:[#allocation3 + $0x8] sm:$0xff]
      %v2722 = vld [vmem:[#allocation3 + $0x10] sm:$0xff]
      %v2723 = vld [vmem:[#allocation3 + $0x18] sm:$0xff]
      %v2724 = vld [vmem:[#allocation3 + $0x20] sm:$0xff]
      %v2725 = vld [vmem:[#allocation3 + $0x28] sm:$0xff]
      %v2726 = vld [vmem:[#allocation3 + $0x30] sm:$0xff]
      %v2727 = vld [vmem:[#allocation3 + $0x38] sm:$0xff]
      %v2728 = vld [vmem:[#allocation3 + $0x40] sm:$0xff]
      %v2729 = vld [vmem:[#allocation3 + $0x48] sm:$0xff]
      %v2730 = vld [vmem:[#allocation3 + $0x50] sm:$0xff]
      %v2731 = vld [vmem:[#allocation3 + $0x58] sm:$0xff]
      %v2732 = vld [vmem:[#allocation3 + $0x60] sm:$0xff]
      %v2733 = vld [vmem:[#allocation3 + $0x68] sm:$0xff]
      %v2734 = vld [vmem:[#allocation3 + $0x70] sm:$0xff]
      %v2735 = vld [vmem:[#allocation3 + $0x78] sm:$0xff]
      %v2736 = vld [vmem:[#allocation3 + $0x80] sm:$0xff]
      %v2737 = vld [vmem:[#allocation3 + $0x88] sm:$0xff]
      %v2738 = vld [vmem:[#allocation3 + $0x90] sm:$0xff]
      %v2739 = vld [vmem:[#allocation3 + $0x98] sm:$0xff]
      %v2740 = vld [vmem:[%s13] sm:$0xff]
      %v2741 = vld [vmem:[%s13 + $0x8] sm:$0xff]
      %v2742 = vld [vmem:[%s13 + $0x10] sm:$0xff]
      %v2743 = vld [vmem:[%s13 + $0x18] sm:$0xff]
      %v2744 = vld [vmem:[%s13 + $0x20] sm:$0xff]
      %v2745 = vld [vmem:[%s13 + $0x28] sm:$0xff]
      %v2746 = vld [vmem:[%s13 + $0x30] sm:$0xff]
      %v2747 = vld [vmem:[%s13 + $0x38] sm:$0xff]
      %v2748 = vld [vmem:[%s14] sm:$0xff]
      %v2749 = vld [vmem:[%s14 + $0x8] sm:$0xff]
      %v2750 = vld [vmem:[%s14 + $0x10] sm:$0xff]
      %v2751 = vld [vmem:[%s14 + $0x18] sm:$0xff]
      %2753 = vset.pattern.permute.xlu0 0
      %2754 = vperm.xlu0 %2753, %v2748
      %v2755 = vpop.permute.xlu0 %2754
      %2758 = vset.pattern.permute.xlu0 0
      %2759 = vperm.xlu0 %2758, %v2749
      %v2760 = vpop.permute.xlu0 %2759
      %2763 = vset.pattern.permute.xlu0 0
      %2764 = vperm.xlu0 %2763, %v2750
      %v2765 = vpop.permute.xlu0 %2764
      %2768 = vset.pattern.permute.xlu0 0
      %2769 = vperm.xlu0 %2768, %v2751
      %v2770 = vpop.permute.xlu0 %2769
      %v2773 = vsel %vm961, %v2741, 0
      %v2776 = vsel %vm961, %v2743, 0
      %v2779 = vsel %vm961, %v2745, 0
      %v2782 = vsel %vm961, %v2747, 0
      %2784 = vmatprep.subr.mxu0 0.0
      %2785 = vmatpush1.msra.mxu0 %v2720
      %2786 = vmatprep.subr.mxu0 0.0
      %2787 = vmatpush1.msra.mxu0 %v2721
      %2788 = vmatprep.subr.mxu0 0.0
      %2789 = vmatpush1.msra.mxu0 %v2722
      %2790 = vmatprep.subr.mxu0 0.0
      %2791 = vmatpush1.msra.mxu0 %v2723
      %2792 = vmatprep.subr.mxu0 0.0
      %2793 = vmatpush1.msra.mxu0 %v2724
      %2794 = vmatprep.subr.mxu0 0.0
      %2795 = vmatpush1.msra.mxu0 %v2725
      %2796 = vmatprep.subr.mxu0 0.0
      %2797 = vmatpush1.msra.mxu0 %v2726
      %2798 = vmatprep.subr.mxu0 0.0
      %2799 = vmatpush1.msra.mxu0 %v2727
      %2800 = vmatprep.subr.mxu0 0.0
      %2801 = vmatpush1.msra.mxu0 %v2728
      %2802 = vmatprep.subr.mxu0 0.0
      %2803 = vmatpush1.msra.mxu0 %v2729
      %2804 = vmatprep.subr.mxu0 0.0
      %2805 = vmatpush1.msra.mxu0 %v2730
      %2806 = vmatprep.subr.mxu0 0.0
      %2807 = vmatpush1.msra.mxu0 %v2731
      %2808 = vmatprep.subr.mxu0 0.0
      %2809 = vmatpush1.msra.mxu0 %v2732
      %2810 = vmatprep.subr.mxu0 0.0
      %2811 = vmatpush1.msra.mxu0 %v2733
      %2812 = vmatprep.subr.mxu0 0.0
      %2813 = vmatpush1.msra.mxu0 %v2734
      %2814 = vmatprep.subr.mxu0 0.0
      %2815 = vmatpush1.msra.mxu0 %v2735
      %2816 = vmatprep.subr.mxu0 0.0
      %2817 = vmatpush1.msra.mxu0 %v2736
      %2818 = vmatprep.subr.mxu0 0.0
      %2819 = vmatpush1.msra.mxu0 %v2737
      %2820 = vmatprep.subr.mxu0 0.0
      %2821 = vmatpush1.msra.mxu0 %v2738
      %2822 = vmatprep.subr.mxu0 0.0
      %2823 = vmatpush1.msra.mxu0 %v2739
      %2824 = vmatprep.subr.mxu0 0.0
      %2825 = vmatpush1.msra.mxu0 0.0
      %2826 = vmatprep.subr.mxu0 0.0
      %2827 = vmatpush1.msra.mxu0 0.0
      %2828 = vmatprep.subr.mxu0 0.0
      %2829 = vmatpush1.msra.mxu0 0.0
      %2830 = vmatprep.subr.mxu0 0.0
      %2831 = vmatpush1.msra.mxu0 0.0
      %2832 = vmatprep.subr.mxu0 0.0
      %2833 = vmatpush1.msra.mxu0 0.0
      %2834 = vmatprep.subr.mxu0 0.0
      %2835 = vmatpush1.msra.mxu0 0.0
      %2836 = vmatprep.subr.mxu0 0.0
      %2837 = vmatpush1.msra.mxu0 0.0
      %2838 = vmatprep.subr.mxu0 0.0
      %2839 = vmatpush1.msra.mxu0 0.0
      %2840 = vmatprep.subr.mxu0 0.0
      %2841 = vmatpush1.msra.mxu0 0.0
      %2842 = vmatprep.subr.mxu0 0.0
      %2843 = vmatpush1.msra.mxu0 0.0
      %2844 = vmatprep.subr.mxu0 0.0
      %2845 = vmatpush1.msra.mxu0 0.0
      %2846 = vmatprep.subr.mxu0 0.0
      %2847 = vmatpush1.msra.mxu0 0.0
      %2848 = vmatprep.mubr.f32.mxu0 %v2773
      %2849 = vmatmul.mubr.f32.gmra.mrb[0].mxu0 %v2740
      %v2850 = vpop.f32.mrb[0].mxu0
      %v2851 = vadd.f32 %v2755, %v2850
      %v2852 = vpop.f32.mrb[0].mxu0
      %2853 = vmatprep.mubr.f32.mxu0 %v2776
      %2854 = vmatmul.mubr.f32.gmra.mrb[0].mxu0 %v2742
      %v2855 = vpop.f32.mrb[0].mxu0
      %v2856 = vadd.f32 %v2760, %v2855
      %v2857 = vpop.f32.mrb[0].mxu0
      %2858 = vmatprep.mubr.f32.mxu0 %v2779
      %2859 = vmatmul.mubr.f32.gmra.mrb[0].mxu0 %v2744
      %v2860 = vpop.f32.mrb[0].mxu0
      %v2861 = vadd.f32 %v2765, %v2860
      %v2862 = vpop.f32.mrb[0].mxu0
      %2863 = vmatprep.mubr.f32.mxu0 %v2782
      %2864 = vmatmul.mubr.f32.gmra.mrb[0].mxu0 %v2746
      %v2865 = vpop.f32.mrb[0].mxu0
      %v2866 = vadd.f32 %v2770, %v2865
      %v2867 = vpop.f32.mrb[0].mxu0
      %2868 = vdwg.mxu0
      %vm2869 = vcmp.ge.f32.partialorder %v2851, 0.0
      %vm2870 = vcmp.ge.f32.partialorder %v2856, 0.0
      %vm2871 = vcmp.ge.f32.partialorder %v2861, 0.0
      %vm2872 = vcmp.ge.f32.partialorder %v2866, 0.0
      %v2873 = vmul.f32 %v2851, 0.01
      %v2874 = vmul.f32 %v2856, 0.01
      %v2875 = vmul.f32 %v2861, 0.01
      %v2876 = vmul.f32 %v2866, 0.01
      %v2877 = vsel %vm2869, %v2851, %v2873
      %v2878 = vsel %vm2870, %v2856, %v2874
      %v2879 = vsel %vm2871, %v2861, %v2875
      %v2880 = vsel %vm2872, %v2866, %v2876
      %v2881 = vsel %vm808, %v2877, 0.0
      %2882 = vadd.xlane.f32.xlu0 %v2881
      %v2883 = vpop.xlane.xlu0 %2882
      %v2884 = vsel %vm808, %v2878, 0.0
      %2885 = vadd.xlane.f32.xlu0 %v2884
      %v2886 = vpop.xlane.xlu0 %2885
      %v2887 = vsel %vm808, %v2879, 0.0
      %2888 = vadd.xlane.f32.xlu0 %v2887
      %v2889 = vpop.xlane.xlu0 %2888
      %v2890 = vsel %vm808, %v2880, 0.0
      %2891 = vadd.xlane.f32.xlu0 %v2890
      %v2892 = vpop.xlane.xlu0 %2891
      %v2893 = vmul.f32 %v2883, %v1420
      %v2894 = vmul.f32 %v2886, %v1420
      %v2895 = vmul.f32 %v2889, %v1420
      %v2896 = vmul.f32 %v2892, %v1420
      %v2897 = vmul.f32 %v2877, %v2877
      %v2898 = vmul.f32 %v2878, %v2878
      %v2899 = vmul.f32 %v2879, %v2879
      %v2900 = vmul.f32 %v2880, %v2880
      %v2901 = vsel %vm808, %v2897, 0.0
      %2902 = vadd.xlane.f32.xlu0 %v2901
      %v2903 = vpop.xlane.xlu0 %2902
      %v2904 = vsel %vm808, %v2898, 0.0
      %2905 = vadd.xlane.f32.xlu0 %v2904
      %v2906 = vpop.xlane.xlu0 %2905
      %v2907 = vsel %vm808, %v2899, 0.0
      %2908 = vadd.xlane.f32.xlu0 %v2907
      %v2909 = vpop.xlane.xlu0 %2908
      %v2910 = vsel %vm808, %v2900, 0.0
      %2911 = vadd.xlane.f32.xlu0 %v2910
      %v2912 = vpop.xlane.xlu0 %2911
      %v2913 = vmul.f32 %v2903, %v1420
      %v2914 = vmul.f32 %v2906, %v1420
      %v2915 = vmul.f32 %v2909, %v1420
      %v2916 = vmul.f32 %v2912, %v1420
      %v2917 = vmul.f32 %v2893, %v2893
      %v2918 = vmul.f32 %v2894, %v2894
      %v2919 = vmul.f32 %v2895, %v2895
      %v2920 = vmul.f32 %v2896, %v2896
      %v2921 = vsub.f32 %v2913, %v2917
      %v2922 = vsub.f32 %v2914, %v2918
      %v2923 = vsub.f32 %v2915, %v2919
      %v2924 = vsub.f32 %v2916, %v2920
      %v2925 = vsub.f32 %v2877, %v2893
      %v2926 = vsub.f32 %v2878, %v2894
      %v2927 = vsub.f32 %v2879, %v2895
      %v2928 = vsub.f32 %v2880, %v2896
      %v2929 = vadd.f32 %v2921, 1e-05
      %v2930 = vadd.f32 %v2922, 1e-05
      %v2931 = vadd.f32 %v2923, 1e-05
      %v2932 = vadd.f32 %v2924, 1e-05
      %v2933 = vrsqrt.pop %v2929
      %v2934 = vrsqrt.pop %v2930
      %v2935 = vrsqrt.pop %v2931
      %v2936 = vrsqrt.pop %v2932
      %v2937 = vmul.f32 %v2925, %v2933
      %v2938 = vmul.f32 %v2926, %v2934
      %v2939 = vmul.f32 %v2927, %v2935
      %v2940 = vmul.f32 %v2928, %v2936
      %v2941 = vadd.f32 %v2937, %v2203
      %v2942 = vadd.f32 %v2938, %v2204
      %v2943 = vadd.f32 %v2939, %v2205
      %v2944 = vadd.f32 %v2940, %v2206
      %2949 = vrot.lane.b32.xlu0 %v2941, 1
      %v2950 = vpop.permute.xlu0 %2949
      %2951 = vrot.lane.b32.xlu0 %v2942, 1
      %v2952 = vpop.permute.xlu0 %2951
      %2953 = vrot.lane.b32.xlu0 %v2943, 1
      %v2954 = vpop.permute.xlu0 %2953
      %2955 = vrot.lane.b32.xlu0 %v2944, 1
      %v2956 = vpop.permute.xlu0 %2955
      %vm2961 = vcmask 531464
      %2962 = vst.msk [vmem:[#allocation2] sm:$0xff] %vm2961, %v2950
      %2963 = vst.msk [vmem:[#allocation2 + $0x8] sm:$0xff] %vm2961, %v2952
      %2964 = vst.msk [vmem:[#allocation2 + $0x10] sm:$0xff] %vm2961, %v2954
      %2965 = vst.msk [vmem:[#allocation2 + $0x18] sm:$0xff] %vm2961, %v2956
      %2966 = vrot.lane.b32.xlu0 %v2941, 127
      %v2967 = vpop.permute.xlu0 %2966
      %2968 = vrot.lane.b32.xlu0 %v2942, 127
      %v2969 = vpop.permute.xlu0 %2968
      %2970 = vrot.lane.b32.xlu0 %v2943, 127
      %v2971 = vpop.permute.xlu0 %2970
      %2972 = vrot.lane.b32.xlu0 %v2944, 127
      %v2973 = vpop.permute.xlu0 %2972
      %2978 = vst.msk [vmem:[#allocation2] sm:$0xff] %vm760, %v2967
      %2979 = vst.msk [vmem:[#allocation2 + $0x8] sm:$0xff] %vm760, %v2969
      %2980 = vst.msk [vmem:[#allocation2 + $0x10] sm:$0xff] %vm760, %v2971
      %2981 = vst.msk [vmem:[#allocation2 + $0x18] sm:$0xff] %vm760, %v2973
      %2982 = vrot.lane.b32.xlu0 %v2941, 3
      %v2983 = vpop.permute.xlu0 %2982
      %2984 = vrot.lane.b32.xlu0 %v2942, 3
      %v2985 = vpop.permute.xlu0 %2984
      %2986 = vrot.lane.b32.xlu0 %v2943, 3
      %v2987 = vpop.permute.xlu0 %2986
      %2988 = vrot.lane.b32.xlu0 %v2944, 3
      %v2989 = vpop.permute.xlu0 %2988
      %vm2994 = vcmask 540168
      %2995 = vst.msk [vmem:[#allocation2] sm:$0xff] %vm2994, %v2983
      %2996 = vst.msk [vmem:[#allocation2 + $0x8] sm:$0xff] %vm2994, %v2985
      %2997 = vst.msk [vmem:[#allocation2 + $0x10] sm:$0xff] %vm2994, %v2987
      %2998 = vst.msk [vmem:[#allocation2 + $0x18] sm:$0xff] %vm2994, %v2989
      %v2999 = vld [vmem:[#allocation2] sm:$0xff]
      %v3000 = vld [vmem:[#allocation2 + $0x8] sm:$0xff]
      %v3001 = vld [vmem:[#allocation2 + $0x10] sm:$0xff]
      %v3002 = vld [vmem:[#allocation2 + $0x18] sm:$0xff]
      %3003 = vst.msk [vmem:[#allocation3] sm:$0xff] %vm808, %v2999
      %3004 = vst.msk [vmem:[#allocation3 + $0x8] sm:$0xff] %vm808, %v3000
      %3005 = vst.msk [vmem:[#allocation3 + $0x10] sm:$0xff] %vm808, %v3001
      %3006 = vst.msk [vmem:[#allocation3 + $0x18] sm:$0xff] %vm808, %v3002
      %v3007 = vld [vmem:[#allocation2] sm:$0xff]
      %v3008 = vld [vmem:[#allocation2 + $0x8] sm:$0xff]
      %v3009 = vld [vmem:[#allocation2 + $0x10] sm:$0xff]
      %v3010 = vld [vmem:[#allocation2 + $0x18] sm:$0xff]
      %3015 = vrot.lane.b32.xlu0 %v3007, 127
      %v3016 = vpop.permute.xlu0 %3015
      %3017 = vrot.lane.b32.xlu0 %v3008, 127
      %v3018 = vpop.permute.xlu0 %3017
      %3019 = vrot.lane.b32.xlu0 %v3009, 127
      %v3020 = vpop.permute.xlu0 %3019
      %3021 = vrot.lane.b32.xlu0 %v3010, 127
      %v3022 = vpop.permute.xlu0 %3021
      %3027 = vst.msk [vmem:[#allocation3 + $0x20] sm:$0xff] %vm808, %v3016
      %3028 = vst.msk [vmem:[#allocation3 + $0x28] sm:$0xff] %vm808, %v3018
      %3029 = vst.msk [vmem:[#allocation3 + $0x30] sm:$0xff] %vm808, %v3020
      %3030 = vst.msk [vmem:[#allocation3 + $0x38] sm:$0xff] %vm808, %v3022
      %v3031 = vld [vmem:[#allocation2] sm:$0xff]
      %v3032 = vld [vmem:[#allocation2 + $0x8] sm:$0xff]
      %v3033 = vld [vmem:[#allocation2 + $0x10] sm:$0xff]
      %v3034 = vld [vmem:[#allocation2 + $0x18] sm:$0xff]
      %3039 = vrot.lane.b32.xlu0 %v3031, 126
      %v3040 = vpop.permute.xlu0 %3039
      %3041 = vrot.lane.b32.xlu0 %v3032, 126
      %v3042 = vpop.permute.xlu0 %3041
      %3043 = vrot.lane.b32.xlu0 %v3033, 126
      %v3044 = vpop.permute.xlu0 %3043
      %3045 = vrot.lane.b32.xlu0 %v3034, 126
      %v3046 = vpop.permute.xlu0 %3045
      %3051 = vst.msk [vmem:[#allocation3 + $0x40] sm:$0xff] %vm808, %v3040
      %3052 = vst.msk [vmem:[#allocation3 + $0x48] sm:$0xff] %vm808, %v3042
      %3053 = vst.msk [vmem:[#allocation3 + $0x50] sm:$0xff] %vm808, %v3044
      %3054 = vst.msk [vmem:[#allocation3 + $0x58] sm:$0xff] %vm808, %v3046
      %v3055 = vld [vmem:[#allocation3] sm:$0xff]
      %v3056 = vld [vmem:[#allocation3 + $0x8] sm:$0xff]
      %v3057 = vld [vmem:[#allocation3 + $0x10] sm:$0xff]
      %v3058 = vld [vmem:[#allocation3 + $0x18] sm:$0xff]
      %v3059 = vld [vmem:[#allocation3 + $0x20] sm:$0xff]
      %v3060 = vld [vmem:[#allocation3 + $0x28] sm:$0xff]
      %v3061 = vld [vmem:[#allocation3 + $0x30] sm:$0xff]
      %v3062 = vld [vmem:[#allocation3 + $0x38] sm:$0xff]
      %v3063 = vld [vmem:[#allocation3 + $0x40] sm:$0xff]
      %v3064 = vld [vmem:[#allocation3 + $0x48] sm:$0xff]
      %v3065 = vld [vmem:[#allocation3 + $0x50] sm:$0xff]
      %v3066 = vld [vmem:[#allocation3 + $0x58] sm:$0xff]
      %v3067 = vld [vmem:[%s15] sm:$0xff]
      %v3068 = vld [vmem:[%s15 + $0x8] sm:$0xff]
      %v3069 = vld [vmem:[%s16] sm:$0xff]
      %v3070 = vld [vmem:[%s16 + $0x8] sm:$0xff]
      %3072 = vset.pattern.permute.xlu0 0
      %3073 = vperm.xlu0 %3072, %v3069
      %v3074 = vpop.permute.xlu0 %3073
      %3077 = vset.pattern.permute.xlu0 0
      %3078 = vperm.xlu0 %3077, %v3070
      %v3079 = vpop.permute.xlu0 %3078
      %vm3081 = vcmask 785408
      %v3083 = vsel %vm3081, %v3067, 0
      %v3086 = vsel %vm3081, %v3068, 0
      %3088 = vmatprep.subr.mxu0 0.0
      %3089 = vmatpush1.msra.mxu0 %v3055
      %3090 = vmatprep.subr.mxu0 0.0
      %3091 = vmatpush1.msra.mxu0 %v3056
      %3092 = vmatprep.subr.mxu0 0.0
      %3093 = vmatpush1.msra.mxu0 %v3057
      %3094 = vmatprep.subr.mxu0 0.0
      %3095 = vmatpush1.msra.mxu0 %v3058
      %3096 = vmatprep.subr.mxu0 0.0
      %3097 = vmatpush1.msra.mxu0 %v3059
      %3098 = vmatprep.subr.mxu0 0.0
      %3099 = vmatpush1.msra.mxu0 %v3060
      %3100 = vmatprep.subr.mxu0 0.0
      %3101 = vmatpush1.msra.mxu0 %v3061
      %3102 = vmatprep.subr.mxu0 0.0
      %3103 = vmatpush1.msra.mxu0 %v3062
      %3104 = vmatprep.subr.mxu0 0.0
      %3105 = vmatpush1.msra.mxu0 %v3063
      %3106 = vmatprep.subr.mxu0 0.0
      %3107 = vmatpush1.msra.mxu0 %v3064
      %3108 = vmatprep.subr.mxu0 0.0
      %3109 = vmatpush1.msra.mxu0 %v3065
      %3110 = vmatprep.subr.mxu0 0.0
      %3111 = vmatpush1.msra.mxu0 %v3066
      %3112 = vmatprep.subr.mxu0 0.0
      %3113 = vmatpush1.msra.mxu0 0.0
      %3114 = vmatprep.subr.mxu0 0.0
      %3115 = vmatpush1.msra.mxu0 0.0
      %3116 = vmatprep.subr.mxu0 0.0
      %3117 = vmatpush1.msra.mxu0 0.0
      %3118 = vmatprep.subr.mxu0 0.0
      %3119 = vmatpush1.msra.mxu0 0.0
      %3120 = vmatprep.subr.mxu0 0.0
      %3121 = vmatpush1.msra.mxu0 0.0
      %3122 = vmatprep.subr.mxu0 0.0
      %3123 = vmatpush1.msra.mxu0 0.0
      %3124 = vmatprep.subr.mxu0 0.0
      %3125 = vmatpush1.msra.mxu0 0.0
      %3126 = vmatprep.subr.mxu0 0.0
      %3127 = vmatpush1.msra.mxu0 0.0
      %3128 = vmatprep.subr.mxu0 0.0
      %3129 = vmatpush1.msra.mxu0 0.0
      %3130 = vmatprep.subr.mxu0 0.0
      %3131 = vmatpush1.msra.mxu0 0.0
      %3132 = vmatprep.subr.mxu0 0.0
      %3133 = vmatpush1.msra.mxu0 0.0
      %3134 = vmatprep.subr.mxu0 0.0
      %3135 = vmatpush1.msra.mxu0 0.0
      %3136 = vmatprep.subr.mxu0 0.0
      %3137 = vmatpush1.msra.mxu0 0.0
      %3138 = vmatprep.subr.mxu0 0.0
      %3139 = vmatpush1.msra.mxu0 0.0
      %3140 = vmatprep.subr.mxu0 0.0
      %3141 = vmatpush1.msra.mxu0 0.0
      %3142 = vmatprep.subr.mxu0 0.0
      %3143 = vmatpush1.msra.mxu0 0.0
      %3144 = vmatprep.subr.mxu0 0.0
      %3145 = vmatpush1.msra.mxu0 0.0
      %3146 = vmatprep.subr.mxu0 0.0
      %3147 = vmatpush1.msra.mxu0 0.0
      %3148 = vmatprep.subr.mxu0 0.0
      %3149 = vmatpush1.msra.mxu0 0.0
      %3150 = vmatprep.subr.mxu0 0.0
      %3151 = vmatpush1.msra.mxu0 0.0
      %3152 = vmatprep.mubr.f32.mxu0 0.0
      %3153 = vmatmul.mubr.f32.gmra.mrb[0].mxu0 %v3083
      %v3154 = vpop.f32.mrb[0].mxu0
      %v3155 = vadd.f32 %v3074, %v3154
      %v3156 = vpop.f32.mrb[0].mxu0
      %3157 = vmatprep.mubr.f32.mxu0 0.0
      %3158 = vmatmul.mubr.f32.gmra.mrb[0].mxu0 %v3086
      %v3159 = vpop.f32.mrb[0].mxu0
      %v3160 = vadd.f32 %v3079, %v3159
      %v3161 = vpop.f32.mrb[0].mxu0
      %3162 = vdwg.mxu0
      %vm3163 = vcmp.ge.f32.partialorder %v3155, 0.0
      %vm3164 = vcmp.ge.f32.partialorder %v3160, 0.0
      %v3165 = vmul.f32 %v3155, 0.01
      %v3166 = vmul.f32 %v3160, 0.01
      %v3167 = vsel %vm3163, %v3155, %v3165
      %v3168 = vsel %vm3164, %v3160, %v3166
      %3171 = vrot.lane.b32.xlu0 %v3167, 1
      %v3172 = vpop.permute.xlu0 %3171
      %3173 = vrot.lane.b32.xlu0 %v3168, 1
      %v3174 = vpop.permute.xlu0 %3173
      %3177 = vst.msk [vmem:[#allocation2] sm:$0xff] %vm2961, %v3172
      %3178 = vst.msk [vmem:[#allocation2 + $0x8] sm:$0xff] %vm2961, %v3174
      %3179 = vrot.lane.b32.xlu0 %v3167, 127
      %v3180 = vpop.permute.xlu0 %3179
      %3181 = vrot.lane.b32.xlu0 %v3168, 127
      %v3182 = vpop.permute.xlu0 %3181
      %3185 = vst.msk [vmem:[#allocation2] sm:$0xff] %vm760, %v3180
      %3186 = vst.msk [vmem:[#allocation2 + $0x8] sm:$0xff] %vm760, %v3182
      %3187 = vrot.lane.b32.xlu0 %v3167, 3
      %v3188 = vpop.permute.xlu0 %3187
      %3189 = vrot.lane.b32.xlu0 %v3168, 3
      %v3190 = vpop.permute.xlu0 %3189
      %3193 = vst.msk [vmem:[#allocation2] sm:$0xff] %vm2994, %v3188
      %3194 = vst.msk [vmem:[#allocation2 + $0x8] sm:$0xff] %vm2994, %v3190
      %v3195 = vld [vmem:[#allocation2] sm:$0xff]
      %v3196 = vld [vmem:[#allocation2 + $0x8] sm:$0xff]
      %3197 = vst.msk [vmem:[#allocation3] sm:$0xff] %vm808, %v3195
      %3198 = vst.msk [vmem:[#allocation3 + $0x8] sm:$0xff] %vm808, %v3196
      %v3199 = vld [vmem:[#allocation2] sm:$0xff]
      %v3200 = vld [vmem:[#allocation2 + $0x8] sm:$0xff]
      %3203 = vrot.lane.b32.xlu0 %v3199, 127
      %v3204 = vpop.permute.xlu0 %3203
      %3205 = vrot.lane.b32.xlu0 %v3200, 127
      %v3206 = vpop.permute.xlu0 %3205
      %3209 = vst.msk [vmem:[#allocation3 + $0x10] sm:$0xff] %vm808, %v3204
      %3210 = vst.msk [vmem:[#allocation3 + $0x18] sm:$0xff] %vm808, %v3206
      %v3211 = vld [vmem:[#allocation2] sm:$0xff]
      %v3212 = vld [vmem:[#allocation2 + $0x8] sm:$0xff]
      %3215 = vrot.lane.b32.xlu0 %v3211, 126
      %v3216 = vpop.permute.xlu0 %3215
      %3217 = vrot.lane.b32.xlu0 %v3212, 126
      %v3218 = vpop.permute.xlu0 %3217
      %3221 = vst.msk [vmem:[#allocation3 + $0x20] sm:$0xff] %vm808, %v3216
      %3222 = vst.msk [vmem:[#allocation3 + $0x28] sm:$0xff] %vm808, %v3218
      %v3223 = vld [vmem:[#allocation3] sm:$0xff]
      %v3224 = vld [vmem:[#allocation3 + $0x8] sm:$0xff]
      %v3225 = vld [vmem:[#allocation3 + $0x10] sm:$0xff]
      %v3226 = vld [vmem:[#allocation3 + $0x18] sm:$0xff]
      %v3227 = vld [vmem:[#allocation3 + $0x20] sm:$0xff]
      %v3228 = vld [vmem:[#allocation3 + $0x28] sm:$0xff]
      %v3229 = vld [vmem:[%s17] sm:$0xff]
      %v3230 = vld [vmem:[%s18] sm:$0xff]
      %3232 = vset.pattern.permute.xlu0 0
      %3233 = vperm.xlu0 %3232, %v3230
      %v3234 = vpop.permute.xlu0 %3233
      %vm3236 = vcmask 392192
      %v3238 = vsel %vm3236, %v3229, 0
      %3240 = vmatprep.subr.mxu0 0.0
      %3241 = vmatpush1.msra.mxu0 %v3223
      %3242 = vmatprep.subr.mxu0 0.0
      %3243 = vmatpush1.msra.mxu0 %v3224
      %3244 = vmatprep.subr.mxu0 0.0
      %3245 = vmatpush1.msra.mxu0 %v3225
      %3246 = vmatprep.subr.mxu0 0.0
      %3247 = vmatpush1.msra.mxu0 %v3226
      %3248 = vmatprep.subr.mxu0 0.0
      %3249 = vmatpush1.msra.mxu0 %v3227
      %3250 = vmatprep.subr.mxu0 0.0
      %3251 = vmatpush1.msra.mxu0 %v3228
      %3252 = vmatprep.subr.mxu0 0.0
      %3253 = vmatpush1.msra.mxu0 0.0
      %3254 = vmatprep.subr.mxu0 0.0
      %3255 = vmatpush1.msra.mxu0 0.0
      %3256 = vmatprep.subr.mxu0 0.0
      %3257 = vmatpush1.msra.mxu0 0.0
      %3258 = vmatprep.subr.mxu0 0.0
      %3259 = vmatpush1.msra.mxu0 0.0
      %3260 = vmatprep.subr.mxu0 0.0
      %3261 = vmatpush1.msra.mxu0 0.0
      %3262 = vmatprep.subr.mxu0 0.0
      %3263 = vmatpush1.msra.mxu0 0.0
      %3264 = vmatprep.subr.mxu0 0.0
      %3265 = vmatpush1.msra.mxu0 0.0
      %3266 = vmatprep.subr.mxu0 0.0
      %3267 = vmatpush1.msra.mxu0 0.0
      %3268 = vmatprep.subr.mxu0 0.0
      %3269 = vmatpush1.msra.mxu0 0.0
      %3270 = vmatprep.subr.mxu0 0.0
      %3271 = vmatpush1.msra.mxu0 0.0
      %3272 = vmatprep.subr.mxu0 0.0
      %3273 = vmatpush1.msra.mxu0 0.0
      %3274 = vmatprep.subr.mxu0 0.0
      %3275 = vmatpush1.msra.mxu0 0.0
      %3276 = vmatprep.subr.mxu0 0.0
      %3277 = vmatpush1.msra.mxu0 0.0
      %3278 = vmatprep.subr.mxu0 0.0
      %3279 = vmatpush1.msra.mxu0 0.0
      %3280 = vmatprep.subr.mxu0 0.0
      %3281 = vmatpush1.msra.mxu0 0.0
      %3282 = vmatprep.subr.mxu0 0.0
      %3283 = vmatpush1.msra.mxu0 0.0
      %3284 = vmatprep.subr.mxu0 0.0
      %3285 = vmatpush1.msra.mxu0 0.0
      %3286 = vmatprep.subr.mxu0 0.0
      %3287 = vmatpush1.msra.mxu0 0.0
      %3288 = vmatprep.subr.mxu0 0.0
      %3289 = vmatpush1.msra.mxu0 0.0
      %3290 = vmatprep.subr.mxu0 0.0
      %3291 = vmatpush1.msra.mxu0 0.0
      %3292 = vmatprep.subr.mxu0 0.0
      %3293 = vmatpush1.msra.mxu0 0.0
      %3294 = vmatprep.subr.mxu0 0.0
      %3295 = vmatpush1.msra.mxu0 0.0
      %3296 = vmatprep.subr.mxu0 0.0
      %3297 = vmatpush1.msra.mxu0 0.0
      %3298 = vmatprep.subr.mxu0 0.0
      %3299 = vmatpush1.msra.mxu0 0.0
      %3300 = vmatprep.subr.mxu0 0.0
      %3301 = vmatpush1.msra.mxu0 0.0
      %3302 = vmatprep.subr.mxu0 0.0
      %3303 = vmatpush1.msra.mxu0 0.0
      %3304 = vmatprep.mubr.f32.mxu0 0.0
      %3305 = vmatmul.mubr.f32.gmra.mrb[0].mxu0 %v3238
      %v3306 = vpop.f32.mrb[0].mxu0
      %v3307 = vadd.f32 %v3234, %v3306
      %v3308 = vpop.f32.mrb[0].mxu0
      %3309 = vdwg.mxu0
      %vm3310 = vcmp.ge.f32.partialorder %v3307, 0.0
      %v3311 = vmul.f32 %v3307, 0.01
      %v3312 = vsel %vm3310, %v3307, %v3311
      %v3313 = vsel %vm808, %v3312, 0.0
      %3314 = vadd.xlane.f32.xlu0 %v3313
      %v3315 = vpop.xlane.xlu0 %3314
      %v3316 = vmul.f32 %v3315, %v1420
      %v3317 = vmul.f32 %v3312, %v3312
      %v3318 = vsel %vm808, %v3317, 0.0
      %3319 = vadd.xlane.f32.xlu0 %v3318
      %v3320 = vpop.xlane.xlu0 %3319
      %v3321 = vmul.f32 %v3320, %v1420
      %v3322 = vmul.f32 %v3316, %v3316
      %v3323 = vsub.f32 %v3321, %v3322
      %v3324 = vsub.f32 %v3312, %v3316
      %v3325 = vadd.f32 %v3323, 1e-05
      %v3326 = vrsqrt.pop %v3325
      %v3327 = vmul.f32 %v3324, %v3326
      %vm3328 = vcmask 465920
      %3329 = vst.msk [vmem:[#allocation3] sm:$0xff] %vm3328, %v3327
      %3331 = vrot.lane.b32.xlu0 %v3327, 127
      %v3332 = vpop.permute.xlu0 %3331
      %3334 = vst.msk [vmem:[#allocation3 + $0x8] sm:$0xff] %vm3328, %v3332
      %3335 = vrot.lane.b32.xlu0 %v3327, 126
      %v3336 = vpop.permute.xlu0 %3335
      %3338 = vst.msk [vmem:[#allocation3 + $0x10] sm:$0xff] %vm3328, %v3336
      %3339 = vrot.lane.b32.xlu0 %v3327, 125
      %v3340 = vpop.permute.xlu0 %3339
      %3342 = vst.msk [vmem:[#allocation3 + $0x18] sm:$0xff] %vm3328, %v3340
      %3343 = vrot.lane.b32.xlu0 %v3327, 124
      %v3344 = vpop.permute.xlu0 %3343
      %3346 = vst.msk [vmem:[#allocation3 + $0x20] sm:$0xff] %vm3328, %v3344
      %3347 = vrot.lane.b32.xlu0 %v3327, 123
      %v3348 = vpop.permute.xlu0 %3347
      %3350 = vst.msk [vmem:[#allocation3 + $0x28] sm:$0xff] %vm3328, %v3348
      %3351 = vrot.lane.b32.xlu0 %v3327, 122
      %v3352 = vpop.permute.xlu0 %3351
      %3354 = vst.msk [vmem:[#allocation3 + $0x30] sm:$0xff] %vm3328, %v3352
      %3355 = vrot.lane.b32.xlu0 %v3327, 121
      %v3356 = vpop.permute.xlu0 %3355
      %3358 = vst.msk [vmem:[#allocation3 + $0x38] sm:$0xff] %vm3328, %v3356
      %v3359 = vld [vmem:[#allocation3] sm:$0xff]
      %v3360 = vld [vmem:[#allocation3 + $0x8] sm:$0xff]
      %v3361 = vld [vmem:[#allocation3 + $0x10] sm:$0xff]
      %v3362 = vld [vmem:[#allocation3 + $0x18] sm:$0xff]
      %v3363 = vld [vmem:[#allocation3 + $0x20] sm:$0xff]
      %v3364 = vld [vmem:[#allocation3 + $0x28] sm:$0xff]
      %v3365 = vld [vmem:[#allocation3 + $0x30] sm:$0xff]
      %v3366 = vld [vmem:[#allocation3 + $0x38] sm:$0xff]
      %v3367 = vld [vmem:[%s19] sm:$0xff]
      %v3368 = vld [vmem:[%s20] sm:$0xff]
      %3370 = vset.pattern.permute.xlu0 0
      %3371 = vperm.xlu0 %3370, %v3368
      %v3372 = vpop.permute.xlu0 %3371
      %v3375 = vsel %vm808, %v3367, 0
      %3377 = vmatprep.subr.mxu0 0.0
      %3378 = vmatpush1.msra.mxu0 %v3359
      %3379 = vmatprep.subr.mxu0 0.0
      %3380 = vmatpush1.msra.mxu0 %v3360
      %3381 = vmatprep.subr.mxu0 0.0
      %3382 = vmatpush1.msra.mxu0 %v3361
      %3383 = vmatprep.subr.mxu0 0.0
      %3384 = vmatpush1.msra.mxu0 %v3362
      %3385 = vmatprep.subr.mxu0 0.0
      %3386 = vmatpush1.msra.mxu0 %v3363
      %3387 = vmatprep.subr.mxu0 0.0
      %3388 = vmatpush1.msra.mxu0 %v3364
      %3389 = vmatprep.subr.mxu0 0.0
      %3390 = vmatpush1.msra.mxu0 %v3365
      %3391 = vmatprep.subr.mxu0 0.0
      %3392 = vmatpush1.msra.mxu0 %v3366
      %3393 = vmatprep.subr.mxu0 0.0
      %3394 = vmatpush1.msra.mxu0 0.0
      %3395 = vmatprep.subr.mxu0 0.0
      %3396 = vmatpush1.msra.mxu0 0.0
      %3397 = vmatprep.subr.mxu0 0.0
      %3398 = vmatpush1.msra.mxu0 0.0
      %3399 = vmatprep.subr.mxu0 0.0
      %3400 = vmatpush1.msra.mxu0 0.0
      %3401 = vmatprep.subr.mxu0 0.0
      %3402 = vmatpush1.msra.mxu0 0.0
      %3403 = vmatprep.subr.mxu0 0.0
      %3404 = vmatpush1.msra.mxu0 0.0
      %3405 = vmatprep.subr.mxu0 0.0
      %3406 = vmatpush1.msra.mxu0 0.0
      %3407 = vmatprep.subr.mxu0 0.0
      %3408 = vmatpush1.msra.mxu0 0.0
      %3409 = vmatprep.subr.mxu0 0.0
      %3410 = vmatpush1.msra.mxu0 0.0
      %3411 = vmatprep.subr.mxu0 0.0
      %3412 = vmatpush1.msra.mxu0 0.0
      %3413 = vmatprep.subr.mxu0 0.0
      %3414 = vmatpush1.msra.mxu0 0.0
      %3415 = vmatprep.subr.mxu0 0.0
      %3416 = vmatpush1.msra.mxu0 0.0
      %3417 = vmatprep.subr.mxu0 0.0
      %3418 = vmatpush1.msra.mxu0 0.0
      %3419 = vmatprep.subr.mxu0 0.0
      %3420 = vmatpush1.msra.mxu0 0.0
      %3421 = vmatprep.subr.mxu0 0.0
      %3422 = vmatpush1.msra.mxu0 0.0
      %3423 = vmatprep.subr.mxu0 0.0
      %3424 = vmatpush1.msra.mxu0 0.0
      %3425 = vmatprep.subr.mxu0 0.0
      %3426 = vmatpush1.msra.mxu0 0.0
      %3427 = vmatprep.subr.mxu0 0.0
      %3428 = vmatpush1.msra.mxu0 0.0
      %3429 = vmatprep.subr.mxu0 0.0
      %3430 = vmatpush1.msra.mxu0 0.0
      %3431 = vmatprep.subr.mxu0 0.0
      %3432 = vmatpush1.msra.mxu0 0.0
      %3433 = vmatprep.subr.mxu0 0.0
      %3434 = vmatpush1.msra.mxu0 0.0
      %3435 = vmatprep.subr.mxu0 0.0
      %3436 = vmatpush1.msra.mxu0 0.0
      %3437 = vmatprep.subr.mxu0 0.0
      %3438 = vmatpush1.msra.mxu0 0.0
      %3439 = vmatprep.subr.mxu0 0.0
      %3440 = vmatpush1.msra.mxu0 0.0
      %3441 = vmatprep.mubr.f32.mxu0 0.0
      %3442 = vmatmul.mubr.f32.gmra.mrb[0].mxu0 %v3375
      %v3443 = vpop.f32.mrb[0].mxu0
      %v3444 = vadd.f32 %v3372, %v3443
      %v3445 = vpop.f32.mrb[0].mxu0
      %3446 = vdwg.mxu0
      %3447 = vst.msk [vmem:[%s694] sm:$0xff] %vm3328, %v3444
      %p3448 = scmp.lt.s32.totalorder %s32, 1
      %s3449 = scalar_select %p3448, %s32, 1
      %s3450 = smul.addr %s3449, 8
      %s3451 = scalar_lea.vmem %s21, %s3450
      // Predicated region
      $region105: #{forward.1} parent=103 // pred_check
        %p3452 = pneg %p506
      $region106: #{forward.1} parent=103 // pred_check_branch
        %3454 = sbr.rel (%p3452) target = $region108
      $region107: #{forward.1} parent=103 // pred_region
        _
      $region108: #{forward.1} parent=103 // pred_fallthru
        _
    $region104: #{forward.1} parent=5 // pred_fallthru
      _
    %p3455 = scmp.le.s32.totalorder 2, %s27
    // Predicated region
    $region109: #{forward.1} parent=5 // pred_check
      %p3456 = pneg %p3455
    $region110: #{forward.1} parent=5 // pred_check_branch
      %3458 = sbr.rel (%p3456) target = $region112
    $region111: #{forward.1} parent=5 // pred_region
      %s3459 = ssub.s32 %s27, 2
      // Predicated region
      $region113: #{forward.1} parent=111 // pred_check
        %p3460 = pneg %p512
      $region114: #{forward.1} parent=111 // pred_check_branch
        %3462 = sbr.rel (%p3460) target = $region116
      $region115: #{forward.1} parent=111 // pred_region
        %p3463 = scmp.lt.s32.totalorder %s33, 1
        %s3464 = scalar_select %p3463, %s33, 1
        %s3465 = smul.addr %s3464, 8
        %s3466 = scalar_lea.vmem %s21, %s3465
      $region116: #{forward.1} parent=111 // pred_fallthru
        _
    $region112: #{forward.1} parent=5 // pred_fallthru
      _
  $region6: #{forward.1} parent=0 // loop_footer
    %s31 = sadd.s32 1, %s27
  $region7: #{forward.1} parent=0 // loop_footer_branch
    %26 = sbr.rel target = $region3
  $region8: #{forward.1} parent=0 // loop_exit
    _

</llo_original>
